<compile_context>
chip_gen: v6e
topology: v6e:2x2x1
jax: 0.10.0
libtpu: 0.0.40
codegen_flags: <defaults>
</compile_context>

<pallas_src>
import math

import jax
import jax.numpy as jnp
from jax import lax
from jax.experimental import pallas as pl
from jax.experimental.pallas import tpu as pltpu


# Raise the scoped VMEM limit (defaults: 16 MiB v5e / 32 MiB v6e+v7x) while leaving
# headroom under v7x's 64 MiB physical VMEM.
_VMEM_LIMIT = 48 * 1024 * 1024


# ---------------------------------------------------------------------------
# Tiled linear (x @ W + b) kernel
# ---------------------------------------------------------------------------

def _linear_kernel(x_ref, w_ref, b_ref, o_ref, acc_ref):
    # x_ref: (tm, tk) f32, w_ref: (tk, tn) bf16, b_ref: (1, tn) f32, o_ref: (tm, tn)
    k = pl.program_id(2)

    @pl.when(k == 0)
    def _():
        # Initialize the accumulator with the broadcast bias (saves an epilogue add).
        acc_ref[...] = jnp.broadcast_to(b_ref[...].astype(jnp.float32), acc_ref.shape)

    # bf16 operands on the MXU, f32 accumulation.
    acc_ref[...] += jnp.dot(x_ref[...].astype(jnp.bfloat16), w_ref[...],
                            preferred_element_type=jnp.float32)

    @pl.when(k == pl.num_programs(2) - 1)
    def _():
        o_ref[...] = acc_ref[...].astype(o_ref.dtype)


def _pick_tile(dim, candidates=(512, 256, 128)):
    for t in candidates:
        if dim % t == 0:
            return t
    # TODO(synk): pad ragged dims to a multiple of 128 (or use masked tails) instead of
    # falling back to full-extent blocks, which blow VMEM (esp. v7x's 64 MiB).
    raise ValueError(f"dimension {dim} is not a multiple of 128")


def pallas_linear(x2d, w, b, *, out_dtype=None):
    """x2d: (M, K), w: (K, N) bf16, b: (N,) -> (M, N) = x2d @ w + b (f32 accumulation)."""
    M, K = x2d.shape
    K2, N = w.shape
    assert K == K2
    tm, tn, tk = _pick_tile(M), _pick_tile(N), _pick_tile(K)
    out_dtype = out_dtype or x2d.dtype
    b2d = b.reshape(1, N)

    return pl.pallas_call(
        _linear_kernel,
        out_shape=jax.ShapeDtypeStruct((M, N), out_dtype),
        grid_spec=pltpu.PrefetchScalarGridSpec(
            num_scalar_prefetch=0,
            grid=(M // tm, N // tn, K // tk),
            in_specs=[
                pl.BlockSpec((tm, tk), lambda i, j, k: (i, k)),
                pl.BlockSpec((tk, tn), lambda i, j, k: (k, j)),
                pl.BlockSpec((1, tn), lambda i, j, k: (0, j)),
            ],
            out_specs=pl.BlockSpec((tm, tn), lambda i, j, k: (i, j)),
            scratch_shapes=[pltpu.VMEM((tm, tn), jnp.float32)],
        ),
        compiler_params=pltpu.CompilerParams(
            dimension_semantics=("parallel", "parallel", "arbitrary"),
            vmem_limit_bytes=_VMEM_LIMIT),
    )(x2d, w, b2d)


# ---------------------------------------------------------------------------
# Fused flash attention + c_proj kernel
# ---------------------------------------------------------------------------

def _attn_proj_kernel(q_ref, k_ref, v_ref, wp_ref, bp_ref, o_ref,
                      m_sc, l_sc, acc_sc, proj_sc):
    # q_ref: (1, tq, c) bf16, k_ref/v_ref: (1, tkv, c) bf16,
    # wp_ref: (c, width) bf16, bp_ref: (1, width) f32, o_ref: (1, tq, width)
    h = pl.program_id(2)
    kv = pl.program_id(3)
    last_h = pl.num_programs(2) - 1
    last_kv = pl.num_programs(3) - 1

    @pl.when(jnp.logical_and(h == 0, kv == 0))
    def _():
        # Fused-projection accumulator, initialized with the broadcast c_proj bias.
        proj_sc[...] = jnp.broadcast_to(bp_ref[...].astype(jnp.float32), proj_sc.shape)

    @pl.when(kv == 0)
    def _():
        m_sc[...] = jnp.full_like(m_sc, -jnp.inf)
        l_sc[...] = jnp.zeros_like(l_sc)
        acc_sc[...] = jnp.zeros_like(acc_sc)

    # q/k/v are bf16; the softmax scale is already folded into the q columns of c_qkv.
    q = q_ref[0]
    k = k_ref[0]
    v = v_ref[0]

    # Scores: contract the last dims directly on the MXU (no materialized k.T).
    s = lax.dot_general(q, k, dimension_numbers=(((1,), (1,)), ((), ())),
                        preferred_element_type=jnp.float32)

    m_prev = m_sc[...]
    m_new = jnp.maximum(m_prev, jnp.max(s, axis=-1, keepdims=True))
    alpha = jnp.exp(m_prev - m_new)
    p = jnp.exp(s - m_new)
    l_sc[...] = alpha * l_sc[...] + jnp.sum(p, axis=-1, keepdims=True)
    acc_sc[...] = alpha * acc_sc[...] + jnp.dot(
        p.astype(jnp.bfloat16), v, preferred_element_type=jnp.float32)
    m_sc[...] = m_new

    @pl.when(kv == last_kv)
    def _():
        # Finish this head's softmax and fold it straight into the c_proj matmul:
        #   proj_acc += attn_h @ W_proj[h*c:(h+1)*c, :]
        l = l_sc[...]
        inv_l = pl.reciprocal(l, approx=True)   # EUP slot (cheap)
        inv_l = inv_l * (2.0 - l * inv_l)       # one Newton step -> ~f32 accuracy
        head_out = (acc_sc[...] * inv_l).astype(jnp.bfloat16)
        proj_sc[...] += jnp.dot(head_out, wp_ref[...],
                                preferred_element_type=jnp.float32)

    @pl.when(jnp.logical_and(h == last_h, kv == last_kv))
    def _():
        o_ref[0] = proj_sc[...].astype(o_ref.dtype)


def _pick_seq_tile(T, preferred):
    for t in (preferred, 256, 128):
        if T % t == 0:
            return t
    # TODO(synk): pad n_ctx to a multiple of 128 / mask tails for ragged sequences.
    raise ValueError(f"n_ctx={T} must be a multiple of 128")


def pallas_attention_proj(qkv, w_proj, b_proj, heads, *, out_dtype, tq=256, tkv=256):
    """Fused QKVMultiheadAttention + c_proj.

    qkv: (bs, T, 3*width) in the torch per-head [q|k|v] column layout, with the
         softmax scale already folded into the q columns.
    w_proj: (width, width) input-major (x @ w_proj), b_proj: (width,).
    returns: (bs, T, width) = attention(qkv) @ w_proj + b_proj.
    """
    bs, T, w3 = qkv.shape
    width = w3 // 3
    assert width % heads == 0
    c = width // heads
    # Per-head q/k/v column blocks must be lane-aligned for a legal TPU BlockSpec.
    # TODO(synk): pad the head dim or pack 128//c heads per block when c % 128 != 0.
    assert c % 128 == 0, f"head dim {c} must be a multiple of 128"
    tq = _pick_seq_tile(T, tq)
    tkv = _pick_seq_tile(T, tkv)

    grid = (bs, T // tq, heads, T // tkv)
    # Head h of qkv occupies column blocks [3h, 3h+1, 3h+2] of width c: q, k, v.
    q_spec = pl.BlockSpec((1, tq, c), lambda b, i, h, j: (b, i, 3 * h))
    k_spec = pl.BlockSpec((1, tkv, c), lambda b, i, h, j: (b, j, 3 * h + 1))
    v_spec = pl.BlockSpec((1, tkv, c), lambda b, i, h, j: (b, j, 3 * h + 2))
    # Rows [h*c, (h+1)*c) of w_proj multiply head h's attention output.
    wp_spec = pl.BlockSpec((c, width), lambda b, i, h, j: (h, 0))
    bp_spec = pl.BlockSpec((1, width), lambda b, i, h, j: (0, 0))
    o_spec = pl.BlockSpec((1, tq, width), lambda b, i, h, j: (b, i, 0))

    return pl.pallas_call(
        _attn_proj_kernel,
        out_shape=jax.ShapeDtypeStruct((bs, T, width), out_dtype),
        grid_spec=pltpu.PrefetchScalarGridSpec(
            num_scalar_prefetch=0,
            grid=grid,
            in_specs=[q_spec, k_spec, v_spec, wp_spec, bp_spec],
            out_specs=o_spec,
            scratch_shapes=[
                pltpu.VMEM((tq, 1), jnp.float32),      # running max  m
                pltpu.VMEM((tq, 1), jnp.float32),      # running sum  l
                pltpu.VMEM((tq, c), jnp.float32),      # per-head attention acc
                pltpu.VMEM((tq, width), jnp.float32),  # fused c_proj acc
            ],
        ),
        compiler_params=pltpu.CompilerParams(
            dimension_semantics=("parallel", "parallel", "arbitrary", "arbitrary"),
            vmem_limit_bytes=_VMEM_LIMIT),
    )(qkv, qkv, qkv, w_proj, b_proj.reshape(1, width))


# ---------------------------------------------------------------------------
# Parameter prep (one-time, host side) and full module forward
# ---------------------------------------------------------------------------

def prepare_params(params, heads):
    """Fold the softmax scale (c**-0.5, identical to torch's c**-0.25 on q AND k) into
    the q columns of c_qkv, and cast the large weight matrices to bf16."""
    w_qkv, b_qkv, w_proj, b_proj = params
    width, w3 = w_qkv.shape
    assert w3 == 3 * width
    c = width // heads
    idx = jnp.arange(3 * width)
    # Column j belongs to the q slice of its head iff (j mod 3c) < c.
    scale = jnp.where((idx % (3 * c)) < c, 1.0 / math.sqrt(c), 1.0).astype(jnp.float32)
    w_qkv_p = (w_qkv.astype(jnp.float32) * scale[None, :]).astype(jnp.bfloat16)
    b_qkv_p = (b_qkv.astype(jnp.float32) * scale)
    return w_qkv_p, b_qkv_p, w_proj.astype(jnp.bfloat16), b_proj.astype(jnp.float32)


def multihead_attention(x, prepared_params, heads):
    """MultiheadAttention.forward: c_qkv -> QKVMultiheadAttention -> c_proj.

    x: (bs, n_ctx, width).  `prepared_params` comes from prepare_params()."""
    bs, T, width = x.shape
    w_qkv, b_qkv, w_proj, b_proj = prepared_params
    # c_qkv. Keep the (bs*T, 3*width) intermediate in bf16: it halves HBM traffic and
    # it is re-read (q, k, v) by the attention kernel.
    qkv = pallas_linear(x.reshape(bs * T, width), w_qkv, b_qkv, out_dtype=jnp.bfloat16)
    # Fused attention + c_proj (skips one (bs, T, width) HBM round trip).
    return pallas_attention_proj(qkv.reshape(bs, T, 3 * width), w_proj, b_proj,
                                 heads, out_dtype=x.dtype)


# ---------------------------------------------------------------------------
# Pure-JAX references (for correctness check)
# ---------------------------------------------------------------------------

def reference_mha_f32(x, params, heads):
    """Original module semantics at full f32 precision."""
    w_qkv, b_qkv, w_proj, b_proj = params
    bs, T, width = x.shape
    hp = lax.Precision.HIGHEST
    qkv = jnp.einsum("btk,kn->btn", x, w_qkv, precision=hp) + b_qkv
    c = width // heads
    qkv = qkv.reshape(bs, T, heads, 3 * c)
    q, k, v = qkv[..., :c], qkv[..., c:2 * c], qkv[..., 2 * c:]
    scale = 1.0 / math.sqrt(math.sqrt(c))
    w = jnp.einsum("bthc,bshc->bhts", q * scale, k * scale, precision=hp)
    w = jax.nn.softmax(w.astype(jnp.float32), axis=-1)
    out = jnp.einsum("bhts,bshc->bthc", w, v, precision=hp).reshape(bs, T, width)
    return jnp.einsum("btk,kn->btn", out, w_proj, precision=hp) + b_proj


def reference_mha_bf16(x, prepared_params, heads):
    """Reference with the kernel's dtype handling (bf16 MXU operands, f32 accumulation)."""
    w_qkv, b_qkv, w_proj, b_proj = prepared_params
    bs, T, width = x.shape
    c = width // heads
    f32 = jnp.float32
    qkv = (jnp.dot(x.reshape(bs * T, width).astype(jnp.bfloat16), w_qkv,
                   preferred_element_type=f32) + b_qkv).astype(jnp.bfloat16)
    qkv = qkv.reshape(bs, T, heads, 3 * c)
    q, k, v = qkv[..., :c], qkv[..., c:2 * c], qkv[..., 2 * c:]
    s = jnp.einsum("bthc,bshc->bhts", q, k, preferred_element_type=f32)
    p = jax.nn.softmax(s, axis=-1).astype(jnp.bfloat16)
    attn = jnp.einsum("bhts,bshc->bthc", p, v, preferred_element_type=f32)
    attn = attn.astype(jnp.bfloat16).reshape(bs * T, width)
    out = jnp.dot(attn, w_proj, preferred_element_type=f32) + b_proj
    return out.reshape(bs, T, width).astype(x.dtype)


# ---------------------------------------------------------------------------
# Main
# ---------------------------------------------------------------------------

if __name__ == "__main__":
    # Small but TPU-tile-aligned shapes: head dim = 128, n_ctx a multiple of 128.
    bs, n_ctx, width, heads = 2, 256, 512, 4
    init_scale = 1.0 / math.sqrt(width)
    dtype = jnp.float32

    key = jax.random.PRNGKey(0)
    kx, k1, k2 = jax.random.split(key, 3)

    x = jax.random.normal(kx, (bs, n_ctx, width), dtype=dtype)

    # init_linear: normal(std=init_scale) weights, zero bias. Weights stored as
    # (in, out) so forward is x @ W + b (equivalent to torch's x @ W^T + b).
    w_qkv = init_scale * jax.random.normal(k1, (width, 3 * width), dtype=dtype)
    b_qkv = jnp.zeros((3 * width,), dtype=dtype)
    w_proj = init_scale * jax.random.normal(k2, (width, width), dtype=dtype)
    b_proj = jnp.zeros((width,), dtype=dtype)
    params = (w_qkv, b_qkv, w_proj, b_proj)
    prepared = prepare_params(params, heads)

    out = jax.block_until_ready(multihead_attention(x, prepared, heads))
    assert out.shape == (bs, n_ctx, width)

    # Tight check against a reference with matched (bf16-operand) matmul precision.
    ref_bf16 = jax.block_until_ready(reference_mha_bf16(x, prepared, heads))
    err_bf16 = float(jnp.max(jnp.abs(out - ref_bf16)))
    mag_bf16 = float(jnp.max(jnp.abs(ref_bf16)))
    assert err_bf16 <= 5e-3 * max(mag_bf16, 1.0), (
        f"mismatch vs bf16-matched reference: max|err|={err_bf16}, max|ref|={mag_bf16}")

    # Loose sanity check against the original-module f32 reference (bf16 MXU operands
    # bound the achievable accuracy; structural bugs would be ~10x larger than this).
    ref_f32 = jax.block_until_ready(reference_mha_f32(x, params, heads))
    err_f32 = float(jnp.max(jnp.abs(out - ref_f32)))
    mag_f32 = float(jnp.max(jnp.abs(ref_f32)))
    assert err_f32 <= 5e-2 * max(mag_f32, 1.0), (
        f"mismatch vs f32 reference: max|err|={err_f32}, max|ref|={mag_f32}")

    print("KERNEL_OK")
</pallas_src>

<mosaic_0001>
module attributes {stable_mosaic.version = 11 : i64} {
  func.func @_linear_kernel(%arg0: i32, %arg1: i32, %arg2: i32, %arg3: memref<512x512xf32, #tpu.memory_space<vmem>>, %arg4: memref<512x512xbf16, #tpu.memory_space<vmem>>, %arg5: memref<1x512xf32, #tpu.memory_space<vmem>>, %arg6: memref<512x512xbf16, #tpu.memory_space<vmem>>, %arg7: memref<512x512xf32, #tpu.memory_space<vmem>>) attributes {dimension_semantics = [#tpu.dimension_semantics<parallel>, #tpu.dimension_semantics<parallel>, #tpu.dimension_semantics<arbitrary>], iteration_bounds = array<i64: 1, 3, 1>, scalar_prefetch = 0 : i64, scratch_operands = 1 : i64, tpu.core_type = #tpu.core_type<tc>, window_params = [{transform_indices = @transform_0, window_bounds = array<i64: 512, 512>}, {transform_indices = @transform_1, window_bounds = array<i64: 512, 512>}, {transform_indices = @transform_2, window_bounds = array<i64: 1, 512>}, {transform_indices = @transform_3, window_bounds = array<i64: 512, 512>}]} {
    %c0_i32 = arith.constant 0 : i32
    %0 = arith.cmpi eq, %arg2, %c0_i32 : i32
    %1 = arith.extui %0 : i1 to i32
    %c0_i32_0 = arith.constant 0 : i32
    %2 = arith.cmpi ne, %1, %c0_i32_0 : i32
    scf.if %2 {
      %c0_10 = arith.constant 0 : index
      %c0_11 = arith.constant 0 : index
      %13 = vector.load %arg5[%c0_10, %c0_11] : memref<1x512xf32, #tpu.memory_space<vmem>>, vector<1x512xf32>
      %14 = vector.shape_cast %13 : vector<1x512xf32> to vector<1x512xf32>
      %15 = vector.broadcast %14 : vector<1x512xf32> to vector<512x512xf32>
      %c0_12 = arith.constant 0 : index
      %c0_13 = arith.constant 0 : index
      %16 = vector.load %arg7[%c0_12, %c0_13] : memref<512x512xf32, #tpu.memory_space<vmem>>, vector<512x512xf32>
      tpu.vector_store %arg7[%c0_12, %c0_13], %15 {strides = array<i32>} : memref<512x512xf32, #tpu.memory_space<vmem>>, vector<512x512xf32>,
    } else {
    }
    %c0 = arith.constant 0 : index
    %c0_1 = arith.constant 0 : index
    %3 = vector.load %arg7[%c0, %c0_1] : memref<512x512xf32, #tpu.memory_space<vmem>>, vector<512x512xf32>
    %c0_2 = arith.constant 0 : index
    %c0_3 = arith.constant 0 : index
    %4 = vector.load %arg3[%c0_2, %c0_3] : memref<512x512xf32, #tpu.memory_space<vmem>>, vector<512x512xf32>
    %5 = arith.truncf %4 : vector<512x512xf32> to vector<512x512xbf16>
    %c0_4 = arith.constant 0 : index
    %c0_5 = arith.constant 0 : index
    %6 = vector.load %arg4[%c0_4, %c0_5] : memref<512x512xbf16, #tpu.memory_space<vmem>>, vector<512x512xbf16>
    %cst = arith.constant dense<0.000000e+00> : vector<512x512xf32>
    %7 = tpu.matmul %5, %6, %cst {dimension_numbers = #tpu.dot_dimension_numbers<[1], [0], [0], [1], [0, 0, 1, 1], [], []>} : vector<512x512xbf16>, vector<512x512xbf16>, vector<512x512xf32> -> vector<512x512xf32>
    %8 = arith.addf %3, %7 : vector<512x512xf32>
    %c0_6 = arith.constant 0 : index
    %c0_7 = arith.constant 0 : index
    %9 = vector.load %arg7[%c0_6, %c0_7] : memref<512x512xf32, #tpu.memory_space<vmem>>, vector<512x512xf32>
    tpu.vector_store %arg7[%c0_6, %c0_7], %8 {strides = array<i32>} : memref<512x512xf32, #tpu.memory_space<vmem>>, vector<512x512xf32>,
    %c0_i32_8 = arith.constant 0 : i32
    %10 = arith.cmpi eq, %arg2, %c0_i32_8 : i32
    %11 = arith.extui %10 : i1 to i32
    %c0_i32_9 = arith.constant 0 : i32
    %12 = arith.cmpi ne, %11, %c0_i32_9 : i32
    scf.if %12 {
      %c0_10 = arith.constant 0 : index
      %c0_11 = arith.constant 0 : index
      %13 = vector.load %arg7[%c0_10, %c0_11] : memref<512x512xf32, #tpu.memory_space<vmem>>, vector<512x512xf32>
      %14 = arith.truncf %13 : vector<512x512xf32> to vector<512x512xbf16>
      %c0_12 = arith.constant 0 : index
      %c0_13 = arith.constant 0 : index
      %15 = vector.load %arg6[%c0_12, %c0_13] : memref<512x512xbf16, #tpu.memory_space<vmem>>, vector<512x512xbf16>
      tpu.vector_store %arg6[%c0_12, %c0_13], %14 {strides = array<i32>} : memref<512x512xbf16, #tpu.memory_space<vmem>>, vector<512x512xbf16>,
    } else {
    }
    return
  }
  func.func @transform_0(%arg0: i32, %arg1: i32, %arg2: i32) -> (i32, i32) {
    %c0_i32 = arith.constant 0 : i32
    return %arg0, %arg2 : i32, i32
  }
  func.func @transform_1(%arg0: i32, %arg1: i32, %arg2: i32) -> (i32, i32) {
    %c0_i32 = arith.constant 0 : i32
    return %arg2, %arg1 : i32, i32
  }
  func.func @transform_2(%arg0: i32, %arg1: i32, %arg2: i32) -> (i32, i32) {
    %c0_i32 = arith.constant 0 : i32
    %c0_i32_0 = arith.constant 0 : i32
    return %c0_i32, %arg1 : i32, i32
  }
  func.func @transform_3(%arg0: i32, %arg1: i32, %arg2: i32) -> (i32, i32) {
    %c0_i32 = arith.constant 0 : i32
    return %arg0, %arg1 : i32, i32
  }
}

</mosaic_0001>

<llo_original>
// kernel: tpu_custom_call.1
$region0: #{tpu_custom_call.1}
  #allocation0 [shape = 'u32[]', space=smem, size = 0x4, offset = 0x4, fixed_abs, tag = 'smem constant byte address 0x4 - core index']
  #allocation1 [shape = 'u32[144,128]{1,0:T(1,128)}', space=vmem, size = 0x12000, scoped, tag = 'internal scratch']
  #allocation2 [shape = 'f32[512,512]{1,0:T(8,128)}', space=vmem, size = 0x100000, scoped, tag = 'scratch operand']
  %s0 = inlined_call_operand.hbm [shape: f32[512,512], index: 0, kind: input, shape index: {}]
  %s1 = inlined_call_operand.hbm [shape: bf16[512,1536], index: 1, kind: input, shape index: {}]
  %s2 = inlined_call_operand.hbm [shape: f32[1,1536], index: 2, kind: input, shape index: {}]
  %s3 = inlined_call_operand.hbm [shape: bf16[512,1536], index: 3, kind: output, shape index: {}]
  %s4 = sld [smem:[#allocation0]]
  $region65: #{tpu_custom_call.1} parent=0
    _
  %s6 = ssub.s32 1, %s4
  %s7 = scalar_select 0, %s6, %s4
  $region1: #{tpu_custom_call.1} parent=0
    #allocation3 [shape = 'u8[1048576]{0}', space=vmem, size = 0x100000, scoped, tag = 'input window, operand 0, single buffered']
    #allocation4 [shape = 's32[2]{0}', space=sflag, size = 0x8, scoped, tag = 'scoped memory for tpu_custom_call.1']
    #allocation5 [shape = 's32[2]{0}', space=sflag, size = 0x8, scoped, tag = 'scoped memory for tpu_custom_call.1']
    #allocation6 [shape = 'u8[1048576]{0}', space=vmem, size = 0x100000, scoped, tag = 'input window, operand 1']
    #allocation7 [shape = 's32[2]{0}', space=sflag, size = 0x8, scoped, tag = 'scoped memory for tpu_custom_call.1']
    #allocation8 [shape = 'u8[4096]{0}', space=vmem, size = 0x1000, scoped, tag = 'input window, operand 2']
    #allocation9 [shape = 'u8[1048576]{0}', space=vmem, size = 0x100000, scoped, tag = 'output window, operand 0']
    %8 = vsyncpa [#allocation4], 0
    %9 = vsyncpa [#allocation7], 0
    %s10 = scalar_lea.sflag [#allocation7], 1
    %11 = vsyncpa %s10, 0
    %12 = vsyncpa [#allocation5], 0
    %s13 = scalar_lea.sflag [#allocation5], 1
    %14 = vsyncpa %s13, 0
    loop: start=0, step=1, limit=5
    $region2: #{tpu_custom_call.1} parent=1 // loop_pre_header
      _
    $region3: #{tpu_custom_call.1} parent=1 // loop_header
      %s16 = sphi 0, %s20
      %p17 = scmp.ge.s32.totalorder %s16, 5
      %s23 = sphi 0, %s42
      %s24 = sphi 0, %s38
      %s25 = sphi 0, %s34
      %s26 = sphi 0, %s23
      %s27 = sphi 0, %s24
      %s28 = sphi 0, %s25
      %s29 = sphi 0, %s26
      %s30 = sphi 0, %s27
      %s31 = sphi 0, %s28
      %s47 = sphi 0, %s49
      %s50 = sphi 0, %s47
      %s51 = sphi 0, %s50
      %s67 = sphi 0, %s51
      %s75 = sphi 0, %s77
      %s78 = sphi 0, %s75
      %s79 = sphi 0, %s78
      %s95 = sphi 0, %s79
      %s101 = sphi 0, %s103
      %s104 = sphi 0, %s101
      %s105 = sphi 0, %s104
      %s121 = sphi 0, %s105
      %s129 = sphi 0, %s131
      %s132 = sphi 0, %s129
      %s133 = sphi 0, %s132
      %s149 = sphi 0, %s133
    $region4: #{tpu_custom_call.1} parent=1 // loop_header_branch
      %19 = sbr.rel (%p17) target = $region8
    $region5: #{tpu_custom_call.1} parent=1 // loop_body
      %s21 = ssub.s32 %s16, 1
      %s22 = ssub.s32 %s16, 2
      %s32 = sadd.s32 1, %s25
      %p33 = scmp.ge.s32.totalorder %s32, 1
      %s34 = scalar_select %p33, 0, %s32
      %s35 = sadd.s32 1, %s24
      %s36 = scalar_select %p33, %s35, %s24
      %p37 = scmp.ge.s32.totalorder %s36, 3
      %s38 = scalar_select %p37, 0, %s36
      %s39 = sadd.s32 1, %s23
      %s40 = scalar_select %p37, %s39, %s23
      %p41 = scmp.ge.s32.totalorder %s40, 1
      %s42 = scalar_select %p41, 0, %s40
      %s43 = ssub.s32 %s23, %s42
      %s44 = ssub.s32 %s25, %s34
      %s45 = sor.u32 %s43, %s44
      %p46 = scmp.eq.s32.totalorder %s45, 0
      %s48 = sadd.s32 %s47, 1
      %s49 = scalar_select %p46, %s47, %s48
      %p52 = pneg %p46
      %p53 = scmp.eq.s32.totalorder %s16, 2
      %p54 = por %p52, %p53
      %p55 = scmp.ne.s32.totalorder %s47, %s50
      %p56 = scmp.eq.s32.totalorder %s16, 0
      %p57 = por %p55, %p56
      %p58 = scmp.ne.s32.totalorder %s47, %s50
      %p59 = scmp.eq.s32.totalorder %s21, 2
      %p60 = por %p58, %p59
      %p61 = scmp.ne.s32.totalorder %s50, %s51
      %p62 = scmp.eq.s32.totalorder %s21, 0
      %p63 = por %p61, %p62
      %p64 = scmp.ne.s32.totalorder %s50, %s51
      %p65 = scmp.eq.s32.totalorder %s22, 2
      %p66 = por %p64, %p65
      %p68 = scmp.ne.s32.totalorder %s51, %s67
      %p69 = scmp.eq.s32.totalorder %s22, 0
      %p70 = por %p68, %p69
      %s71 = ssub.s32 %s25, %s34
      %s72 = ssub.s32 %s24, %s38
      %s73 = sor.u32 %s71, %s72
      %p74 = scmp.eq.s32.totalorder %s73, 0
      %s76 = sadd.s32 %s75, 1
      %s77 = scalar_select %p74, %s75, %s76
      %p80 = pneg %p74
      %p81 = scmp.eq.s32.totalorder %s16, 2
      %p82 = por %p80, %p81
      %p83 = scmp.ne.s32.totalorder %s75, %s78
      %p84 = scmp.eq.s32.totalorder %s16, 0
      %p85 = por %p83, %p84
      %p86 = scmp.ne.s32.totalorder %s75, %s78
      %p87 = scmp.eq.s32.totalorder %s21, 2
      %p88 = por %p86, %p87
      %p89 = scmp.ne.s32.totalorder %s78, %s79
      %p90 = scmp.eq.s32.totalorder %s21, 0
      %p91 = por %p89, %p90
      %p92 = scmp.ne.s32.totalorder %s78, %s79
      %p93 = scmp.eq.s32.totalorder %s22, 2
      %p94 = por %p92, %p93
      %p96 = scmp.ne.s32.totalorder %s79, %s95
      %p97 = scmp.eq.s32.totalorder %s22, 0
      %p98 = por %p96, %p97
      %s99 = ssub.s32 %s24, %s38
      %p100 = scmp.eq.s32.totalorder %s99, 0
      %s102 = sadd.s32 %s101, 1
      %s103 = scalar_select %p100, %s101, %s102
      %p106 = pneg %p100
      %p107 = scmp.eq.s32.totalorder %s16, 2
      %p108 = por %p106, %p107
      %p109 = scmp.ne.s32.totalorder %s101, %s104
      %p110 = scmp.eq.s32.totalorder %s16, 0
      %p111 = por %p109, %p110
      %p112 = scmp.ne.s32.totalorder %s101, %s104
      %p113 = scmp.eq.s32.totalorder %s21, 2
      %p114 = por %p112, %p113
      %p115 = scmp.ne.s32.totalorder %s104, %s105
      %p116 = scmp.eq.s32.totalorder %s21, 0
      %p117 = por %p115, %p116
      %p118 = scmp.ne.s32.totalorder %s104, %s105
      %p119 = scmp.eq.s32.totalorder %s22, 2
      %p120 = por %p118, %p119
      %p122 = scmp.ne.s32.totalorder %s105, %s121
      %p123 = scmp.eq.s32.totalorder %s22, 0
      %p124 = por %p122, %p123
      %s125 = ssub.s32 %s23, %s42
      %s126 = ssub.s32 %s24, %s38
      %s127 = sor.u32 %s125, %s126
      %p128 = scmp.eq.s32.totalorder %s127, 0
      %s130 = sadd.s32 %s129, 1
      %s131 = scalar_select %p128, %s129, %s130
      %p134 = pneg %p128
      %p135 = scmp.eq.s32.totalorder %s16, 2
      %p136 = por %p134, %p135
      %p137 = scmp.ne.s32.totalorder %s129, %s132
      %p138 = scmp.eq.s32.totalorder %s16, 0
      %p139 = por %p137, %p138
      %p140 = scmp.ne.s32.totalorder %s129, %s132
      %p141 = scmp.eq.s32.totalorder %s21, 2
      %p142 = por %p140, %p141
      %p143 = scmp.ne.s32.totalorder %s132, %s133
      %p144 = scmp.eq.s32.totalorder %s21, 0
      %p145 = por %p143, %p144
      %p146 = scmp.ne.s32.totalorder %s132, %s133
      %p147 = scmp.eq.s32.totalorder %s22, 2
      %p148 = por %p146, %p147
      %p150 = scmp.ne.s32.totalorder %s133, %s149
      %p151 = scmp.eq.s32.totalorder %s22, 0
      %p152 = por %p150, %p151
      %p153 = scmp.le.s32.totalorder 1, %s16
      %p154 = scmp.lt.s32.totalorder %s16, 4
      %p155 = pnand %p153, %p154
      %p156 = pneg %p155
      // Predicated region
      $region9: #{tpu_custom_call.1} parent=5 // pred_check
        _
      $region10: #{tpu_custom_call.1} parent=5 // pred_check_branch
        %158 = sbr.rel (%p155) target = $region12
      $region11: #{tpu_custom_call.1} parent=5 // pred_region
        %s159 = ssub.s32 %s16, 1
        // Predicated region
        $region13: #{tpu_custom_call.1} parent=11 // pred_check
          %p160 = pneg %p63
        $region14: #{tpu_custom_call.1} parent=11 // pred_check_branch
          %162 = sbr.rel (%p160) target = $region16
        $region15: #{tpu_custom_call.1} parent=11 // pred_region
          %s163 = smul.u32 64, %s26
          %s164 = smul.u32 4, %s28
          %s166 = ssub.s32 32768, 32768
          %167 = vsyncadd [#allocation4], %s166
          %s168 = smul.addr %s163, 4
          %s169 = sadd.s32 %s164, %s168
          %s170 = smul.addr %s169, 128
          %s171 = scalar_lea.hbm %s0, %s170
          %s172 = sshll.u32 [#allocation3], 4
          %s173 = int_to_ptr.vmem [resolvable:$true] %s172
          %178 = dma.hbm_to_vmem [thread:$0]  %s171, 32768, %s173, [#allocation4], 512, 512, 32
        $region16: #{tpu_custom_call.1} parent=11 // pred_fallthru
          _
      $region12: #{tpu_custom_call.1} parent=5 // pred_fallthru
        _
      %p179 = scmp.lt.s32.totalorder %s16, 3
      // Predicated region
      $region17: #{tpu_custom_call.1} parent=5 // pred_check
        %p180 = pneg %p179
      $region18: #{tpu_custom_call.1} parent=5 // pred_check_branch
        %182 = sbr.rel (%p180) target = $region20
      $region19: #{tpu_custom_call.1} parent=5 // pred_region
        // Predicated region
        $region21: #{tpu_custom_call.1} parent=19 // pred_check
          %p183 = pneg %p85
        $region22: #{tpu_custom_call.1} parent=19 // pred_check_branch
          %185 = sbr.rel (%p183) target = $region24
        $region23: #{tpu_custom_call.1} parent=19 // pred_region
          %s186 = sand.u32 %s16, 1
          %s187 = scalar_lea.sflag [#allocation7], %s186
          %s188 = sand.u32 %s75, 1
          %s189 = smul.addr %s188, 1024
          %s190 = scalar_lea.vmem [#allocation6], %s189
          %s191 = smul.u32 64, %s25
          %s192 = smul.u32 4, %s24
          %s194 = ssub.s32 16384, 16384
          %195 = vsyncadd %s187, %s194
          %s196 = smul.addr %s191, 12
          %s197 = sadd.s32 %s192, %s196
          %s198 = smul.addr %s197, 64
          %s199 = scalar_lea.hbm %s1, %s198
          %s200 = sshll.u32 %s190, 4
          %s201 = int_to_ptr.vmem [resolvable:$true] %s200
          %206 = dma.hbm_to_vmem [thread:$0]  %s199, 16384, %s201, %s187, 768, 256, 16
        $region24: #{tpu_custom_call.1} parent=19 // pred_fallthru
          _
        // Predicated region
        $region25: #{tpu_custom_call.1} parent=19 // pred_check
          %p207 = pneg %p111
        $region26: #{tpu_custom_call.1} parent=19 // pred_check_branch
          %209 = sbr.rel (%p207) target = $region28
        $region27: #{tpu_custom_call.1} parent=19 // pred_region
          %s210 = sand.u32 %s16, 1
          %s211 = scalar_lea.sflag [#allocation7], %s210
          %s212 = sand.u32 %s101, 1
          %s213 = smul.addr %s212, 4
          %s214 = scalar_lea.vmem [#allocation8], %s213
          %s215 = smul.u32 4, %s24
          %s217 = ssub.s32 64, 64
          %218 = vsyncadd %s211, %s217
          %s219 = smul.addr %s215, 16
          %s220 = scalar_lea.hbm %s2, %s219
          %s222 = sshll.u32 %s214, 4
          %s223 = int_to_ptr.vmem [resolvable:$true] %s222
          %225 = dma.hbm_to_vmem [thread:$0]  %s220, 64, %s223, %s211
        $region28: #{tpu_custom_call.1} parent=19 // pred_fallthru
          _
      $region20: #{tpu_custom_call.1} parent=5 // pred_fallthru
        _
      %p226 = scmp.le.s32.totalorder 1, %s16
      %p227 = scmp.lt.s32.totalorder %s16, 4
      %p228 = pnand %p226, %p227
      %p229 = pneg %p228
      // Predicated region
      $region29: #{tpu_custom_call.1} parent=5 // pred_check
        _
      $region30: #{tpu_custom_call.1} parent=5 // pred_check_branch
        %231 = sbr.rel (%p228) target = $region32
      $region31: #{tpu_custom_call.1} parent=5 // pred_region
        %s232 = ssub.s32 %s16, 1
        // Predicated region
        $region33: #{tpu_custom_call.1} parent=31 // pred_check
          %p233 = pneg %p63
        $region34: #{tpu_custom_call.1} parent=31 // pred_check_branch
          %235 = sbr.rel (%p233) target = $region36
        $region35: #{tpu_custom_call.1} parent=31 // pred_region
          %236 = dma.done [#allocation4], 32768
        $region36: #{tpu_custom_call.1} parent=31 // pred_fallthru
          _
        %s237 = sand.u32 %s21, 1
        %s238 = scalar_lea.sflag [#allocation7], %s237
        %s239 = sand.u32 %s78, 1
        %s240 = smul.addr %s239, 1024
        %s241 = scalar_lea.vmem [#allocation6], %s240
        // Predicated region
        $region37: #{tpu_custom_call.1} parent=31 // pred_check
          %p242 = pneg %p91
        $region38: #{tpu_custom_call.1} parent=31 // pred_check_branch
          %244 = sbr.rel (%p242) target = $region40
        $region39: #{tpu_custom_call.1} parent=31 // pred_region
          %245 = dma.done %s238, 16384
        $region40: #{tpu_custom_call.1} parent=31 // pred_fallthru
          _
        %s246 = sand.u32 %s21, 1
        %s247 = scalar_lea.sflag [#allocation7], %s246
        %s248 = sand.u32 %s104, 1
        %s249 = smul.addr %s248, 4
        %s250 = scalar_lea.vmem [#allocation8], %s249
        // Predicated region
        $region41: #{tpu_custom_call.1} parent=31 // pred_check
          %p251 = pneg %p117
        $region42: #{tpu_custom_call.1} parent=31 // pred_check_branch
          %253 = sbr.rel (%p251) target = $region44
        $region43: #{tpu_custom_call.1} parent=31 // pred_region
          %254 = dma.done %s247, 64
        $region44: #{tpu_custom_call.1} parent=31 // pred_fallthru
          _
        %p255 = pneg %p63
        %p256 = pneg %p60
        %s257 = sand.u32 %s21, 1
        %s258 = scalar_lea.sflag [#allocation7], %s257
        %s259 = sand.u32 %s78, 1
        %s260 = smul.addr %s259, 1024
        %s261 = scalar_lea.vmem [#allocation6], %s260
        %p262 = pneg %p91
        %p263 = pneg %p88
        %s264 = sand.u32 %s21, 1
        %s265 = scalar_lea.sflag [#allocation7], %s264
        %s266 = sand.u32 %s104, 1
        %s267 = smul.addr %s266, 4
        %s268 = scalar_lea.vmem [#allocation8], %s267
        %p269 = pneg %p117
        %p270 = pneg %p114
        %p271 = pneg %p145
        %p272 = pneg %p142
        %s273 = sand.u32 %s132, 1
        %s274 = scalar_lea.sflag [#allocation5], %s273
        %s275 = sand.u32 %s132, 1
        %s276 = smul.addr %s275, 1024
        %s277 = scalar_lea.vmem [#allocation9], %s276
        %s278 = smul.u32 64, %s26
        %s279 = smul.u32 4, %s28
        %s280 = smul.u32 64, %s28
        %s281 = smul.u32 4, %s27
        %s282 = smul.u32 4, %s27
        %s283 = smul.u32 64, %s26
        %s284 = smul.u32 4, %s27
        %p285 = scmp.eq.s32.totalorder %s28, 0
        // Predicated region
        $region45: #{tpu_custom_call.1} parent=31 // pred_check
          %p286 = pneg %p285
        $region46: #{tpu_custom_call.1} parent=31 // pred_check_branch
          %288 = sbr.rel (%p286) target = $region48
        $region47: #{tpu_custom_call.1} parent=31 // pred_region
          %v289 = vld [vmem:[%s250] sm:$0xf]
          %v291 = vlaneseq
          %v292 = vshrl.u32 %v291, 7
          %v293 = vsub.s32 0, %v292
          %v294 = vrot.slane %v289, %v293
          %v295 = vlaneseq
          %v296 = vshrl.u32 %v295, 7
          %v297 = vsub.s32 1, %v296
          %v298 = vrot.slane %v289, %v297
          %v299 = vlaneseq
          %v300 = vshrl.u32 %v299, 7
          %v301 = vsub.s32 2, %v300
          %v302 = vrot.slane %v289, %v301
          %v303 = vlaneseq
          %v304 = vshrl.u32 %v303, 7
          %v305 = vsub.s32 3, %v304
          %v306 = vrot.slane %v289, %v305
          %311 = vst [vmem:[#allocation2] sm:$0xff] %v294
          %312 = vst [vmem:[#allocation2 + $0x8] sm:$0xff] %v298
          %313 = vst [vmem:[#allocation2 + $0x10] sm:$0xff] %v302
          %314 = vst [vmem:[#allocation2 + $0x18] sm:$0xff] %v306
          %315 = vst [vmem:[#allocation2 + $0x20] sm:$0xff] %v294
          %316 = vst [vmem:[#allocation2 + $0x28] sm:$0xff] %v298
          %317 = vst [vmem:[#allocation2 + $0x30] sm:$0xff] %v302
          %318 = vst [vmem:[#allocation2 + $0x38] sm:$0xff] %v306
          %319 = vst [vmem:[#allocation2 + $0x40] sm:$0xff] %v294
          %320 = vst [vmem:[#allocation2 + $0x48] sm:$0xff] %v298
          %321 = vst [vmem:[#allocation2 + $0x50] sm:$0xff] %v302
          %322 = vst [vmem:[#allocation2 + $0x58] sm:$0xff] %v306
          %323 = vst [vmem:[#allocation2 + $0x60] sm:$0xff] %v294
          %324 = vst [vmem:[#allocation2 + $0x68] sm:$0xff] %v298
          %325 = vst [vmem:[#allocation2 + $0x70] sm:$0xff] %v302
          %326 = vst [vmem:[#allocation2 + $0x78] sm:$0xff] %v306
          %327 = vst [vmem:[#allocation2 + $0x80] sm:$0xff] %v294
          %328 = vst [vmem:[#allocation2 + $0x88] sm:$0xff] %v298
          %329 = vst [vmem:[#allocation2 + $0x90] sm:$0xff] %v302
          %330 = vst [vmem:[#allocation2 + $0x98] sm:$0xff] %v306
          %331 = vst [vmem:[#allocation2 + $0xa0] sm:$0xff] %v294
          %332 = vst [vmem:[#allocation2 + $0xa8] sm:$0xff] %v298
          %333 = vst [vmem:[#allocation2 + $0xb0] sm:$0xff] %v302
          %334 = vst [vmem:[#allocation2 + $0xb8] sm:$0xff] %v306
          %335 = vst [vmem:[#allocation2 + $0xc0] sm:$0xff] %v294
          %336 = vst [vmem:[#allocation2 + $0xc8] sm:$0xff] %v298
          %337 = vst [vmem:[#allocation2 + $0xd0] sm:$0xff] %v302
          %338 = vst [vmem:[#allocation2 + $0xd8] sm:$0xff] %v306
          %339 = vst [vmem:[#allocation2 + $0xe0] sm:$0xff] %v294
          %340 = vst [vmem:[#allocation2 + $0xe8] sm:$0xff] %v298
          %341 = vst [vmem:[#allocation2 + $0xf0] sm:$0xff] %v302
          %342 = vst [vmem:[#allocation2 + $0xf8] sm:$0xff] %v306
          %343 = vst [vmem:[#allocation2 + $0x100] sm:$0xff] %v294
          %344 = vst [vmem:[#allocation2 + $0x108] sm:$0xff] %v298
          %345 = vst [vmem:[#allocation2 + $0x110] sm:$0xff] %v302
          %346 = vst [vmem:[#allocation2 + $0x118] sm:$0xff] %v306
          %347 = vst [vmem:[#allocation2 + $0x120] sm:$0xff] %v294
          %348 = vst [vmem:[#allocation2 + $0x128] sm:$0xff] %v298
          %349 = vst [vmem:[#allocation2 + $0x130] sm:$0xff] %v302
          %350 = vst [vmem:[#allocation2 + $0x138] sm:$0xff] %v306
          %351 = vst [vmem:[#allocation2 + $0x140] sm:$0xff] %v294
          %352 = vst [vmem:[#allocation2 + $0x148] sm:$0xff] %v298
          %353 = vst [vmem:[#allocation2 + $0x150] sm:$0xff] %v302
          %354 = vst [vmem:[#allocation2 + $0x158] sm:$0xff] %v306
          %355 = vst [vmem:[#allocation2 + $0x160] sm:$0xff] %v294
          %356 = vst [vmem:[#allocation2 + $0x168] sm:$0xff] %v298
          %357 = vst [vmem:[#allocation2 + $0x170] sm:$0xff] %v302
          %358 = vst [vmem:[#allocation2 + $0x178] sm:$0xff] %v306
          %359 = vst [vmem:[#allocation2 + $0x180] sm:$0xff] %v294
          %360 = vst [vmem:[#allocation2 + $0x188] sm:$0xff] %v298
          %361 = vst [vmem:[#allocation2 + $0x190] sm:$0xff] %v302
          %362 = vst [vmem:[#allocation2 + $0x198] sm:$0xff] %v306
          %363 = vst [vmem:[#allocation2 + $0x1a0] sm:$0xff] %v294
          %364 = vst [vmem:[#allocation2 + $0x1a8] sm:$0xff] %v298
          %365 = vst [vmem:[#allocation2 + $0x1b0] sm:$0xff] %v302
          %366 = vst [vmem:[#allocation2 + $0x1b8] sm:$0xff] %v306
          %367 = vst [vmem:[#allocation2 + $0x1c0] sm:$0xff] %v294
          %368 = vst [vmem:[#allocation2 + $0x1c8] sm:$0xff] %v298
          %369 = vst [vmem:[#allocation2 + $0x1d0] sm:$0xff] %v302
          %370 = vst [vmem:[#allocation2 + $0x1d8] sm:$0xff] %v306
          %371 = vst [vmem:[#allocation2 + $0x1e0] sm:$0xff] %v294
          %372 = vst [vmem:[#allocation2 + $0x1e8] sm:$0xff] %v298
          %373 = vst [vmem:[#allocation2 + $0x1f0] sm:$0xff] %v302
          %374 = vst [vmem:[#allocation2 + $0x1f8] sm:$0xff] %v306
          %375 = vst [vmem:[#allocation2 + $0x200] sm:$0xff] %v294
          %376 = vst [vmem:[#allocation2 + $0x208] sm:$0xff] %v298
          %377 = vst [vmem:[#allocation2 + $0x210] sm:$0xff] %v302
          %378 = vst [vmem:[#allocation2 + $0x218] sm:$0xff] %v306
          %379 = vst [vmem:[#allocation2 + $0x220] sm:$0xff] %v294
          %380 = vst [vmem:[#allocation2 + $0x228] sm:$0xff] %v298
          %381 = vst [vmem:[#allocation2 + $0x230] sm:$0xff] %v302
          %382 = vst [vmem:[#allocation2 + $0x238] sm:$0xff] %v306
          %383 = vst [vmem:[#allocation2 + $0x240] sm:$0xff] %v294
          %384 = vst [vmem:[#allocation2 + $0x248] sm:$0xff] %v298
          %385 = vst [vmem:[#allocation2 + $0x250] sm:$0xff] %v302
          %386 = vst [vmem:[#allocation2 + $0x258] sm:$0xff] %v306
          %387 = vst [vmem:[#allocation2 + $0x260] sm:$0xff] %v294
          %388 = vst [vmem:[#allocation2 + $0x268] sm:$0xff] %v298
          %389 = vst [vmem:[#allocation2 + $0x270] sm:$0xff] %v302
          %390 = vst [vmem:[#allocation2 + $0x278] sm:$0xff] %v306
          %391 = vst [vmem:[#allocation2 + $0x280] sm:$0xff] %v294
          %392 = vst [vmem:[#allocation2 + $0x288] sm:$0xff] %v298
          %393 = vst [vmem:[#allocation2 + $0x290] sm:$0xff] %v302
          %394 = vst [vmem:[#allocation2 + $0x298] sm:$0xff] %v306
          %395 = vst [vmem:[#allocation2 + $0x2a0] sm:$0xff] %v294
          %396 = vst [vmem:[#allocation2 + $0x2a8] sm:$0xff] %v298
          %397 = vst [vmem:[#allocation2 + $0x2b0] sm:$0xff] %v302
          %398 = vst [vmem:[#allocation2 + $0x2b8] sm:$0xff] %v306
          %399 = vst [vmem:[#allocation2 + $0x2c0] sm:$0xff] %v294
          %400 = vst [vmem:[#allocation2 + $0x2c8] sm:$0xff] %v298
          %401 = vst [vmem:[#allocation2 + $0x2d0] sm:$0xff] %v302
          %402 = vst [vmem:[#allocation2 + $0x2d8] sm:$0xff] %v306
          %403 = vst [vmem:[#allocation2 + $0x2e0] sm:$0xff] %v294
          %404 = vst [vmem:[#allocation2 + $0x2e8] sm:$0xff] %v298
          %405 = vst [vmem:[#allocation2 + $0x2f0] sm:$0xff] %v302
          %406 = vst [vmem:[#allocation2 + $0x2f8] sm:$0xff] %v306
          %407 = vst [vmem:[#allocation2 + $0x300] sm:$0xff] %v294
          %408 = vst [vmem:[#allocation2 + $0x308] sm:$0xff] %v298
          %409 = vst [vmem:[#allocation2 + $0x310] sm:$0xff] %v302
          %410 = vst [vmem:[#allocation2 + $0x318] sm:$0xff] %v306
          %411 = vst [vmem:[#allocation2 + $0x320] sm:$0xff] %v294
          %412 = vst [vmem:[#allocation2 + $0x328] sm:$0xff] %v298
          %413 = vst [vmem:[#allocation2 + $0x330] sm:$0xff] %v302
          %414 = vst [vmem:[#allocation2 + $0x338] sm:$0xff] %v306
          %415 = vst [vmem:[#allocation2 + $0x340] sm:$0xff] %v294
          %416 = vst [vmem:[#allocation2 + $0x348] sm:$0xff] %v298
          %417 = vst [vmem:[#allocation2 + $0x350] sm:$0xff] %v302
          %418 = vst [vmem:[#allocation2 + $0x358] sm:$0xff] %v306
          %419 = vst [vmem:[#allocation2 + $0x360] sm:$0xff] %v294
          %420 = vst [vmem:[#allocation2 + $0x368] sm:$0xff] %v298
          %421 = vst [vmem:[#allocation2 + $0x370] sm:$0xff] %v302
          %422 = vst [vmem:[#allocation2 + $0x378] sm:$0xff] %v306
          %423 = vst [vmem:[#allocation2 + $0x380] sm:$0xff] %v294
          %424 = vst [vmem:[#allocation2 + $0x388] sm:$0xff] %v298
          %425 = vst [vmem:[#allocation2 + $0x390] sm:$0xff] %v302
          %426 = vst [vmem:[#allocation2 + $0x398] sm:$0xff] %v306
          %427 = vst [vmem:[#allocation2 + $0x3a0] sm:$0xff] %v294
          %428 = vst [vmem:[#allocation2 + $0x3a8] sm:$0xff] %v298
          %429 = vst [vmem:[#allocation2 + $0x3b0] sm:$0xff] %v302
          %430 = vst [vmem:[#allocation2 + $0x3b8] sm:$0xff] %v306
          %431 = vst [vmem:[#allocation2 + $0x3c0] sm:$0xff] %v294
          %432 = vst [vmem:[#allocation2 + $0x3c8] sm:$0xff] %v298
          %433 = vst [vmem:[#allocation2 + $0x3d0] sm:$0xff] %v302
          %434 = vst [vmem:[#allocation2 + $0x3d8] sm:$0xff] %v306
          %435 = vst [vmem:[#allocation2 + $0x3e0] sm:$0xff] %v294
          %436 = vst [vmem:[#allocation2 + $0x3e8] sm:$0xff] %v298
          %437 = vst [vmem:[#allocation2 + $0x3f0] sm:$0xff] %v302
          %438 = vst [vmem:[#allocation2 + $0x3f8] sm:$0xff] %v306
          %439 = vst [vmem:[#allocation2 + $0x400] sm:$0xff] %v294
          %440 = vst [vmem:[#allocation2 + $0x408] sm:$0xff] %v298
          %441 = vst [vmem:[#allocation2 + $0x410] sm:$0xff] %v302
          %442 = vst [vmem:[#allocation2 + $0x418] sm:$0xff] %v306
          %443 = vst [vmem:[#allocation2 + $0x420] sm:$0xff] %v294
          %444 = vst [vmem:[#allocation2 + $0x428] sm:$0xff] %v298
          %445 = vst [vmem:[#allocation2 + $0x430] sm:$0xff] %v302
          %446 = vst [vmem:[#allocation2 + $0x438] sm:$0xff] %v306
          %447 = vst [vmem:[#allocation2 + $0x440] sm:$0xff] %v294
          %448 = vst [vmem:[#allocation2 + $0x448] sm:$0xff] %v298
          %449 = vst [vmem:[#allocation2 + $0x450] sm:$0xff] %v302
          %450 = vst [vmem:[#allocation2 + $0x458] sm:$0xff] %v306
          %451 = vst [vmem:[#allocation2 + $0x460] sm:$0xff] %v294
          %452 = vst [vmem:[#allocation2 + $0x468] sm:$0xff] %v298
          %453 = vst [vmem:[#allocation2 + $0x470] sm:$0xff] %v302
          %454 = vst [vmem:[#allocation2 + $0x478] sm:$0xff] %v306
          %455 = vst [vmem:[#allocation2 + $0x480] sm:$0xff] %v294
          %456 = vst [vmem:[#allocation2 + $0x488] sm:$0xff] %v298
          %457 = vst [vmem:[#allocation2 + $0x490] sm:$0xff] %v302
          %458 = vst [vmem:[#allocation2 + $0x498] sm:$0xff] %v306
          %459 = vst [vmem:[#allocation2 + $0x4a0] sm:$0xff] %v294
          %460 = vst [vmem:[#allocation2 + $0x4a8] sm:$0xff] %v298
          %461 = vst [vmem:[#allocation2 + $0x4b0] sm:$0xff] %v302
          %462 = vst [vmem:[#allocation2 + $0x4b8] sm:$0xff] %v306
          %463 = vst [vmem:[#allocation2 + $0x4c0] sm:$0xff] %v294
          %464 = vst [vmem:[#allocation2 + $0x4c8] sm:$0xff] %v298
          %465 = vst [vmem:[#allocation2 + $0x4d0] sm:$0xff] %v302
          %466 = vst [vmem:[#allocation2 + $0x4d8] sm:$0xff] %v306
          %467 = vst [vmem:[#allocation2 + $0x4e0] sm:$0xff] %v294
          %468 = vst [vmem:[#allocation2 + $0x4e8] sm:$0xff] %v298
          %469 = vst [vmem:[#allocation2 + $0x4f0] sm:$0xff] %v302
          %470 = vst [vmem:[#allocation2 + $0x4f8] sm:$0xff] %v306
          %471 = vst [vmem:[#allocation2 + $0x500] sm:$0xff] %v294
          %472 = vst [vmem:[#allocation2 + $0x508] sm:$0xff] %v298
          %473 = vst [vmem:[#allocation2 + $0x510] sm:$0xff] %v302
          %474 = vst [vmem:[#allocation2 + $0x518] sm:$0xff] %v306
          %475 = vst [vmem:[#allocation2 + $0x520] sm:$0xff] %v294
          %476 = vst [vmem:[#allocation2 + $0x528] sm:$0xff] %v298
          %477 = vst [vmem:[#allocation2 + $0x530] sm:$0xff] %v302
          %478 = vst [vmem:[#allocation2 + $0x538] sm:$0xff] %v306
          %479 = vst [vmem:[#allocation2 + $0x540] sm:$0xff] %v294
          %480 = vst [vmem:[#allocation2 + $0x548] sm:$0xff] %v298
          %481 = vst [vmem:[#allocation2 + $0x550] sm:$0xff] %v302
          %482 = vst [vmem:[#allocation2 + $0x558] sm:$0xff] %v306
          %483 = vst [vmem:[#allocation2 + $0x560] sm:$0xff] %v294
          %484 = vst [vmem:[#allocation2 + $0x568] sm:$0xff] %v298
          %485 = vst [vmem:[#allocation2 + $0x570] sm:$0xff] %v302
          %486 = vst [vmem:[#allocation2 + $0x578] sm:$0xff] %v306
          %487 = vst [vmem:[#allocation2 + $0x580] sm:$0xff] %v294
          %488 = vst [vmem:[#allocation2 + $0x588] sm:$0xff] %v298
          %489 = vst [vmem:[#allocation2 + $0x590] sm:$0xff] %v302
          %490 = vst [vmem:[#allocation2 + $0x598] sm:$0xff] %v306
          %491 = vst [vmem:[#allocation2 + $0x5a0] sm:$0xff] %v294
          %492 = vst [vmem:[#allocation2 + $0x5a8] sm:$0xff] %v298
          %493 = vst [vmem:[#allocation2 + $0x5b0] sm:$0xff] %v302
          %494 = vst [vmem:[#allocation2 + $0x5b8] sm:$0xff] %v306
          %495 = vst [vmem:[#allocation2 + $0x5c0] sm:$0xff] %v294
          %496 = vst [vmem:[#allocation2 + $0x5c8] sm:$0xff] %v298
          %497 = vst [vmem:[#allocation2 + $0x5d0] sm:$0xff] %v302
          %498 = vst [vmem:[#allocation2 + $0x5d8] sm:$0xff] %v306
          %499 = vst [vmem:[#allocation2 + $0x5e0] sm:$0xff] %v294
          %500 = vst [vmem:[#allocation2 + $0x5e8] sm:$0xff] %v298
          %501 = vst [vmem:[#allocation2 + $0x5f0] sm:$0xff] %v302
          %502 = vst [vmem:[#allocation2 + $0x5f8] sm:$0xff] %v306
          %503 = vst [vmem:[#allocation2 + $0x600] sm:$0xff] %v294
          %504 = vst [vmem:[#allocation2 + $0x608] sm:$0xff] %v298
          %505 = vst [vmem:[#allocation2 + $0x610] sm:$0xff] %v302
          %506 = vst [vmem:[#allocation2 + $0x618] sm:$0xff] %v306
          %507 = vst [vmem:[#allocation2 + $0x620] sm:$0xff] %v294
          %508 = vst [vmem:[#allocation2 + $0x628] sm:$0xff] %v298
          %509 = vst [vmem:[#allocation2 + $0x630] sm:$0xff] %v302
          %510 = vst [vmem:[#allocation2 + $0x638] sm:$0xff] %v306
          %511 = vst [vmem:[#allocation2 + $0x640] sm:$0xff] %v294
          %512 = vst [vmem:[#allocation2 + $0x648] sm:$0xff] %v298
          %513 = vst [vmem:[#allocation2 + $0x650] sm:$0xff] %v302
          %514 = vst [vmem:[#allocation2 + $0x658] sm:$0xff] %v306
          %515 = vst [vmem:[#allocation2 + $0x660] sm:$0xff] %v294
          %516 = vst [vmem:[#allocation2 + $0x668] sm:$0xff] %v298
          %517 = vst [vmem:[#allocation2 + $0x670] sm:$0xff] %v302
          %518 = vst [vmem:[#allocation2 + $0x678] sm:$0xff] %v306
          %519 = vst [vmem:[#allocation2 + $0x680] sm:$0xff] %v294
          %520 = vst [vmem:[#allocation2 + $0x688] sm:$0xff] %v298
          %521 = vst [vmem:[#allocation2 + $0x690] sm:$0xff] %v302
          %522 = vst [vmem:[#allocation2 + $0x698] sm:$0xff] %v306
          %523 = vst [vmem:[#allocation2 + $0x6a0] sm:$0xff] %v294
          %524 = vst [vmem:[#allocation2 + $0x6a8] sm:$0xff] %v298
          %525 = vst [vmem:[#allocation2 + $0x6b0] sm:$0xff] %v302
          %526 = vst [vmem:[#allocation2 + $0x6b8] sm:$0xff] %v306
          %527 = vst [vmem:[#allocation2 + $0x6c0] sm:$0xff] %v294
          %528 = vst [vmem:[#allocation2 + $0x6c8] sm:$0xff] %v298
          %529 = vst [vmem:[#allocation2 + $0x6d0] sm:$0xff] %v302
          %530 = vst [vmem:[#allocation2 + $0x6d8] sm:$0xff] %v306
          %531 = vst [vmem:[#allocation2 + $0x6e0] sm:$0xff] %v294
          %532 = vst [vmem:[#allocation2 + $0x6e8] sm:$0xff] %v298
          %533 = vst [vmem:[#allocation2 + $0x6f0] sm:$0xff] %v302
          %534 = vst [vmem:[#allocation2 + $0x6f8] sm:$0xff] %v306
          %535 = vst [vmem:[#allocation2 + $0x700] sm:$0xff] %v294
          %536 = vst [vmem:[#allocation2 + $0x708] sm:$0xff] %v298
          %537 = vst [vmem:[#allocation2 + $0x710] sm:$0xff] %v302
          %538 = vst [vmem:[#allocation2 + $0x718] sm:$0xff] %v306
          %539 = vst [vmem:[#allocation2 + $0x720] sm:$0xff] %v294
          %540 = vst [vmem:[#allocation2 + $0x728] sm:$0xff] %v298
          %541 = vst [vmem:[#allocation2 + $0x730] sm:$0xff] %v302
          %542 = vst [vmem:[#allocation2 + $0x738] sm:$0xff] %v306
          %543 = vst [vmem:[#allocation2 + $0x740] sm:$0xff] %v294
          %544 = vst [vmem:[#allocation2 + $0x748] sm:$0xff] %v298
          %545 = vst [vmem:[#allocation2 + $0x750] sm:$0xff] %v302
          %546 = vst [vmem:[#allocation2 + $0x758] sm:$0xff] %v306
          %547 = vst [vmem:[#allocation2 + $0x760] sm:$0xff] %v294
          %548 = vst [vmem:[#allocation2 + $0x768] sm:$0xff] %v298
          %549 = vst [vmem:[#allocation2 + $0x770] sm:$0xff] %v302
          %550 = vst [vmem:[#allocation2 + $0x778] sm:$0xff] %v306
          %551 = vst [vmem:[#allocation2 + $0x780] sm:$0xff] %v294
          %552 = vst [vmem:[#allocation2 + $0x788] sm:$0xff] %v298
          %553 = vst [vmem:[#allocation2 + $0x790] sm:$0xff] %v302
          %554 = vst [vmem:[#allocation2 + $0x798] sm:$0xff] %v306
          %555 = vst [vmem:[#allocation2 + $0x7a0] sm:$0xff] %v294
          %556 = vst [vmem:[#allocation2 + $0x7a8] sm:$0xff] %v298
          %557 = vst [vmem:[#allocation2 + $0x7b0] sm:$0xff] %v302
          %558 = vst [vmem:[#allocation2 + $0x7b8] sm:$0xff] %v306
          %559 = vst [vmem:[#allocation2 + $0x7c0] sm:$0xff] %v294
          %560 = vst [vmem:[#allocation2 + $0x7c8] sm:$0xff] %v298
          %561 = vst [vmem:[#allocation2 + $0x7d0] sm:$0xff] %v302
          %562 = vst [vmem:[#allocation2 + $0x7d8] sm:$0xff] %v306
          %563 = vst [vmem:[#allocation2 + $0x7e0] sm:$0xff] %v294
          %564 = vst [vmem:[#allocation2 + $0x7e8] sm:$0xff] %v298
          %565 = vst [vmem:[#allocation2 + $0x7f0] sm:$0xff] %v302
          %566 = vst [vmem:[#allocation2 + $0x7f8] sm:$0xff] %v306
        $region48: #{tpu_custom_call.1} parent=31 // pred_fallthru
          _
        %v567 = vld [vmem:[#allocation2] sm:$0xff]
        %v568 = vld [vmem:[#allocation2 + $0x8] sm:$0xff]
        %v569 = vld [vmem:[#allocation2 + $0x10] sm:$0xff]
        %v570 = vld [vmem:[#allocation2 + $0x18] sm:$0xff]
        %v571 = vld [vmem:[#allocation2 + $0x20] sm:$0xff]
        %v572 = vld [vmem:[#allocation2 + $0x28] sm:$0xff]
        %v573 = vld [vmem:[#allocation2 + $0x30] sm:$0xff]
        %v574 = vld [vmem:[#allocation2 + $0x38] sm:$0xff]
        %v575 = vld [vmem:[#allocation2 + $0x40] sm:$0xff]
        %v576 = vld [vmem:[#allocation2 + $0x48] sm:$0xff]
        %v577 = vld [vmem:[#allocation2 + $0x50] sm:$0xff]
        %v578 = vld [vmem:[#allocation2 + $0x58] sm:$0xff]
        %v579 = vld [vmem:[#allocation2 + $0x60] sm:$0xff]
        %v580 = vld [vmem:[#allocation2 + $0x68] sm:$0xff]
        %v581 = vld [vmem:[#allocation2 + $0x70] sm:$0xff]
        %v582 = vld [vmem:[#allocation2 + $0x78] sm:$0xff]
        %v583 = vld [vmem:[#allocation2 + $0x80] sm:$0xff]
        %v584 = vld [vmem:[#allocation2 + $0x88] sm:$0xff]
        %v585 = vld [vmem:[#allocation2 + $0x90] sm:$0xff]
        %v586 = vld [vmem:[#allocation2 + $0x98] sm:$0xff]
        %v587 = vld [vmem:[#allocation2 + $0xa0] sm:$0xff]
        %v588 = vld [vmem:[#allocation2 + $0xa8] sm:$0xff]
        %v589 = vld [vmem:[#allocation2 + $0xb0] sm:$0xff]
        %v590 = vld [vmem:[#allocation2 + $0xb8] sm:$0xff]
        %v591 = vld [vmem:[#allocation2 + $0xc0] sm:$0xff]
        %v592 = vld [vmem:[#allocation2 + $0xc8] sm:$0xff]
        %v593 = vld [vmem:[#allocation2 + $0xd0] sm:$0xff]
        %v594 = vld [vmem:[#allocation2 + $0xd8] sm:$0xff]
        %v595 = vld [vmem:[#allocation2 + $0xe0] sm:$0xff]
        %v596 = vld [vmem:[#allocation2 + $0xe8] sm:$0xff]
        %v597 = vld [vmem:[#allocation2 + $0xf0] sm:$0xff]
        %v598 = vld [vmem:[#allocation2 + $0xf8] sm:$0xff]
        %v599 = vld [vmem:[#allocation2 + $0x100] sm:$0xff]
        %v600 = vld [vmem:[#allocation2 + $0x108] sm:$0xff]
        %v601 = vld [vmem:[#allocation2 + $0x110] sm:$0xff]
        %v602 = vld [vmem:[#allocation2 + $0x118] sm:$0xff]
        %v603 = vld [vmem:[#allocation2 + $0x120] sm:$0xff]
        %v604 = vld [vmem:[#allocation2 + $0x128] sm:$0xff]
        %v605 = vld [vmem:[#allocation2 + $0x130] sm:$0xff]
        %v606 = vld [vmem:[#allocation2 + $0x138] sm:$0xff]
        %v607 = vld [vmem:[#allocation2 + $0x140] sm:$0xff]
        %v608 = vld [vmem:[#allocation2 + $0x148] sm:$0xff]
        %v609 = vld [vmem:[#allocation2 + $0x150] sm:$0xff]
        %v610 = vld [vmem:[#allocation2 + $0x158] sm:$0xff]
        %v611 = vld [vmem:[#allocation2 + $0x160] sm:$0xff]
        %v612 = vld [vmem:[#allocation2 + $0x168] sm:$0xff]
        %v613 = vld [vmem:[#allocation2 + $0x170] sm:$0xff]
        %v614 = vld [vmem:[#allocation2 + $0x178] sm:$0xff]
        %v615 = vld [vmem:[#allocation2 + $0x180] sm:$0xff]
        %v616 = vld [vmem:[#allocation2 + $0x188] sm:$0xff]
        %v617 = vld [vmem:[#allocation2 + $0x190] sm:$0xff]
        %v618 = vld [vmem:[#allocation2 + $0x198] sm:$0xff]
        %v619 = vld [vmem:[#allocation2 + $0x1a0] sm:$0xff]
        %v620 = vld [vmem:[#allocation2 + $0x1a8] sm:$0xff]
        %v621 = vld [vmem:[#allocation2 + $0x1b0] sm:$0xff]
        %v622 = vld [vmem:[#allocation2 + $0x1b8] sm:$0xff]
        %v623 = vld [vmem:[#allocation2 + $0x1c0] sm:$0xff]
        %v624 = vld [vmem:[#allocation2 + $0x1c8] sm:$0xff]
        %v625 = vld [vmem:[#allocation2 + $0x1d0] sm:$0xff]
        %v626 = vld [vmem:[#allocation2 + $0x1d8] sm:$0xff]
        %v627 = vld [vmem:[#allocation2 + $0x1e0] sm:$0xff]
        %v628 = vld [vmem:[#allocation2 + $0x1e8] sm:$0xff]
        %v629 = vld [vmem:[#allocation2 + $0x1f0] sm:$0xff]
        %v630 = vld [vmem:[#allocation2 + $0x1f8] sm:$0xff]
        %v631 = vld [vmem:[#allocation2 + $0x200] sm:$0xff]
        %v632 = vld [vmem:[#allocation2 + $0x208] sm:$0xff]
        %v633 = vld [vmem:[#allocation2 + $0x210] sm:$0xff]
        %v634 = vld [vmem:[#allocation2 + $0x218] sm:$0xff]
        %v635 = vld [vmem:[#allocation2 + $0x220] sm:$0xff]
        %v636 = vld [vmem:[#allocation2 + $0x228] sm:$0xff]
        %v637 = vld [vmem:[#allocation2 + $0x230] sm:$0xff]
        %v638 = vld [vmem:[#allocation2 + $0x238] sm:$0xff]
        %v639 = vld [vmem:[#allocation2 + $0x240] sm:$0xff]
        %v640 = vld [vmem:[#allocation2 + $0x248] sm:$0xff]
        %v641 = vld [vmem:[#allocation2 + $0x250] sm:$0xff]
        %v642 = vld [vmem:[#allocation2 + $0x258] sm:$0xff]
        %v643 = vld [vmem:[#allocation2 + $0x260] sm:$0xff]
        %v644 = vld [vmem:[#allocation2 + $0x268] sm:$0xff]
        %v645 = vld [vmem:[#allocation2 + $0x270] sm:$0xff]
        %v646 = vld [vmem:[#allocation2 + $0x278] sm:$0xff]
        %v647 = vld [vmem:[#allocation2 + $0x280] sm:$0xff]
        %v648 = vld [vmem:[#allocation2 + $0x288] sm:$0xff]
        %v649 = vld [vmem:[#allocation2 + $0x290] sm:$0xff]
        %v650 = vld [vmem:[#allocation2 + $0x298] sm:$0xff]
        %v651 = vld [vmem:[#allocation2 + $0x2a0] sm:$0xff]
        %v652 = vld [vmem:[#allocation2 + $0x2a8] sm:$0xff]
        %v653 = vld [vmem:[#allocation2 + $0x2b0] sm:$0xff]
        %v654 = vld [vmem:[#allocation2 + $0x2b8] sm:$0xff]
        %v655 = vld [vmem:[#allocation2 + $0x2c0] sm:$0xff]
        %v656 = vld [vmem:[#allocation2 + $0x2c8] sm:$0xff]
        %v657 = vld [vmem:[#allocation2 + $0x2d0] sm:$0xff]
        %v658 = vld [vmem:[#allocation2 + $0x2d8] sm:$0xff]
        %v659 = vld [vmem:[#allocation2 + $0x2e0] sm:$0xff]
        %v660 = vld [vmem:[#allocation2 + $0x2e8] sm:$0xff]
        %v661 = vld [vmem:[#allocation2 + $0x2f0] sm:$0xff]
        %v662 = vld [vmem:[#allocation2 + $0x2f8] sm:$0xff]
        %v663 = vld [vmem:[#allocation2 + $0x300] sm:$0xff]
        %v664 = vld [vmem:[#allocation2 + $0x308] sm:$0xff]
        %v665 = vld [vmem:[#allocation2 + $0x310] sm:$0xff]
        %v666 = vld [vmem:[#allocation2 + $0x318] sm:$0xff]
        %v667 = vld [vmem:[#allocation2 + $0x320] sm:$0xff]
        %v668 = vld [vmem:[#allocation2 + $0x328] sm:$0xff]
        %v669 = vld [vmem:[#allocation2 + $0x330] sm:$0xff]
        %v670 = vld [vmem:[#allocation2 + $0x338] sm:$0xff]
        %v671 = vld [vmem:[#allocation2 + $0x340] sm:$0xff]
        %v672 = vld [vmem:[#allocation2 + $0x348] sm:$0xff]
        %v673 = vld [vmem:[#allocation2 + $0x350] sm:$0xff]
        %v674 = vld [vmem:[#allocation2 + $0x358] sm:$0xff]
        %v675 = vld [vmem:[#allocation2 + $0x360] sm:$0xff]
        %v676 = vld [vmem:[#allocation2 + $0x368] sm:$0xff]
        %v677 = vld [vmem:[#allocation2 + $0x370] sm:$0xff]
        %v678 = vld [vmem:[#allocation2 + $0x378] sm:$0xff]
        %v679 = vld [vmem:[#allocation2 + $0x380] sm:$0xff]
        %v680 = vld [vmem:[#allocation2 + $0x388] sm:$0xff]
        %v681 = vld [vmem:[#allocation2 + $0x390] sm:$0xff]
        %v682 = vld [vmem:[#allocation2 + $0x398] sm:$0xff]
        %v683 = vld [vmem:[#allocation2 + $0x3a0] sm:$0xff]
        %v684 = vld [vmem:[#allocation2 + $0x3a8] sm:$0xff]
        %v685 = vld [vmem:[#allocation2 + $0x3b0] sm:$0xff]
        %v686 = vld [vmem:[#allocation2 + $0x3b8] sm:$0xff]
        %v687 = vld [vmem:[#allocation2 + $0x3c0] sm:$0xff]
        %v688 = vld [vmem:[#allocation2 + $0x3c8] sm:$0xff]
        %v689 = vld [vmem:[#allocation2 + $0x3d0] sm:$0xff]
        %v690 = vld [vmem:[#allocation2 + $0x3d8] sm:$0xff]
        %v691 = vld [vmem:[#allocation2 + $0x3e0] sm:$0xff]
        %v692 = vld [vmem:[#allocation2 + $0x3e8] sm:$0xff]
        %v693 = vld [vmem:[#allocation2 + $0x3f0] sm:$0xff]
        %v694 = vld [vmem:[#allocation2 + $0x3f8] sm:$0xff]
        %v695 = vld [vmem:[#allocation2 + $0x400] sm:$0xff]
        %v696 = vld [vmem:[#allocation2 + $0x408] sm:$0xff]
        %v697 = vld [vmem:[#allocation2 + $0x410] sm:$0xff]
        %v698 = vld [vmem:[#allocation2 + $0x418] sm:$0xff]
        %v699 = vld [vmem:[#allocation2 + $0x420] sm:$0xff]
        %v700 = vld [vmem:[#allocation2 + $0x428] sm:$0xff]
        %v701 = vld [vmem:[#allocation2 + $0x430] sm:$0xff]
        %v702 = vld [vmem:[#allocation2 + $0x438] sm:$0xff]
        %v703 = vld [vmem:[#allocation2 + $0x440] sm:$0xff]
        %v704 = vld [vmem:[#allocation2 + $0x448] sm:$0xff]
        %v705 = vld [vmem:[#allocation2 + $0x450] sm:$0xff]
        %v706 = vld [vmem:[#allocation2 + $0x458] sm:$0xff]
        %v707 = vld [vmem:[#allocation2 + $0x460] sm:$0xff]
        %v708 = vld [vmem:[#allocation2 + $0x468] sm:$0xff]
        %v709 = vld [vmem:[#allocation2 + $0x470] sm:$0xff]
        %v710 = vld [vmem:[#allocation2 + $0x478] sm:$0xff]
        %v711 = vld [vmem:[#allocation2 + $0x480] sm:$0xff]
        %v712 = vld [vmem:[#allocation2 + $0x488] sm:$0xff]
        %v713 = vld [vmem:[#allocation2 + $0x490] sm:$0xff]
        %v714 = vld [vmem:[#allocation2 + $0x498] sm:$0xff]
        %v715 = vld [vmem:[#allocation2 + $0x4a0] sm:$0xff]
        %v716 = vld [vmem:[#allocation2 + $0x4a8] sm:$0xff]
        %v717 = vld [vmem:[#allocation2 + $0x4b0] sm:$0xff]
        %v718 = vld [vmem:[#allocation2 + $0x4b8] sm:$0xff]
        %v719 = vld [vmem:[#allocation2 + $0x4c0] sm:$0xff]
        %v720 = vld [vmem:[#allocation2 + $0x4c8] sm:$0xff]
        %v721 = vld [vmem:[#allocation2 + $0x4d0] sm:$0xff]
        %v722 = vld [vmem:[#allocation2 + $0x4d8] sm:$0xff]
        %v723 = vld [vmem:[#allocation2 + $0x4e0] sm:$0xff]
        %v724 = vld [vmem:[#allocation2 + $0x4e8] sm:$0xff]
        %v725 = vld [vmem:[#allocation2 + $0x4f0] sm:$0xff]
        %v726 = vld [vmem:[#allocation2 + $0x4f8] sm:$0xff]
        %v727 = vld [vmem:[#allocation2 + $0x500] sm:$0xff]
        %v728 = vld [vmem:[#allocation2 + $0x508] sm:$0xff]
        %v729 = vld [vmem:[#allocation2 + $0x510] sm:$0xff]
        %v730 = vld [vmem:[#allocation2 + $0x518] sm:$0xff]
        %v731 = vld [vmem:[#allocation2 + $0x520] sm:$0xff]
        %v732 = vld [vmem:[#allocation2 + $0x528] sm:$0xff]
        %v733 = vld [vmem:[#allocation2 + $0x530] sm:$0xff]
        %v734 = vld [vmem:[#allocation2 + $0x538] sm:$0xff]
        %v735 = vld [vmem:[#allocation2 + $0x540] sm:$0xff]
        %v736 = vld [vmem:[#allocation2 + $0x548] sm:$0xff]
        %v737 = vld [vmem:[#allocation2 + $0x550] sm:$0xff]
        %v738 = vld [vmem:[#allocation2 + $0x558] sm:$0xff]
        %v739 = vld [vmem:[#allocation2 + $0x560] sm:$0xff]
        %v740 = vld [vmem:[#allocation2 + $0x568] sm:$0xff]
        %v741 = vld [vmem:[#allocation2 + $0x570] sm:$0xff]
        %v742 = vld [vmem:[#allocation2 + $0x578] sm:$0xff]
        %v743 = vld [vmem:[#allocation2 + $0x580] sm:$0xff]
        %v744 = vld [vmem:[#allocation2 + $0x588] sm:$0xff]
        %v745 = vld [vmem:[#allocation2 + $0x590] sm:$0xff]
        %v746 = vld [vmem:[#allocation2 + $0x598] sm:$0xff]
        %v747 = vld [vmem:[#allocation2 + $0x5a0] sm:$0xff]
        %v748 = vld [vmem:[#allocation2 + $0x5a8] sm:$0xff]
        %v749 = vld [vmem:[#allocation2 + $0x5b0] sm:$0xff]
        %v750 = vld [vmem:[#allocation2 + $0x5b8] sm:$0xff]
        %v751 = vld [vmem:[#allocation2 + $0x5c0] sm:$0xff]
        %v752 = vld [vmem:[#allocation2 + $0x5c8] sm:$0xff]
        %v753 = vld [vmem:[#allocation2 + $0x5d0] sm:$0xff]
        %v754 = vld [vmem:[#allocation2 + $0x5d8] sm:$0xff]
        %v755 = vld [vmem:[#allocation2 + $0x5e0] sm:$0xff]
        %v756 = vld [vmem:[#allocation2 + $0x5e8] sm:$0xff]
        %v757 = vld [vmem:[#allocation2 + $0x5f0] sm:$0xff]
        %v758 = vld [vmem:[#allocation2 + $0x5f8] sm:$0xff]
        %v759 = vld [vmem:[#allocation2 + $0x600] sm:$0xff]
        %v760 = vld [vmem:[#allocation2 + $0x608] sm:$0xff]
        %v761 = vld [vmem:[#allocation2 + $0x610] sm:$0xff]
        %v762 = vld [vmem:[#allocation2 + $0x618] sm:$0xff]
        %v763 = vld [vmem:[#allocation2 + $0x620] sm:$0xff]
        %v764 = vld [vmem:[#allocation2 + $0x628] sm:$0xff]
        %v765 = vld [vmem:[#allocation2 + $0x630] sm:$0xff]
        %v766 = vld [vmem:[#allocation2 + $0x638] sm:$0xff]
        %v767 = vld [vmem:[#allocation2 + $0x640] sm:$0xff]
        %v768 = vld [vmem:[#allocation2 + $0x648] sm:$0xff]
        %v769 = vld [vmem:[#allocation2 + $0x650] sm:$0xff]
        %v770 = vld [vmem:[#allocation2 + $0x658] sm:$0xff]
        %v771 = vld [vmem:[#allocation2 + $0x660] sm:$0xff]
        %v772 = vld [vmem:[#allocation2 + $0x668] sm:$0xff]
        %v773 = vld [vmem:[#allocation2 + $0x670] sm:$0xff]
        %v774 = vld [vmem:[#allocation2 + $0x678] sm:$0xff]
        %v775 = vld [vmem:[#allocation2 + $0x680] sm:$0xff]
        %v776 = vld [vmem:[#allocation2 + $0x688] sm:$0xff]
        %v777 = vld [vmem:[#allocation2 + $0x690] sm:$0xff]
        %v778 = vld [vmem:[#allocation2 + $0x698] sm:$0xff]
        %v779 = vld [vmem:[#allocation2 + $0x6a0] sm:$0xff]
        %v780 = vld [vmem:[#allocation2 + $0x6a8] sm:$0xff]
        %v781 = vld [vmem:[#allocation2 + $0x6b0] sm:$0xff]
        %v782 = vld [vmem:[#allocation2 + $0x6b8] sm:$0xff]
        %v783 = vld [vmem:[#allocation2 + $0x6c0] sm:$0xff]
        %v784 = vld [vmem:[#allocation2 + $0x6c8] sm:$0xff]
        %v785 = vld [vmem:[#allocation2 + $0x6d0] sm:$0xff]
        %v786 = vld [vmem:[#allocation2 + $0x6d8] sm:$0xff]
        %v787 = vld [vmem:[#allocation2 + $0x6e0] sm:$0xff]
        %v788 = vld [vmem:[#allocation2 + $0x6e8] sm:$0xff]
        %v789 = vld [vmem:[#allocation2 + $0x6f0] sm:$0xff]
        %v790 = vld [vmem:[#allocation2 + $0x6f8] sm:$0xff]
        %v791 = vld [vmem:[#allocation2 + $0x700] sm:$0xff]
        %v792 = vld [vmem:[#allocation2 + $0x708] sm:$0xff]
        %v793 = vld [vmem:[#allocation2 + $0x710] sm:$0xff]
        %v794 = vld [vmem:[#allocation2 + $0x718] sm:$0xff]
        %v795 = vld [vmem:[#allocation2 + $0x720] sm:$0xff]
        %v796 = vld [vmem:[#allocation2 + $0x728] sm:$0xff]
        %v797 = vld [vmem:[#allocation2 + $0x730] sm:$0xff]
        %v798 = vld [vmem:[#allocation2 + $0x738] sm:$0xff]
        %v799 = vld [vmem:[#allocation2 + $0x740] sm:$0xff]
        %v800 = vld [vmem:[#allocation2 + $0x748] sm:$0xff]
        %v801 = vld [vmem:[#allocation2 + $0x750] sm:$0xff]
        %v802 = vld [vmem:[#allocation2 + $0x758] sm:$0xff]
        %v803 = vld [vmem:[#allocation2 + $0x760] sm:$0xff]
        %v804 = vld [vmem:[#allocation2 + $0x768] sm:$0xff]
        %v805 = vld [vmem:[#allocation2 + $0x770] sm:$0xff]
        %v806 = vld [vmem:[#allocation2 + $0x778] sm:$0xff]
        %v807 = vld [vmem:[#allocation2 + $0x780] sm:$0xff]
        %v808 = vld [vmem:[#allocation2 + $0x788] sm:$0xff]
        %v809 = vld [vmem:[#allocation2 + $0x790] sm:$0xff]
        %v810 = vld [vmem:[#allocation2 + $0x798] sm:$0xff]
        %v811 = vld [vmem:[#allocation2 + $0x7a0] sm:$0xff]
        %v812 = vld [vmem:[#allocation2 + $0x7a8] sm:$0xff]
        %v813 = vld [vmem:[#allocation2 + $0x7b0] sm:$0xff]
        %v814 = vld [vmem:[#allocation2 + $0x7b8] sm:$0xff]
        %v815 = vld [vmem:[#allocation2 + $0x7c0] sm:$0xff]
        %v816 = vld [vmem:[#allocation2 + $0x7c8] sm:$0xff]
        %v817 = vld [vmem:[#allocation2 + $0x7d0] sm:$0xff]
        %v818 = vld [vmem:[#allocation2 + $0x7d8] sm:$0xff]
        %v819 = vld [vmem:[#allocation2 + $0x7e0] sm:$0xff]
        %v820 = vld [vmem:[#allocation2 + $0x7e8] sm:$0xff]
        %v821 = vld [vmem:[#allocation2 + $0x7f0] sm:$0xff]
        %v822 = vld [vmem:[#allocation2 + $0x7f8] sm:$0xff]
        %v823 = vld [vmem:[#allocation3] sm:$0xff]
        %v824 = vld [vmem:[#allocation3 + $0x8] sm:$0xff]
        %v825 = vld [vmem:[#allocation3 + $0x10] sm:$0xff]
        %v826 = vld [vmem:[#allocation3 + $0x18] sm:$0xff]
        %v827 = vld [vmem:[#allocation3 + $0x20] sm:$0xff]
        %v828 = vld [vmem:[#allocation3 + $0x28] sm:$0xff]
        %v829 = vld [vmem:[#allocation3 + $0x30] sm:$0xff]
        %v830 = vld [vmem:[#allocation3 + $0x38] sm:$0xff]
        %v831 = vld [vmem:[#allocation3 + $0x40] sm:$0xff]
        %v832 = vld [vmem:[#allocation3 + $0x48] sm:$0xff]
        %v833 = vld [vmem:[#allocation3 + $0x50] sm:$0xff]
        %v834 = vld [vmem:[#allocation3 + $0x58] sm:$0xff]
        %v835 = vld [vmem:[#allocation3 + $0x60] sm:$0xff]
        %v836 = vld [vmem:[#allocation3 + $0x68] sm:$0xff]
        %v837 = vld [vmem:[#allocation3 + $0x70] sm:$0xff]
        %v838 = vld [vmem:[#allocation3 + $0x78] sm:$0xff]
        %v839 = vld [vmem:[#allocation3 + $0x80] sm:$0xff]
        %v840 = vld [vmem:[#allocation3 + $0x88] sm:$0xff]
        %v841 = vld [vmem:[#allocation3 + $0x90] sm:$0xff]
        %v842 = vld [vmem:[#allocation3 + $0x98] sm:$0xff]
        %v843 = vld [vmem:[#allocation3 + $0xa0] sm:$0xff]
        %v844 = vld [vmem:[#allocation3 + $0xa8] sm:$0xff]
        %v845 = vld [vmem:[#allocation3 + $0xb0] sm:$0xff]
        %v846 = vld [vmem:[#allocation3 + $0xb8] sm:$0xff]
        %v847 = vld [vmem:[#allocation3 + $0xc0] sm:$0xff]
        %v848 = vld [vmem:[#allocation3 + $0xc8] sm:$0xff]
        %v849 = vld [vmem:[#allocation3 + $0xd0] sm:$0xff]
        %v850 = vld [vmem:[#allocation3 + $0xd8] sm:$0xff]
        %v851 = vld [vmem:[#allocation3 + $0xe0] sm:$0xff]
        %v852 = vld [vmem:[#allocation3 + $0xe8] sm:$0xff]
        %v853 = vld [vmem:[#allocation3 + $0xf0] sm:$0xff]
        %v854 = vld [vmem:[#allocation3 + $0xf8] sm:$0xff]
        %v855 = vld [vmem:[#allocation3 + $0x100] sm:$0xff]
        %v856 = vld [vmem:[#allocation3 + $0x108] sm:$0xff]
        %v857 = vld [vmem:[#allocation3 + $0x110] sm:$0xff]
        %v858 = vld [vmem:[#allocation3 + $0x118] sm:$0xff]
        %v859 = vld [vmem:[#allocation3 + $0x120] sm:$0xff]
        %v860 = vld [vmem:[#allocation3 + $0x128] sm:$0xff]
        %v861 = vld [vmem:[#allocation3 + $0x130] sm:$0xff]
        %v862 = vld [vmem:[#allocation3 + $0x138] sm:$0xff]
        %v863 = vld [vmem:[#allocation3 + $0x140] sm:$0xff]
        %v864 = vld [vmem:[#allocation3 + $0x148] sm:$0xff]
        %v865 = vld [vmem:[#allocation3 + $0x150] sm:$0xff]
        %v866 = vld [vmem:[#allocation3 + $0x158] sm:$0xff]
        %v867 = vld [vmem:[#allocation3 + $0x160] sm:$0xff]
        %v868 = vld [vmem:[#allocation3 + $0x168] sm:$0xff]
        %v869 = vld [vmem:[#allocation3 + $0x170] sm:$0xff]
        %v870 = vld [vmem:[#allocation3 + $0x178] sm:$0xff]
        %v871 = vld [vmem:[#allocation3 + $0x180] sm:$0xff]
        %v872 = vld [vmem:[#allocation3 + $0x188] sm:$0xff]
        %v873 = vld [vmem:[#allocation3 + $0x190] sm:$0xff]
        %v874 = vld [vmem:[#allocation3 + $0x198] sm:$0xff]
        %v875 = vld [vmem:[#allocation3 + $0x1a0] sm:$0xff]
        %v876 = vld [vmem:[#allocation3 + $0x1a8] sm:$0xff]
        %v877 = vld [vmem:[#allocation3 + $0x1b0] sm:$0xff]
        %v878 = vld [vmem:[#allocation3 + $0x1b8] sm:$0xff]
        %v879 = vld [vmem:[#allocation3 + $0x1c0] sm:$0xff]
        %v880 = vld [vmem:[#allocation3 + $0x1c8] sm:$0xff]
        %v881 = vld [vmem:[#allocation3 + $0x1d0] sm:$0xff]
        %v882 = vld [vmem:[#allocation3 + $0x1d8] sm:$0xff]
        %v883 = vld [vmem:[#allocation3 + $0x1e0] sm:$0xff]
        %v884 = vld [vmem:[#allocation3 + $0x1e8] sm:$0xff]
        %v885 = vld [vmem:[#allocation3 + $0x1f0] sm:$0xff]
        %v886 = vld [vmem:[#allocation3 + $0x1f8] sm:$0xff]
        %v887 = vld [vmem:[#allocation3 + $0x200] sm:$0xff]
        %v888 = vld [vmem:[#allocation3 + $0x208] sm:$0xff]
        %v889 = vld [vmem:[#allocation3 + $0x210] sm:$0xff]
        %v890 = vld [vmem:[#allocation3 + $0x218] sm:$0xff]
        %v891 = vld [vmem:[#allocation3 + $0x220] sm:$0xff]
        %v892 = vld [vmem:[#allocation3 + $0x228] sm:$0xff]
        %v893 = vld [vmem:[#allocation3 + $0x230] sm:$0xff]
        %v894 = vld [vmem:[#allocation3 + $0x238] sm:$0xff]
        %v895 = vld [vmem:[#allocation3 + $0x240] sm:$0xff]
        %v896 = vld [vmem:[#allocation3 + $0x248] sm:$0xff]
        %v897 = vld [vmem:[#allocation3 + $0x250] sm:$0xff]
        %v898 = vld [vmem:[#allocation3 + $0x258] sm:$0xff]
        %v899 = vld [vmem:[#allocation3 + $0x260] sm:$0xff]
        %v900 = vld [vmem:[#allocation3 + $0x268] sm:$0xff]
        %v901 = vld [vmem:[#allocation3 + $0x270] sm:$0xff]
        %v902 = vld [vmem:[#allocation3 + $0x278] sm:$0xff]
        %v903 = vld [vmem:[#allocation3 + $0x280] sm:$0xff]
        %v904 = vld [vmem:[#allocation3 + $0x288] sm:$0xff]
        %v905 = vld [vmem:[#allocation3 + $0x290] sm:$0xff]
        %v906 = vld [vmem:[#allocation3 + $0x298] sm:$0xff]
        %v907 = vld [vmem:[#allocation3 + $0x2a0] sm:$0xff]
        %v908 = vld [vmem:[#allocation3 + $0x2a8] sm:$0xff]
        %v909 = vld [vmem:[#allocation3 + $0x2b0] sm:$0xff]
        %v910 = vld [vmem:[#allocation3 + $0x2b8] sm:$0xff]
        %v911 = vld [vmem:[#allocation3 + $0x2c0] sm:$0xff]
        %v912 = vld [vmem:[#allocation3 + $0x2c8] sm:$0xff]
        %v913 = vld [vmem:[#allocation3 + $0x2d0] sm:$0xff]
        %v914 = vld [vmem:[#allocation3 + $0x2d8] sm:$0xff]
        %v915 = vld [vmem:[#allocation3 + $0x2e0] sm:$0xff]
        %v916 = vld [vmem:[#allocation3 + $0x2e8] sm:$0xff]
        %v917 = vld [vmem:[#allocation3 + $0x2f0] sm:$0xff]
        %v918 = vld [vmem:[#allocation3 + $0x2f8] sm:$0xff]
        %v919 = vld [vmem:[#allocation3 + $0x300] sm:$0xff]
        %v920 = vld [vmem:[#allocation3 + $0x308] sm:$0xff]
        %v921 = vld [vmem:[#allocation3 + $0x310] sm:$0xff]
        %v922 = vld [vmem:[#allocation3 + $0x318] sm:$0xff]
        %v923 = vld [vmem:[#allocation3 + $0x320] sm:$0xff]
        %v924 = vld [vmem:[#allocation3 + $0x328] sm:$0xff]
        %v925 = vld [vmem:[#allocation3 + $0x330] sm:$0xff]
        %v926 = vld [vmem:[#allocation3 + $0x338] sm:$0xff]
        %v927 = vld [vmem:[#allocation3 + $0x340] sm:$0xff]
        %v928 = vld [vmem:[#allocation3 + $0x348] sm:$0xff]
        %v929 = vld [vmem:[#allocation3 + $0x350] sm:$0xff]
        %v930 = vld [vmem:[#allocation3 + $0x358] sm:$0xff]
        %v931 = vld [vmem:[#allocation3 + $0x360] sm:$0xff]
        %v932 = vld [vmem:[#allocation3 + $0x368] sm:$0xff]
        %v933 = vld [vmem:[#allocation3 + $0x370] sm:$0xff]
        %v934 = vld [vmem:[#allocation3 + $0x378] sm:$0xff]
        %v935 = vld [vmem:[#allocation3 + $0x380] sm:$0xff]
        %v936 = vld [vmem:[#allocation3 + $0x388] sm:$0xff]
        %v937 = vld [vmem:[#allocation3 + $0x390] sm:$0xff]
        %v938 = vld [vmem:[#allocation3 + $0x398] sm:$0xff]
        %v939 = vld [vmem:[#allocation3 + $0x3a0] sm:$0xff]
        %v940 = vld [vmem:[#allocation3 + $0x3a8] sm:$0xff]
        %v941 = vld [vmem:[#allocation3 + $0x3b0] sm:$0xff]
        %v942 = vld [vmem:[#allocation3 + $0x3b8] sm:$0xff]
        %v943 = vld [vmem:[#allocation3 + $0x3c0] sm:$0xff]
        %v944 = vld [vmem:[#allocation3 + $0x3c8] sm:$0xff]
        %v945 = vld [vmem:[#allocation3 + $0x3d0] sm:$0xff]
        %v946 = vld [vmem:[#allocation3 + $0x3d8] sm:$0xff]
        %v947 = vld [vmem:[#allocation3 + $0x3e0] sm:$0xff]
        %v948 = vld [vmem:[#allocation3 + $0x3e8] sm:$0xff]
        %v949 = vld [vmem:[#allocation3 + $0x3f0] sm:$0xff]
        %v950 = vld [vmem:[#allocation3 + $0x3f8] sm:$0xff]
        %v951 = vld [vmem:[#allocation3 + $0x400] sm:$0xff]
        %v952 = vld [vmem:[#allocation3 + $0x408] sm:$0xff]
        %v953 = vld [vmem:[#allocation3 + $0x410] sm:$0xff]
        %v954 = vld [vmem:[#allocation3 + $0x418] sm:$0xff]
        %v955 = vld [vmem:[#allocation3 + $0x420] sm:$0xff]
        %v956 = vld [vmem:[#allocation3 + $0x428] sm:$0xff]
        %v957 = vld [vmem:[#allocation3 + $0x430] sm:$0xff]
        %v958 = vld [vmem:[#allocation3 + $0x438] sm:$0xff]
        %v959 = vld [vmem:[#allocation3 + $0x440] sm:$0xff]
        %v960 = vld [vmem:[#allocation3 + $0x448] sm:$0xff]
        %v961 = vld [vmem:[#allocation3 + $0x450] sm:$0xff]
        %v962 = vld [vmem:[#allocation3 + $0x458] sm:$0xff]
        %v963 = vld [vmem:[#allocation3 + $0x460] sm:$0xff]
        %v964 = vld [vmem:[#allocation3 + $0x468] sm:$0xff]
        %v965 = vld [vmem:[#allocation3 + $0x470] sm:$0xff]
        %v966 = vld [vmem:[#allocation3 + $0x478] sm:$0xff]
        %v967 = vld [vmem:[#allocation3 + $0x480] sm:$0xff]
        %v968 = vld [vmem:[#allocation3 + $0x488] sm:$0xff]
        %v969 = vld [vmem:[#allocation3 + $0x490] sm:$0xff]
        %v970 = vld [vmem:[#allocation3 + $0x498] sm:$0xff]
        %v971 = vld [vmem:[#allocation3 + $0x4a0] sm:$0xff]
        %v972 = vld [vmem:[#allocation3 + $0x4a8] sm:$0xff]
        %v973 = vld [vmem:[#allocation3 + $0x4b0] sm:$0xff]
        %v974 = vld [vmem:[#allocation3 + $0x4b8] sm:$0xff]
        %v975 = vld [vmem:[#allocation3 + $0x4c0] sm:$0xff]
        %v976 = vld [vmem:[#allocation3 + $0x4c8] sm:$0xff]
        %v977 = vld [vmem:[#allocation3 + $0x4d0] sm:$0xff]
        %v978 = vld [vmem:[#allocation3 + $0x4d8] sm:$0xff]
        %v979 = vld [vmem:[#allocation3 + $0x4e0] sm:$0xff]
        %v980 = vld [vmem:[#allocation3 + $0x4e8] sm:$0xff]
        %v981 = vld [vmem:[#allocation3 + $0x4f0] sm:$0xff]
        %v982 = vld [vmem:[#allocation3 + $0x4f8] sm:$0xff]
        %v983 = vld [vmem:[#allocation3 + $0x500] sm:$0xff]
        %v984 = vld [vmem:[#allocation3 + $0x508] sm:$0xff]
        %v985 = vld [vmem:[#allocation3 + $0x510] sm:$0xff]
        %v986 = vld [vmem:[#allocation3 + $0x518] sm:$0xff]
        %v987 = vld [vmem:[#allocation3 + $0x520] sm:$0xff]
        %v988 = vld [vmem:[#allocation3 + $0x528] sm:$0xff]
        %v989 = vld [vmem:[#allocation3 + $0x530] sm:$0xff]
        %v990 = vld [vmem:[#allocation3 + $0x538] sm:$0xff]
        %v991 = vld [vmem:[#allocation3 + $0x540] sm:$0xff]
        %v992 = vld [vmem:[#allocation3 + $0x548] sm:$0xff]
        %v993 = vld [vmem:[#allocation3 + $0x550] sm:$0xff]
        %v994 = vld [vmem:[#allocation3 + $0x558] sm:$0xff]
        %v995 = vld [vmem:[#allocation3 + $0x560] sm:$0xff]
        %v996 = vld [vmem:[#allocation3 + $0x568] sm:$0xff]
        %v997 = vld [vmem:[#allocation3 + $0x570] sm:$0xff]
        %v998 = vld [vmem:[#allocation3 + $0x578] sm:$0xff]
        %v999 = vld [vmem:[#allocation3 + $0x580] sm:$0xff]
        %v1000 = vld [vmem:[#allocation3 + $0x588] sm:$0xff]
        %v1001 = vld [vmem:[#allocation3 + $0x590] sm:$0xff]
        %v1002 = vld [vmem:[#allocation3 + $0x598] sm:$0xff]
        %v1003 = vld [vmem:[#allocation3 + $0x5a0] sm:$0xff]
        %v1004 = vld [vmem:[#allocation3 + $0x5a8] sm:$0xff]
        %v1005 = vld [vmem:[#allocation3 + $0x5b0] sm:$0xff]
        %v1006 = vld [vmem:[#allocation3 + $0x5b8] sm:$0xff]
        %v1007 = vld [vmem:[#allocation3 + $0x5c0] sm:$0xff]
        %v1008 = vld [vmem:[#allocation3 + $0x5c8] sm:$0xff]
        %v1009 = vld [vmem:[#allocation3 + $0x5d0] sm:$0xff]
        %v1010 = vld [vmem:[#allocation3 + $0x5d8] sm:$0xff]
        %v1011 = vld [vmem:[#allocation3 + $0x5e0] sm:$0xff]
        %v1012 = vld [vmem:[#allocation3 + $0x5e8] sm:$0xff]
        %v1013 = vld [vmem:[#allocation3 + $0x5f0] sm:$0xff]
        %v1014 = vld [vmem:[#allocation3 + $0x5f8] sm:$0xff]
        %v1015 = vld [vmem:[#allocation3 + $0x600] sm:$0xff]
        %v1016 = vld [vmem:[#allocation3 + $0x608] sm:$0xff]
        %v1017 = vld [vmem:[#allocation3 + $0x610] sm:$0xff]
        %v1018 = vld [vmem:[#allocation3 + $0x618] sm:$0xff]
        %v1019 = vld [vmem:[#allocation3 + $0x620] sm:$0xff]
        %v1020 = vld [vmem:[#allocation3 + $0x628] sm:$0xff]
        %v1021 = vld [vmem:[#allocation3 + $0x630] sm:$0xff]
        %v1022 = vld [vmem:[#allocation3 + $0x638] sm:$0xff]
        %v1023 = vld [vmem:[#allocation3 + $0x640] sm:$0xff]
        %v1024 = vld [vmem:[#allocation3 + $0x648] sm:$0xff]
        %v1025 = vld [vmem:[#allocation3 + $0x650] sm:$0xff]
        %v1026 = vld [vmem:[#allocation3 + $0x658] sm:$0xff]
        %v1027 = vld [vmem:[#allocation3 + $0x660] sm:$0xff]
        %v1028 = vld [vmem:[#allocation3 + $0x668] sm:$0xff]
        %v1029 = vld [vmem:[#allocation3 + $0x670] sm:$0xff]
        %v1030 = vld [vmem:[#allocation3 + $0x678] sm:$0xff]
        %v1031 = vld [vmem:[#allocation3 + $0x680] sm:$0xff]
        %v1032 = vld [vmem:[#allocation3 + $0x688] sm:$0xff]
        %v1033 = vld [vmem:[#allocation3 + $0x690] sm:$0xff]
        %v1034 = vld [vmem:[#allocation3 + $0x698] sm:$0xff]
        %v1035 = vld [vmem:[#allocation3 + $0x6a0] sm:$0xff]
        %v1036 = vld [vmem:[#allocation3 + $0x6a8] sm:$0xff]
        %v1037 = vld [vmem:[#allocation3 + $0x6b0] sm:$0xff]
        %v1038 = vld [vmem:[#allocation3 + $0x6b8] sm:$0xff]
        %v1039 = vld [vmem:[#allocation3 + $0x6c0] sm:$0xff]
        %v1040 = vld [vmem:[#allocation3 + $0x6c8] sm:$0xff]
        %v1041 = vld [vmem:[#allocation3 + $0x6d0] sm:$0xff]
        %v1042 = vld [vmem:[#allocation3 + $0x6d8] sm:$0xff]
        %v1043 = vld [vmem:[#allocation3 + $0x6e0] sm:$0xff]
        %v1044 = vld [vmem:[#allocation3 + $0x6e8] sm:$0xff]
        %v1045 = vld [vmem:[#allocation3 + $0x6f0] sm:$0xff]
        %v1046 = vld [vmem:[#allocation3 + $0x6f8] sm:$0xff]
        %v1047 = vld [vmem:[#allocation3 + $0x700] sm:$0xff]
        %v1048 = vld [vmem:[#allocation3 + $0x708] sm:$0xff]
        %v1049 = vld [vmem:[#allocation3 + $0x710] sm:$0xff]
        %v1050 = vld [vmem:[#allocation3 + $0x718] sm:$0xff]
        %v1051 = vld [vmem:[#allocation3 + $0x720] sm:$0xff]
        %v1052 = vld [vmem:[#allocation3 + $0x728] sm:$0xff]
        %v1053 = vld [vmem:[#allocation3 + $0x730] sm:$0xff]
        %v1054 = vld [vmem:[#allocation3 + $0x738] sm:$0xff]
        %v1055 = vld [vmem:[#allocation3 + $0x740] sm:$0xff]
        %v1056 = vld [vmem:[#allocation3 + $0x748] sm:$0xff]
        %v1057 = vld [vmem:[#allocation3 + $0x750] sm:$0xff]
        %v1058 = vld [vmem:[#allocation3 + $0x758] sm:$0xff]
        %v1059 = vld [vmem:[#allocation3 + $0x760] sm:$0xff]
        %v1060 = vld [vmem:[#allocation3 + $0x768] sm:$0xff]
        %v1061 = vld [vmem:[#allocation3 + $0x770] sm:$0xff]
        %v1062 = vld [vmem:[#allocation3 + $0x778] sm:$0xff]
        %v1063 = vld [vmem:[#allocation3 + $0x780] sm:$0xff]
        %v1064 = vld [vmem:[#allocation3 + $0x788] sm:$0xff]
        %v1065 = vld [vmem:[#allocation3 + $0x790] sm:$0xff]
        %v1066 = vld [vmem:[#allocation3 + $0x798] sm:$0xff]
        %v1067 = vld [vmem:[#allocation3 + $0x7a0] sm:$0xff]
        %v1068 = vld [vmem:[#allocation3 + $0x7a8] sm:$0xff]
        %v1069 = vld [vmem:[#allocation3 + $0x7b0] sm:$0xff]
        %v1070 = vld [vmem:[#allocation3 + $0x7b8] sm:$0xff]
        %v1071 = vld [vmem:[#allocation3 + $0x7c0] sm:$0xff]
        %v1072 = vld [vmem:[#allocation3 + $0x7c8] sm:$0xff]
        %v1073 = vld [vmem:[#allocation3 + $0x7d0] sm:$0xff]
        %v1074 = vld [vmem:[#allocation3 + $0x7d8] sm:$0xff]
        %v1075 = vld [vmem:[#allocation3 + $0x7e0] sm:$0xff]
        %v1076 = vld [vmem:[#allocation3 + $0x7e8] sm:$0xff]
        %v1077 = vld [vmem:[#allocation3 + $0x7f0] sm:$0xff]
        %v1078 = vld [vmem:[#allocation3 + $0x7f8] sm:$0xff]
        %v1079 = vpack.c.bf16 %v827, %v823
        %v1080 = vpack.c.bf16 %v828, %v824
        %v1081 = vpack.c.bf16 %v829, %v825
        %v1082 = vpack.c.bf16 %v830, %v826
        %v1083 = vpack.c.bf16 %v835, %v831
        %v1084 = vpack.c.bf16 %v836, %v832
        %v1085 = vpack.c.bf16 %v837, %v833
        %v1086 = vpack.c.bf16 %v838, %v834
        %v1087 = vpack.c.bf16 %v843, %v839
        %v1088 = vpack.c.bf16 %v844, %v840
        %v1089 = vpack.c.bf16 %v845, %v841
        %v1090 = vpack.c.bf16 %v846, %v842
        %v1091 = vpack.c.bf16 %v851, %v847
        %v1092 = vpack.c.bf16 %v852, %v848
        %v1093 = vpack.c.bf16 %v853, %v849
        %v1094 = vpack.c.bf16 %v854, %v850
        %v1095 = vpack.c.bf16 %v859, %v855
        %v1096 = vpack.c.bf16 %v860, %v856
        %v1097 = vpack.c.bf16 %v861, %v857
        %v1098 = vpack.c.bf16 %v862, %v858
        %v1099 = vpack.c.bf16 %v867, %v863
        %v1100 = vpack.c.bf16 %v868, %v864
        %v1101 = vpack.c.bf16 %v869, %v865
        %v1102 = vpack.c.bf16 %v870, %v866
        %v1103 = vpack.c.bf16 %v875, %v871
        %v1104 = vpack.c.bf16 %v876, %v872
        %v1105 = vpack.c.bf16 %v877, %v873
        %v1106 = vpack.c.bf16 %v878, %v874
        %v1107 = vpack.c.bf16 %v883, %v879
        %v1108 = vpack.c.bf16 %v884, %v880
        %v1109 = vpack.c.bf16 %v885, %v881
        %v1110 = vpack.c.bf16 %v886, %v882
        %v1111 = vpack.c.bf16 %v891, %v887
        %v1112 = vpack.c.bf16 %v892, %v888
        %v1113 = vpack.c.bf16 %v893, %v889
        %v1114 = vpack.c.bf16 %v894, %v890
        %v1115 = vpack.c.bf16 %v899, %v895
        %v1116 = vpack.c.bf16 %v900, %v896
        %v1117 = vpack.c.bf16 %v901, %v897
        %v1118 = vpack.c.bf16 %v902, %v898
        %v1119 = vpack.c.bf16 %v907, %v903
        %v1120 = vpack.c.bf16 %v908, %v904
        %v1121 = vpack.c.bf16 %v909, %v905
        %v1122 = vpack.c.bf16 %v910, %v906
        %v1123 = vpack.c.bf16 %v915, %v911
        %v1124 = vpack.c.bf16 %v916, %v912
        %v1125 = vpack.c.bf16 %v917, %v913
        %v1126 = vpack.c.bf16 %v918, %v914
        %v1127 = vpack.c.bf16 %v923, %v919
        %v1128 = vpack.c.bf16 %v924, %v920
        %v1129 = vpack.c.bf16 %v925, %v921
        %v1130 = vpack.c.bf16 %v926, %v922
        %v1131 = vpack.c.bf16 %v931, %v927
        %v1132 = vpack.c.bf16 %v932, %v928
        %v1133 = vpack.c.bf16 %v933, %v929
        %v1134 = vpack.c.bf16 %v934, %v930
        %v1135 = vpack.c.bf16 %v939, %v935
        %v1136 = vpack.c.bf16 %v940, %v936
        %v1137 = vpack.c.bf16 %v941, %v937
        %v1138 = vpack.c.bf16 %v942, %v938
        %v1139 = vpack.c.bf16 %v947, %v943
        %v1140 = vpack.c.bf16 %v948, %v944
        %v1141 = vpack.c.bf16 %v949, %v945
        %v1142 = vpack.c.bf16 %v950, %v946
        %v1143 = vpack.c.bf16 %v955, %v951
        %v1144 = vpack.c.bf16 %v956, %v952
        %v1145 = vpack.c.bf16 %v957, %v953
        %v1146 = vpack.c.bf16 %v958, %v954
        %v1147 = vpack.c.bf16 %v963, %v959
        %v1148 = vpack.c.bf16 %v964, %v960
        %v1149 = vpack.c.bf16 %v965, %v961
        %v1150 = vpack.c.bf16 %v966, %v962
        %v1151 = vpack.c.bf16 %v971, %v967
        %v1152 = vpack.c.bf16 %v972, %v968
        %v1153 = vpack.c.bf16 %v973, %v969
        %v1154 = vpack.c.bf16 %v974, %v970
        %v1155 = vpack.c.bf16 %v979, %v975
        %v1156 = vpack.c.bf16 %v980, %v976
        %v1157 = vpack.c.bf16 %v981, %v977
        %v1158 = vpack.c.bf16 %v982, %v978
        %v1159 = vpack.c.bf16 %v987, %v983
        %v1160 = vpack.c.bf16 %v988, %v984
        %v1161 = vpack.c.bf16 %v989, %v985
        %v1162 = vpack.c.bf16 %v990, %v986
        %v1163 = vpack.c.bf16 %v995, %v991
        %v1164 = vpack.c.bf16 %v996, %v992
        %v1165 = vpack.c.bf16 %v997, %v993
        %v1166 = vpack.c.bf16 %v998, %v994
        %v1167 = vpack.c.bf16 %v1003, %v999
        %v1168 = vpack.c.bf16 %v1004, %v1000
        %v1169 = vpack.c.bf16 %v1005, %v1001
        %v1170 = vpack.c.bf16 %v1006, %v1002
        %v1171 = vpack.c.bf16 %v1011, %v1007
        %v1172 = vpack.c.bf16 %v1012, %v1008
        %v1173 = vpack.c.bf16 %v1013, %v1009
        %v1174 = vpack.c.bf16 %v1014, %v1010
        %v1175 = vpack.c.bf16 %v1019, %v1015
        %v1176 = vpack.c.bf16 %v1020, %v1016
        %v1177 = vpack.c.bf16 %v1021, %v1017
        %v1178 = vpack.c.bf16 %v1022, %v1018
        %v1179 = vpack.c.bf16 %v1027, %v1023
        %v1180 = vpack.c.bf16 %v1028, %v1024
        %v1181 = vpack.c.bf16 %v1029, %v1025
        %v1182 = vpack.c.bf16 %v1030, %v1026
        %v1183 = vpack.c.bf16 %v1035, %v1031
        %v1184 = vpack.c.bf16 %v1036, %v1032
        %v1185 = vpack.c.bf16 %v1037, %v1033
        %v1186 = vpack.c.bf16 %v1038, %v1034
        %v1187 = vpack.c.bf16 %v1043, %v1039
        %v1188 = vpack.c.bf16 %v1044, %v1040
        %v1189 = vpack.c.bf16 %v1045, %v1041
        %v1190 = vpack.c.bf16 %v1046, %v1042
        %v1191 = vpack.c.bf16 %v1051, %v1047
        %v1192 = vpack.c.bf16 %v1052, %v1048
        %v1193 = vpack.c.bf16 %v1053, %v1049
        %v1194 = vpack.c.bf16 %v1054, %v1050
        %v1195 = vpack.c.bf16 %v1059, %v1055
        %v1196 = vpack.c.bf16 %v1060, %v1056
        %v1197 = vpack.c.bf16 %v1061, %v1057
        %v1198 = vpack.c.bf16 %v1062, %v1058
        %v1199 = vpack.c.bf16 %v1067, %v1063
        %v1200 = vpack.c.bf16 %v1068, %v1064
        %v1201 = vpack.c.bf16 %v1069, %v1065
        %v1202 = vpack.c.bf16 %v1070, %v1066
        %v1203 = vpack.c.bf16 %v1075, %v1071
        %v1204 = vpack.c.bf16 %v1076, %v1072
        %v1205 = vpack.c.bf16 %v1077, %v1073
        %v1206 = vpack.c.bf16 %v1078, %v1074
        %v1207 = vld [vmem:[%s241] sm:$0xff]
        %v1208 = vld [vmem:[%s241 + $0x8] sm:$0xff]
        %v1209 = vld [vmem:[%s241 + $0x10] sm:$0xff]
        %v1210 = vld [vmem:[%s241 + $0x18] sm:$0xff]
        %v1211 = vld [vmem:[%s241 + $0x20] sm:$0xff]
        %v1212 = vld [vmem:[%s241 + $0x28] sm:$0xff]
        %v1213 = vld [vmem:[%s241 + $0x30] sm:$0xff]
        %v1214 = vld [vmem:[%s241 + $0x38] sm:$0xff]
        %v1215 = vld [vmem:[%s241 + $0x40] sm:$0xff]
        %v1216 = vld [vmem:[%s241 + $0x48] sm:$0xff]
        %v1217 = vld [vmem:[%s241 + $0x50] sm:$0xff]
        %v1218 = vld [vmem:[%s241 + $0x58] sm:$0xff]
        %v1219 = vld [vmem:[%s241 + $0x60] sm:$0xff]
        %v1220 = vld [vmem:[%s241 + $0x68] sm:$0xff]
        %v1221 = vld [vmem:[%s241 + $0x70] sm:$0xff]
        %v1222 = vld [vmem:[%s241 + $0x78] sm:$0xff]
        %v1223 = vld [vmem:[%s241 + $0x80] sm:$0xff]
        %v1224 = vld [vmem:[%s241 + $0x88] sm:$0xff]
        %v1225 = vld [vmem:[%s241 + $0x90] sm:$0xff]
        %v1226 = vld [vmem:[%s241 + $0x98] sm:$0xff]
        %v1227 = vld [vmem:[%s241 + $0xa0] sm:$0xff]
        %v1228 = vld [vmem:[%s241 + $0xa8] sm:$0xff]
        %v1229 = vld [vmem:[%s241 + $0xb0] sm:$0xff]
        %v1230 = vld [vmem:[%s241 + $0xb8] sm:$0xff]
        %v1231 = vld [vmem:[%s241 + $0xc0] sm:$0xff]
        %v1232 = vld [vmem:[%s241 + $0xc8] sm:$0xff]
        %v1233 = vld [vmem:[%s241 + $0xd0] sm:$0xff]
        %v1234 = vld [vmem:[%s241 + $0xd8] sm:$0xff]
        %v1235 = vld [vmem:[%s241 + $0xe0] sm:$0xff]
        %v1236 = vld [vmem:[%s241 + $0xe8] sm:$0xff]
        %v1237 = vld [vmem:[%s241 + $0xf0] sm:$0xff]
        %v1238 = vld [vmem:[%s241 + $0xf8] sm:$0xff]
        %v1239 = vld [vmem:[%s241 + $0x100] sm:$0xff]
        %v1240 = vld [vmem:[%s241 + $0x108] sm:$0xff]
        %v1241 = vld [vmem:[%s241 + $0x110] sm:$0xff]
        %v1242 = vld [vmem:[%s241 + $0x118] sm:$0xff]
        %v1243 = vld [vmem:[%s241 + $0x120] sm:$0xff]
        %v1244 = vld [vmem:[%s241 + $0x128] sm:$0xff]
        %v1245 = vld [vmem:[%s241 + $0x130] sm:$0xff]
        %v1246 = vld [vmem:[%s241 + $0x138] sm:$0xff]
        %v1247 = vld [vmem:[%s241 + $0x140] sm:$0xff]
        %v1248 = vld [vmem:[%s241 + $0x148] sm:$0xff]
        %v1249 = vld [vmem:[%s241 + $0x150] sm:$0xff]
        %v1250 = vld [vmem:[%s241 + $0x158] sm:$0xff]
        %v1251 = vld [vmem:[%s241 + $0x160] sm:$0xff]
        %v1252 = vld [vmem:[%s241 + $0x168] sm:$0xff]
        %v1253 = vld [vmem:[%s241 + $0x170] sm:$0xff]
        %v1254 = vld [vmem:[%s241 + $0x178] sm:$0xff]
        %v1255 = vld [vmem:[%s241 + $0x180] sm:$0xff]
        %v1256 = vld [vmem:[%s241 + $0x188] sm:$0xff]
        %v1257 = vld [vmem:[%s241 + $0x190] sm:$0xff]
        %v1258 = vld [vmem:[%s241 + $0x198] sm:$0xff]
        %v1259 = vld [vmem:[%s241 + $0x1a0] sm:$0xff]
        %v1260 = vld [vmem:[%s241 + $0x1a8] sm:$0xff]
        %v1261 = vld [vmem:[%s241 + $0x1b0] sm:$0xff]
        %v1262 = vld [vmem:[%s241 + $0x1b8] sm:$0xff]
        %v1263 = vld [vmem:[%s241 + $0x1c0] sm:$0xff]
        %v1264 = vld [vmem:[%s241 + $0x1c8] sm:$0xff]
        %v1265 = vld [vmem:[%s241 + $0x1d0] sm:$0xff]
        %v1266 = vld [vmem:[%s241 + $0x1d8] sm:$0xff]
        %v1267 = vld [vmem:[%s241 + $0x1e0] sm:$0xff]
        %v1268 = vld [vmem:[%s241 + $0x1e8] sm:$0xff]
        %v1269 = vld [vmem:[%s241 + $0x1f0] sm:$0xff]
        %v1270 = vld [vmem:[%s241 + $0x1f8] sm:$0xff]
        %v1271 = vld [vmem:[%s241 + $0x200] sm:$0xff]
        %v1272 = vld [vmem:[%s241 + $0x208] sm:$0xff]
        %v1273 = vld [vmem:[%s241 + $0x210] sm:$0xff]
        %v1274 = vld [vmem:[%s241 + $0x218] sm:$0xff]
        %v1275 = vld [vmem:[%s241 + $0x220] sm:$0xff]
        %v1276 = vld [vmem:[%s241 + $0x228] sm:$0xff]
        %v1277 = vld [vmem:[%s241 + $0x230] sm:$0xff]
        %v1278 = vld [vmem:[%s241 + $0x238] sm:$0xff]
        %v1279 = vld [vmem:[%s241 + $0x240] sm:$0xff]
        %v1280 = vld [vmem:[%s241 + $0x248] sm:$0xff]
        %v1281 = vld [vmem:[%s241 + $0x250] sm:$0xff]
        %v1282 = vld [vmem:[%s241 + $0x258] sm:$0xff]
        %v1283 = vld [vmem:[%s241 + $0x260] sm:$0xff]
        %v1284 = vld [vmem:[%s241 + $0x268] sm:$0xff]
        %v1285 = vld [vmem:[%s241 + $0x270] sm:$0xff]
        %v1286 = vld [vmem:[%s241 + $0x278] sm:$0xff]
        %v1287 = vld [vmem:[%s241 + $0x280] sm:$0xff]
        %v1288 = vld [vmem:[%s241 + $0x288] sm:$0xff]
        %v1289 = vld [vmem:[%s241 + $0x290] sm:$0xff]
        %v1290 = vld [vmem:[%s241 + $0x298] sm:$0xff]
        %v1291 = vld [vmem:[%s241 + $0x2a0] sm:$0xff]
        %v1292 = vld [vmem:[%s241 + $0x2a8] sm:$0xff]
        %v1293 = vld [vmem:[%s241 + $0x2b0] sm:$0xff]
        %v1294 = vld [vmem:[%s241 + $0x2b8] sm:$0xff]
        %v1295 = vld [vmem:[%s241 + $0x2c0] sm:$0xff]
        %v1296 = vld [vmem:[%s241 + $0x2c8] sm:$0xff]
        %v1297 = vld [vmem:[%s241 + $0x2d0] sm:$0xff]
        %v1298 = vld [vmem:[%s241 + $0x2d8] sm:$0xff]
        %v1299 = vld [vmem:[%s241 + $0x2e0] sm:$0xff]
        %v1300 = vld [vmem:[%s241 + $0x2e8] sm:$0xff]
        %v1301 = vld [vmem:[%s241 + $0x2f0] sm:$0xff]
        %v1302 = vld [vmem:[%s241 + $0x2f8] sm:$0xff]
        %v1303 = vld [vmem:[%s241 + $0x300] sm:$0xff]
        %v1304 = vld [vmem:[%s241 + $0x308] sm:$0xff]
        %v1305 = vld [vmem:[%s241 + $0x310] sm:$0xff]
        %v1306 = vld [vmem:[%s241 + $0x318] sm:$0xff]
        %v1307 = vld [vmem:[%s241 + $0x320] sm:$0xff]
        %v1308 = vld [vmem:[%s241 + $0x328] sm:$0xff]
        %v1309 = vld [vmem:[%s241 + $0x330] sm:$0xff]
        %v1310 = vld [vmem:[%s241 + $0x338] sm:$0xff]
        %v1311 = vld [vmem:[%s241 + $0x340] sm:$0xff]
        %v1312 = vld [vmem:[%s241 + $0x348] sm:$0xff]
        %v1313 = vld [vmem:[%s241 + $0x350] sm:$0xff]
        %v1314 = vld [vmem:[%s241 + $0x358] sm:$0xff]
        %v1315 = vld [vmem:[%s241 + $0x360] sm:$0xff]
        %v1316 = vld [vmem:[%s241 + $0x368] sm:$0xff]
        %v1317 = vld [vmem:[%s241 + $0x370] sm:$0xff]
        %v1318 = vld [vmem:[%s241 + $0x378] sm:$0xff]
        %v1319 = vld [vmem:[%s241 + $0x380] sm:$0xff]
        %v1320 = vld [vmem:[%s241 + $0x388] sm:$0xff]
        %v1321 = vld [vmem:[%s241 + $0x390] sm:$0xff]
        %v1322 = vld [vmem:[%s241 + $0x398] sm:$0xff]
        %v1323 = vld [vmem:[%s241 + $0x3a0] sm:$0xff]
        %v1324 = vld [vmem:[%s241 + $0x3a8] sm:$0xff]
        %v1325 = vld [vmem:[%s241 + $0x3b0] sm:$0xff]
        %v1326 = vld [vmem:[%s241 + $0x3b8] sm:$0xff]
        %v1327 = vld [vmem:[%s241 + $0x3c0] sm:$0xff]
        %v1328 = vld [vmem:[%s241 + $0x3c8] sm:$0xff]
        %v1329 = vld [vmem:[%s241 + $0x3d0] sm:$0xff]
        %v1330 = vld [vmem:[%s241 + $0x3d8] sm:$0xff]
        %v1331 = vld [vmem:[%s241 + $0x3e0] sm:$0xff]
        %v1332 = vld [vmem:[%s241 + $0x3e8] sm:$0xff]
        %v1333 = vld [vmem:[%s241 + $0x3f0] sm:$0xff]
        %v1334 = vld [vmem:[%s241 + $0x3f8] sm:$0xff]
        %v1463 = vunpack.c.l.b16 %v1207
        %v1464 = vunpack.c.h.b16 %v1207
        %v1465 = vunpack.c.l.b16 %v1208
        %v1466 = vunpack.c.h.b16 %v1208
        %v1467 = vunpack.c.l.b16 %v1209
        %v1468 = vunpack.c.h.b16 %v1209
        %v1469 = vunpack.c.l.b16 %v1210
        %v1470 = vunpack.c.h.b16 %v1210
        %v1471 = vunpack.c.l.b16 %v1211
        %v1472 = vunpack.c.h.b16 %v1211
        %v1473 = vunpack.c.l.b16 %v1212
        %v1474 = vunpack.c.h.b16 %v1212
        %v1475 = vunpack.c.l.b16 %v1213
        %v1476 = vunpack.c.h.b16 %v1213
        %v1477 = vunpack.c.l.b16 %v1214
        %v1478 = vunpack.c.h.b16 %v1214
        %v1479 = vunpack.c.l.b16 %v1215
        %v1480 = vunpack.c.h.b16 %v1215
        %v1481 = vunpack.c.l.b16 %v1216
        %v1482 = vunpack.c.h.b16 %v1216
        %v1483 = vunpack.c.l.b16 %v1217
        %v1484 = vunpack.c.h.b16 %v1217
        %v1485 = vunpack.c.l.b16 %v1218
        %v1486 = vunpack.c.h.b16 %v1218
        %v1487 = vunpack.c.l.b16 %v1219
        %v1488 = vunpack.c.h.b16 %v1219
        %v1489 = vunpack.c.l.b16 %v1220
        %v1490 = vunpack.c.h.b16 %v1220
        %v1491 = vunpack.c.l.b16 %v1221
        %v1492 = vunpack.c.h.b16 %v1221
        %v1493 = vunpack.c.l.b16 %v1222
        %v1494 = vunpack.c.h.b16 %v1222
        %v1495 = vunpack.c.l.b16 %v1223
        %v1496 = vunpack.c.h.b16 %v1223
        %v1497 = vunpack.c.l.b16 %v1224
        %v1498 = vunpack.c.h.b16 %v1224
        %v1499 = vunpack.c.l.b16 %v1225
        %v1500 = vunpack.c.h.b16 %v1225
        %v1501 = vunpack.c.l.b16 %v1226
        %v1502 = vunpack.c.h.b16 %v1226
        %v1503 = vunpack.c.l.b16 %v1227
        %v1504 = vunpack.c.h.b16 %v1227
        %v1505 = vunpack.c.l.b16 %v1228
        %v1506 = vunpack.c.h.b16 %v1228
        %v1507 = vunpack.c.l.b16 %v1229
        %v1508 = vunpack.c.h.b16 %v1229
        %v1509 = vunpack.c.l.b16 %v1230
        %v1510 = vunpack.c.h.b16 %v1230
        %v1511 = vunpack.c.l.b16 %v1231
        %v1512 = vunpack.c.h.b16 %v1231
        %v1513 = vunpack.c.l.b16 %v1232
        %v1514 = vunpack.c.h.b16 %v1232
        %v1515 = vunpack.c.l.b16 %v1233
        %v1516 = vunpack.c.h.b16 %v1233
        %v1517 = vunpack.c.l.b16 %v1234
        %v1518 = vunpack.c.h.b16 %v1234
        %v1519 = vunpack.c.l.b16 %v1235
        %v1520 = vunpack.c.h.b16 %v1235
        %v1521 = vunpack.c.l.b16 %v1236
        %v1522 = vunpack.c.h.b16 %v1236
        %v1523 = vunpack.c.l.b16 %v1237
        %v1524 = vunpack.c.h.b16 %v1237
        %v1525 = vunpack.c.l.b16 %v1238
        %v1526 = vunpack.c.h.b16 %v1238
        %v1527 = vunpack.c.l.b16 %v1239
        %v1528 = vunpack.c.h.b16 %v1239
        %v1529 = vunpack.c.l.b16 %v1240
        %v1530 = vunpack.c.h.b16 %v1240
        %v1531 = vunpack.c.l.b16 %v1241
        %v1532 = vunpack.c.h.b16 %v1241
        %v1533 = vunpack.c.l.b16 %v1242
        %v1534 = vunpack.c.h.b16 %v1242
        %v1535 = vunpack.c.l.b16 %v1243
        %v1536 = vunpack.c.h.b16 %v1243
        %v1537 = vunpack.c.l.b16 %v1244
        %v1538 = vunpack.c.h.b16 %v1244
        %v1539 = vunpack.c.l.b16 %v1245
        %v1540 = vunpack.c.h.b16 %v1245
        %v1541 = vunpack.c.l.b16 %v1246
        %v1542 = vunpack.c.h.b16 %v1246
        %v1543 = vunpack.c.l.b16 %v1247
        %v1544 = vunpack.c.h.b16 %v1247
        %v1545 = vunpack.c.l.b16 %v1248
        %v1546 = vunpack.c.h.b16 %v1248
        %v1547 = vunpack.c.l.b16 %v1249
        %v1548 = vunpack.c.h.b16 %v1249
        %v1549 = vunpack.c.l.b16 %v1250
        %v1550 = vunpack.c.h.b16 %v1250
        %v1551 = vunpack.c.l.b16 %v1251
        %v1552 = vunpack.c.h.b16 %v1251
        %v1553 = vunpack.c.l.b16 %v1252
        %v1554 = vunpack.c.h.b16 %v1252
        %v1555 = vunpack.c.l.b16 %v1253
        %v1556 = vunpack.c.h.b16 %v1253
        %v1557 = vunpack.c.l.b16 %v1254
        %v1558 = vunpack.c.h.b16 %v1254
        %v1559 = vunpack.c.l.b16 %v1255
        %v1560 = vunpack.c.h.b16 %v1255
        %v1561 = vunpack.c.l.b16 %v1256
        %v1562 = vunpack.c.h.b16 %v1256
        %v1563 = vunpack.c.l.b16 %v1257
        %v1564 = vunpack.c.h.b16 %v1257
        %v1565 = vunpack.c.l.b16 %v1258
        %v1566 = vunpack.c.h.b16 %v1258
        %v1567 = vunpack.c.l.b16 %v1259
        %v1568 = vunpack.c.h.b16 %v1259
        %v1569 = vunpack.c.l.b16 %v1260
        %v1570 = vunpack.c.h.b16 %v1260
        %v1571 = vunpack.c.l.b16 %v1261
        %v1572 = vunpack.c.h.b16 %v1261
        %v1573 = vunpack.c.l.b16 %v1262
        %v1574 = vunpack.c.h.b16 %v1262
        %v1575 = vunpack.c.l.b16 %v1263
        %v1576 = vunpack.c.h.b16 %v1263
        %v1577 = vunpack.c.l.b16 %v1264
        %v1578 = vunpack.c.h.b16 %v1264
        %v1579 = vunpack.c.l.b16 %v1265
        %v1580 = vunpack.c.h.b16 %v1265
        %v1581 = vunpack.c.l.b16 %v1266
        %v1582 = vunpack.c.h.b16 %v1266
        %v1583 = vunpack.c.l.b16 %v1267
        %v1584 = vunpack.c.h.b16 %v1267
        %v1585 = vunpack.c.l.b16 %v1268
        %v1586 = vunpack.c.h.b16 %v1268
        %v1587 = vunpack.c.l.b16 %v1269
        %v1588 = vunpack.c.h.b16 %v1269
        %v1589 = vunpack.c.l.b16 %v1270
        %v1590 = vunpack.c.h.b16 %v1270
        %v1591 = vunpack.c.l.b16 %v1271
        %v1592 = vunpack.c.h.b16 %v1271
        %v1593 = vunpack.c.l.b16 %v1272
        %v1594 = vunpack.c.h.b16 %v1272
        %v1595 = vunpack.c.l.b16 %v1273
        %v1596 = vunpack.c.h.b16 %v1273
        %v1597 = vunpack.c.l.b16 %v1274
        %v1598 = vunpack.c.h.b16 %v1274
        %v1599 = vunpack.c.l.b16 %v1275
        %v1600 = vunpack.c.h.b16 %v1275
        %v1601 = vunpack.c.l.b16 %v1276
        %v1602 = vunpack.c.h.b16 %v1276
        %v1603 = vunpack.c.l.b16 %v1277
        %v1604 = vunpack.c.h.b16 %v1277
        %v1605 = vunpack.c.l.b16 %v1278
        %v1606 = vunpack.c.h.b16 %v1278
        %v1607 = vunpack.c.l.b16 %v1279
        %v1608 = vunpack.c.h.b16 %v1279
        %v1609 = vunpack.c.l.b16 %v1280
        %v1610 = vunpack.c.h.b16 %v1280
        %v1611 = vunpack.c.l.b16 %v1281
        %v1612 = vunpack.c.h.b16 %v1281
        %v1613 = vunpack.c.l.b16 %v1282
        %v1614 = vunpack.c.h.b16 %v1282
        %v1615 = vunpack.c.l.b16 %v1283
        %v1616 = vunpack.c.h.b16 %v1283
        %v1617 = vunpack.c.l.b16 %v1284
        %v1618 = vunpack.c.h.b16 %v1284
        %v1619 = vunpack.c.l.b16 %v1285
        %v1620 = vunpack.c.h.b16 %v1285
        %v1621 = vunpack.c.l.b16 %v1286
        %v1622 = vunpack.c.h.b16 %v1286
        %v1623 = vunpack.c.l.b16 %v1287
        %v1624 = vunpack.c.h.b16 %v1287
        %v1625 = vunpack.c.l.b16 %v1288
        %v1626 = vunpack.c.h.b16 %v1288
        %v1627 = vunpack.c.l.b16 %v1289
        %v1628 = vunpack.c.h.b16 %v1289
        %v1629 = vunpack.c.l.b16 %v1290
        %v1630 = vunpack.c.h.b16 %v1290
        %v1631 = vunpack.c.l.b16 %v1291
        %v1632 = vunpack.c.h.b16 %v1291
        %v1633 = vunpack.c.l.b16 %v1292
        %v1634 = vunpack.c.h.b16 %v1292
        %v1635 = vunpack.c.l.b16 %v1293
        %v1636 = vunpack.c.h.b16 %v1293
        %v1637 = vunpack.c.l.b16 %v1294
        %v1638 = vunpack.c.h.b16 %v1294
        %v1639 = vunpack.c.l.b16 %v1295
        %v1640 = vunpack.c.h.b16 %v1295
        %v1641 = vunpack.c.l.b16 %v1296
        %v1642 = vunpack.c.h.b16 %v1296
        %v1643 = vunpack.c.l.b16 %v1297
        %v1644 = vunpack.c.h.b16 %v1297
        %v1645 = vunpack.c.l.b16 %v1298
        %v1646 = vunpack.c.h.b16 %v1298
        %v1647 = vunpack.c.l.b16 %v1299
        %v1648 = vunpack.c.h.b16 %v1299
        %v1649 = vunpack.c.l.b16 %v1300
        %v1650 = vunpack.c.h.b16 %v1300
        %v1651 = vunpack.c.l.b16 %v1301
        %v1652 = vunpack.c.h.b16 %v1301
        %v1653 = vunpack.c.l.b16 %v1302
        %v1654 = vunpack.c.h.b16 %v1302
        %v1655 = vunpack.c.l.b16 %v1303
        %v1656 = vunpack.c.h.b16 %v1303
        %v1657 = vunpack.c.l.b16 %v1304
        %v1658 = vunpack.c.h.b16 %v1304
        %v1659 = vunpack.c.l.b16 %v1305
        %v1660 = vunpack.c.h.b16 %v1305
        %v1661 = vunpack.c.l.b16 %v1306
        %v1662 = vunpack.c.h.b16 %v1306
        %v1663 = vunpack.c.l.b16 %v1307
        %v1664 = vunpack.c.h.b16 %v1307
        %v1665 = vunpack.c.l.b16 %v1308
        %v1666 = vunpack.c.h.b16 %v1308
        %v1667 = vunpack.c.l.b16 %v1309
        %v1668 = vunpack.c.h.b16 %v1309
        %v1669 = vunpack.c.l.b16 %v1310
        %v1670 = vunpack.c.h.b16 %v1310
        %v1671 = vunpack.c.l.b16 %v1311
        %v1672 = vunpack.c.h.b16 %v1311
        %v1673 = vunpack.c.l.b16 %v1312
        %v1674 = vunpack.c.h.b16 %v1312
        %v1675 = vunpack.c.l.b16 %v1313
        %v1676 = vunpack.c.h.b16 %v1313
        %v1677 = vunpack.c.l.b16 %v1314
        %v1678 = vunpack.c.h.b16 %v1314
        %v1679 = vunpack.c.l.b16 %v1315
        %v1680 = vunpack.c.h.b16 %v1315
        %v1681 = vunpack.c.l.b16 %v1316
        %v1682 = vunpack.c.h.b16 %v1316
        %v1683 = vunpack.c.l.b16 %v1317
        %v1684 = vunpack.c.h.b16 %v1317
        %v1685 = vunpack.c.l.b16 %v1318
        %v1686 = vunpack.c.h.b16 %v1318
        %v1687 = vunpack.c.l.b16 %v1319
        %v1688 = vunpack.c.h.b16 %v1319
        %v1689 = vunpack.c.l.b16 %v1320
        %v1690 = vunpack.c.h.b16 %v1320
        %v1691 = vunpack.c.l.b16 %v1321
        %v1692 = vunpack.c.h.b16 %v1321
        %v1693 = vunpack.c.l.b16 %v1322
        %v1694 = vunpack.c.h.b16 %v1322
        %v1695 = vunpack.c.l.b16 %v1323
        %v1696 = vunpack.c.h.b16 %v1323
        %v1697 = vunpack.c.l.b16 %v1324
        %v1698 = vunpack.c.h.b16 %v1324
        %v1699 = vunpack.c.l.b16 %v1325
        %v1700 = vunpack.c.h.b16 %v1325
        %v1701 = vunpack.c.l.b16 %v1326
        %v1702 = vunpack.c.h.b16 %v1326
        %v1703 = vunpack.c.l.b16 %v1327
        %v1704 = vunpack.c.h.b16 %v1327
        %v1705 = vunpack.c.l.b16 %v1328
        %v1706 = vunpack.c.h.b16 %v1328
        %v1707 = vunpack.c.l.b16 %v1329
        %v1708 = vunpack.c.h.b16 %v1329
        %v1709 = vunpack.c.l.b16 %v1330
        %v1710 = vunpack.c.h.b16 %v1330
        %v1711 = vunpack.c.l.b16 %v1331
        %v1712 = vunpack.c.h.b16 %v1331
        %v1713 = vunpack.c.l.b16 %v1332
        %v1714 = vunpack.c.h.b16 %v1332
        %v1715 = vunpack.c.l.b16 %v1333
        %v1716 = vunpack.c.h.b16 %v1333
        %v1717 = vunpack.c.l.b16 %v1334
        %v1718 = vunpack.c.h.b16 %v1334
        %v1719 = vpack.c.b16 %v1467, %v1463
        %v1720 = vpack.c.b16 %v1468, %v1464
        %v1721 = vpack.c.b16 %v1469, %v1465
        %v1722 = vpack.c.b16 %v1470, %v1466
        %v1723 = vpack.c.b16 %v1475, %v1471
        %v1724 = vpack.c.b16 %v1476, %v1472
        %v1725 = vpack.c.b16 %v1477, %v1473
        %v1726 = vpack.c.b16 %v1478, %v1474
        %v1727 = vpack.c.b16 %v1483, %v1479
        %v1728 = vpack.c.b16 %v1484, %v1480
        %v1729 = vpack.c.b16 %v1485, %v1481
        %v1730 = vpack.c.b16 %v1486, %v1482
        %v1731 = vpack.c.b16 %v1491, %v1487
        %v1732 = vpack.c.b16 %v1492, %v1488
        %v1733 = vpack.c.b16 %v1493, %v1489
        %v1734 = vpack.c.b16 %v1494, %v1490
        %v1735 = vpack.c.b16 %v1499, %v1495
        %v1736 = vpack.c.b16 %v1500, %v1496
        %v1737 = vpack.c.b16 %v1501, %v1497
        %v1738 = vpack.c.b16 %v1502, %v1498
        %v1739 = vpack.c.b16 %v1507, %v1503
        %v1740 = vpack.c.b16 %v1508, %v1504
        %v1741 = vpack.c.b16 %v1509, %v1505
        %v1742 = vpack.c.b16 %v1510, %v1506
        %v1743 = vpack.c.b16 %v1515, %v1511
        %v1744 = vpack.c.b16 %v1516, %v1512
        %v1745 = vpack.c.b16 %v1517, %v1513
        %v1746 = vpack.c.b16 %v1518, %v1514
        %v1747 = vpack.c.b16 %v1523, %v1519
        %v1748 = vpack.c.b16 %v1524, %v1520
        %v1749 = vpack.c.b16 %v1525, %v1521
        %v1750 = vpack.c.b16 %v1526, %v1522
        %v1751 = vpack.c.b16 %v1531, %v1527
        %v1752 = vpack.c.b16 %v1532, %v1528
        %v1753 = vpack.c.b16 %v1533, %v1529
        %v1754 = vpack.c.b16 %v1534, %v1530
        %v1755 = vpack.c.b16 %v1539, %v1535
        %v1756 = vpack.c.b16 %v1540, %v1536
        %v1757 = vpack.c.b16 %v1541, %v1537
        %v1758 = vpack.c.b16 %v1542, %v1538
        %v1759 = vpack.c.b16 %v1547, %v1543
        %v1760 = vpack.c.b16 %v1548, %v1544
        %v1761 = vpack.c.b16 %v1549, %v1545
        %v1762 = vpack.c.b16 %v1550, %v1546
        %v1763 = vpack.c.b16 %v1555, %v1551
        %v1764 = vpack.c.b16 %v1556, %v1552
        %v1765 = vpack.c.b16 %v1557, %v1553
        %v1766 = vpack.c.b16 %v1558, %v1554
        %v1767 = vpack.c.b16 %v1563, %v1559
        %v1768 = vpack.c.b16 %v1564, %v1560
        %v1769 = vpack.c.b16 %v1565, %v1561
        %v1770 = vpack.c.b16 %v1566, %v1562
        %v1771 = vpack.c.b16 %v1571, %v1567
        %v1772 = vpack.c.b16 %v1572, %v1568
        %v1773 = vpack.c.b16 %v1573, %v1569
        %v1774 = vpack.c.b16 %v1574, %v1570
        %v1775 = vpack.c.b16 %v1579, %v1575
        %v1776 = vpack.c.b16 %v1580, %v1576
        %v1777 = vpack.c.b16 %v1581, %v1577
        %v1778 = vpack.c.b16 %v1582, %v1578
        %v1779 = vpack.c.b16 %v1587, %v1583
        %v1780 = vpack.c.b16 %v1588, %v1584
        %v1781 = vpack.c.b16 %v1589, %v1585
        %v1782 = vpack.c.b16 %v1590, %v1586
        %v1783 = vpack.c.b16 %v1595, %v1591
        %v1784 = vpack.c.b16 %v1596, %v1592
        %v1785 = vpack.c.b16 %v1597, %v1593
        %v1786 = vpack.c.b16 %v1598, %v1594
        %v1787 = vpack.c.b16 %v1603, %v1599
        %v1788 = vpack.c.b16 %v1604, %v1600
        %v1789 = vpack.c.b16 %v1605, %v1601
        %v1790 = vpack.c.b16 %v1606, %v1602
        %v1791 = vpack.c.b16 %v1611, %v1607
        %v1792 = vpack.c.b16 %v1612, %v1608
        %v1793 = vpack.c.b16 %v1613, %v1609
        %v1794 = vpack.c.b16 %v1614, %v1610
        %v1795 = vpack.c.b16 %v1619, %v1615
        %v1796 = vpack.c.b16 %v1620, %v1616
        %v1797 = vpack.c.b16 %v1621, %v1617
        %v1798 = vpack.c.b16 %v1622, %v1618
        %v1799 = vpack.c.b16 %v1627, %v1623
        %v1800 = vpack.c.b16 %v1628, %v1624
        %v1801 = vpack.c.b16 %v1629, %v1625
        %v1802 = vpack.c.b16 %v1630, %v1626
        %v1803 = vpack.c.b16 %v1635, %v1631
        %v1804 = vpack.c.b16 %v1636, %v1632
        %v1805 = vpack.c.b16 %v1637, %v1633
        %v1806 = vpack.c.b16 %v1638, %v1634
        %v1807 = vpack.c.b16 %v1643, %v1639
        %v1808 = vpack.c.b16 %v1644, %v1640
        %v1809 = vpack.c.b16 %v1645, %v1641
        %v1810 = vpack.c.b16 %v1646, %v1642
        %v1811 = vpack.c.b16 %v1651, %v1647
        %v1812 = vpack.c.b16 %v1652, %v1648
        %v1813 = vpack.c.b16 %v1653, %v1649
        %v1814 = vpack.c.b16 %v1654, %v1650
        %v1815 = vpack.c.b16 %v1659, %v1655
        %v1816 = vpack.c.b16 %v1660, %v1656
        %v1817 = vpack.c.b16 %v1661, %v1657
        %v1818 = vpack.c.b16 %v1662, %v1658
        %v1819 = vpack.c.b16 %v1667, %v1663
        %v1820 = vpack.c.b16 %v1668, %v1664
        %v1821 = vpack.c.b16 %v1669, %v1665
        %v1822 = vpack.c.b16 %v1670, %v1666
        %v1823 = vpack.c.b16 %v1675, %v1671
        %v1824 = vpack.c.b16 %v1676, %v1672
        %v1825 = vpack.c.b16 %v1677, %v1673
        %v1826 = vpack.c.b16 %v1678, %v1674
        %v1827 = vpack.c.b16 %v1683, %v1679
        %v1828 = vpack.c.b16 %v1684, %v1680
        %v1829 = vpack.c.b16 %v1685, %v1681
        %v1830 = vpack.c.b16 %v1686, %v1682
        %v1831 = vpack.c.b16 %v1691, %v1687
        %v1832 = vpack.c.b16 %v1692, %v1688
        %v1833 = vpack.c.b16 %v1693, %v1689
        %v1834 = vpack.c.b16 %v1694, %v1690
        %v1835 = vpack.c.b16 %v1699, %v1695
        %v1836 = vpack.c.b16 %v1700, %v1696
        %v1837 = vpack.c.b16 %v1701, %v1697
        %v1838 = vpack.c.b16 %v1702, %v1698
        %v1839 = vpack.c.b16 %v1707, %v1703
        %v1840 = vpack.c.b16 %v1708, %v1704
        %v1841 = vpack.c.b16 %v1709, %v1705
        %v1842 = vpack.c.b16 %v1710, %v1706
        %v1843 = vpack.c.b16 %v1715, %v1711
        %v1844 = vpack.c.b16 %v1716, %v1712
        %v1845 = vpack.c.b16 %v1717, %v1713
        %v1846 = vpack.c.b16 %v1718, %v1714
        %1975 = vmatprep.subr.bf16.mxu0 %v1748
        %1976 = vmatpush1.bf16.msra.mxu0 %v1747
        %1977 = vmatprep.subr.bf16.mxu0 %v1744
        %1978 = vmatpush1.bf16.msra.mxu0 %v1743
        %1979 = vmatprep.subr.bf16.mxu0 %v1740
        %1980 = vmatpush1.bf16.msra.mxu0 %v1739
        %1981 = vmatprep.subr.bf16.mxu0 %v1736
        %1982 = vmatpush1.bf16.msra.mxu0 %v1735
        %1983 = vmatprep.subr.bf16.mxu0 %v1732
        %1984 = vmatpush1.bf16.msra.mxu0 %v1731
        %1985 = vmatprep.subr.bf16.mxu0 %v1728
        %1986 = vmatpush1.bf16.msra.mxu0 %v1727
        %1987 = vmatprep.subr.bf16.mxu0 %v1724
        %1988 = vmatpush1.bf16.msra.mxu0 %v1723
        %1989 = vmatprep.subr.bf16.mxu0 %v1720
        %1990 = vmatpush1.bf16.msra.mxu0 %v1719
        %1991 = vmatprep.subr.bf16.mxu0 %v1780
        %1992 = vmatpush2.bf16.msra.mxu0 %v1779
        %1993 = vmatprep.subr.bf16.mxu0 %v1776
        %1994 = vmatpush2.bf16.msra.mxu0 %v1775
        %1995 = vmatprep.subr.bf16.mxu0 %v1772
        %1996 = vmatpush2.bf16.msra.mxu0 %v1771
        %1997 = vmatprep.subr.bf16.mxu0 %v1768
        %1998 = vmatpush2.bf16.msra.mxu0 %v1767
        %1999 = vmatprep.subr.bf16.mxu0 %v1764
        %2000 = vmatpush2.bf16.msra.mxu0 %v1763
        %2001 = vmatprep.subr.bf16.mxu0 %v1760
        %2002 = vmatpush2.bf16.msra.mxu0 %v1759
        %2003 = vmatprep.subr.bf16.mxu0 %v1756
        %2004 = vmatpush2.bf16.msra.mxu0 %v1755
        %2005 = vmatprep.subr.bf16.mxu0 %v1752
        %2006 = vmatpush2.bf16.msra.mxu0 %v1751
        %2007 = vmatprep.mubr.bf16.mxu0 %v1080
        %2008 = vmatmul.mubr.bf16.gmra.mxu0 %v1079
        %v2009 = vpop.f32.mrf.mxu0
        %v2010 = vadd.f32 0.0, %v2009
        %v2011 = vpop.f32.mrf.mxu0
        %v2012 = vadd.f32 0.0, %v2011
        %v2013 = vpop.f32.mrf.mxu0
        %v2014 = vadd.f32 0.0, %v2013
        %v2015 = vpop.f32.mrf.mxu0
        %v2016 = vadd.f32 0.0, %v2015
        %2017 = vmatprep.mubr.bf16.mxu0 %v1084
        %2018 = vmatmul.mubr.bf16.gmra.mxu0 %v1083
        %v2019 = vpop.f32.mrf.mxu0
        %v2020 = vadd.f32 0.0, %v2019
        %v2021 = vpop.f32.mrf.mxu0
        %v2022 = vadd.f32 0.0, %v2021
        %v2023 = vpop.f32.mrf.mxu0
        %v2024 = vadd.f32 0.0, %v2023
        %v2025 = vpop.f32.mrf.mxu0
        %v2026 = vadd.f32 0.0, %v2025
        %2027 = vmatprep.mubr.bf16.mxu0 %v1088
        %2028 = vmatmul.mubr.bf16.gmra.mxu0 %v1087
        %v2029 = vpop.f32.mrf.mxu0
        %v2030 = vadd.f32 0.0, %v2029
        %v2031 = vpop.f32.mrf.mxu0
        %v2032 = vadd.f32 0.0, %v2031
        %v2033 = vpop.f32.mrf.mxu0
        %v2034 = vadd.f32 0.0, %v2033
        %v2035 = vpop.f32.mrf.mxu0
        %v2036 = vadd.f32 0.0, %v2035
        %2037 = vmatprep.mubr.bf16.mxu0 %v1092
        %2038 = vmatmul.mubr.bf16.gmra.mxu0 %v1091
        %v2039 = vpop.f32.mrf.mxu0
        %v2040 = vadd.f32 0.0, %v2039
        %v2041 = vpop.f32.mrf.mxu0
        %v2042 = vadd.f32 0.0, %v2041
        %v2043 = vpop.f32.mrf.mxu0
        %v2044 = vadd.f32 0.0, %v2043
        %v2045 = vpop.f32.mrf.mxu0
        %v2046 = vadd.f32 0.0, %v2045
        %2047 = vmatprep.mubr.bf16.mxu0 %v1096
        %2048 = vmatmul.mubr.bf16.gmra.mxu0 %v1095
        %v2049 = vpop.f32.mrf.mxu0
        %v2050 = vadd.f32 0.0, %v2049
        %v2051 = vpop.f32.mrf.mxu0
        %v2052 = vadd.f32 0.0, %v2051
        %v2053 = vpop.f32.mrf.mxu0
        %v2054 = vadd.f32 0.0, %v2053
        %v2055 = vpop.f32.mrf.mxu0
        %v2056 = vadd.f32 0.0, %v2055
        %2057 = vmatprep.mubr.bf16.mxu0 %v1100
        %2058 = vmatmul.mubr.bf16.gmra.mxu0 %v1099
        %v2059 = vpop.f32.mrf.mxu0
        %v2060 = vadd.f32 0.0, %v2059
        %v2061 = vpop.f32.mrf.mxu0
        %v2062 = vadd.f32 0.0, %v2061
        %v2063 = vpop.f32.mrf.mxu0
        %v2064 = vadd.f32 0.0, %v2063
        %v2065 = vpop.f32.mrf.mxu0
        %v2066 = vadd.f32 0.0, %v2065
        %2067 = vmatprep.mubr.bf16.mxu0 %v1104
        %2068 = vmatmul.mubr.bf16.gmra.mxu0 %v1103
        %v2069 = vpop.f32.mrf.mxu0
        %v2070 = vadd.f32 0.0, %v2069
        %v2071 = vpop.f32.mrf.mxu0
        %v2072 = vadd.f32 0.0, %v2071
        %v2073 = vpop.f32.mrf.mxu0
        %v2074 = vadd.f32 0.0, %v2073
        %v2075 = vpop.f32.mrf.mxu0
        %v2076 = vadd.f32 0.0, %v2075
        %2077 = vmatprep.mubr.bf16.mxu0 %v1108
        %2078 = vmatmul.mubr.bf16.gmra.mxu0 %v1107
        %v2079 = vpop.f32.mrf.mxu0
        %v2080 = vadd.f32 0.0, %v2079
        %v2081 = vpop.f32.mrf.mxu0
        %v2082 = vadd.f32 0.0, %v2081
        %v2083 = vpop.f32.mrf.mxu0
        %v2084 = vadd.f32 0.0, %v2083
        %v2085 = vpop.f32.mrf.mxu0
        %v2086 = vadd.f32 0.0, %v2085
        %2087 = vmatprep.mubr.bf16.mxu0 %v1112
        %2088 = vmatmul.mubr.bf16.gmra.mxu0 %v1111
        %v2089 = vpop.f32.mrf.mxu0
        %v2090 = vadd.f32 0.0, %v2089
        %v2091 = vpop.f32.mrf.mxu0
        %v2092 = vadd.f32 0.0, %v2091
        %v2093 = vpop.f32.mrf.mxu0
        %v2094 = vadd.f32 0.0, %v2093
        %v2095 = vpop.f32.mrf.mxu0
        %v2096 = vadd.f32 0.0, %v2095
        %2097 = vmatprep.mubr.bf16.mxu0 %v1116
        %2098 = vmatmul.mubr.bf16.gmra.mxu0 %v1115
        %v2099 = vpop.f32.mrf.mxu0
        %v2100 = vadd.f32 0.0, %v2099
        %v2101 = vpop.f32.mrf.mxu0
        %v2102 = vadd.f32 0.0, %v2101
        %v2103 = vpop.f32.mrf.mxu0
        %v2104 = vadd.f32 0.0, %v2103
        %v2105 = vpop.f32.mrf.mxu0
        %v2106 = vadd.f32 0.0, %v2105
        %2107 = vmatprep.mubr.bf16.mxu0 %v1120
        %2108 = vmatmul.mubr.bf16.gmra.mxu0 %v1119
        %v2109 = vpop.f32.mrf.mxu0
        %v2110 = vadd.f32 0.0, %v2109
        %v2111 = vpop.f32.mrf.mxu0
        %v2112 = vadd.f32 0.0, %v2111
        %v2113 = vpop.f32.mrf.mxu0
        %v2114 = vadd.f32 0.0, %v2113
        %v2115 = vpop.f32.mrf.mxu0
        %v2116 = vadd.f32 0.0, %v2115
        %2117 = vmatprep.mubr.bf16.mxu0 %v1124
        %2118 = vmatmul.mubr.bf16.gmra.mxu0 %v1123
        %v2119 = vpop.f32.mrf.mxu0
        %v2120 = vadd.f32 0.0, %v2119
        %v2121 = vpop.f32.mrf.mxu0
        %v2122 = vadd.f32 0.0, %v2121
        %v2123 = vpop.f32.mrf.mxu0
        %v2124 = vadd.f32 0.0, %v2123
        %v2125 = vpop.f32.mrf.mxu0
        %v2126 = vadd.f32 0.0, %v2125
        %2127 = vmatprep.mubr.bf16.mxu0 %v1128
        %2128 = vmatmul.mubr.bf16.gmra.mxu0 %v1127
        %v2129 = vpop.f32.mrf.mxu0
        %v2130 = vadd.f32 0.0, %v2129
        %v2131 = vpop.f32.mrf.mxu0
        %v2132 = vadd.f32 0.0, %v2131
        %v2133 = vpop.f32.mrf.mxu0
        %v2134 = vadd.f32 0.0, %v2133
        %v2135 = vpop.f32.mrf.mxu0
        %v2136 = vadd.f32 0.0, %v2135
        %2137 = vmatprep.mubr.bf16.mxu0 %v1132
        %2138 = vmatmul.mubr.bf16.gmra.mxu0 %v1131
        %v2139 = vpop.f32.mrf.mxu0
        %v2140 = vadd.f32 0.0, %v2139
        %v2141 = vpop.f32.mrf.mxu0
        %v2142 = vadd.f32 0.0, %v2141
        %v2143 = vpop.f32.mrf.mxu0
        %v2144 = vadd.f32 0.0, %v2143
        %v2145 = vpop.f32.mrf.mxu0
        %v2146 = vadd.f32 0.0, %v2145
        %2147 = vmatprep.mubr.bf16.mxu0 %v1136
        %2148 = vmatmul.mubr.bf16.gmra.mxu0 %v1135
        %v2149 = vpop.f32.mrf.mxu0
        %v2150 = vadd.f32 0.0, %v2149
        %v2151 = vpop.f32.mrf.mxu0
        %v2152 = vadd.f32 0.0, %v2151
        %v2153 = vpop.f32.mrf.mxu0
        %v2154 = vadd.f32 0.0, %v2153
        %v2155 = vpop.f32.mrf.mxu0
        %v2156 = vadd.f32 0.0, %v2155
        %2157 = vmatprep.mubr.bf16.mxu0 %v1140
        %2158 = vmatmul.mubr.bf16.gmra.mxu0 %v1139
        %v2159 = vpop.f32.mrf.mxu0
        %v2160 = vadd.f32 0.0, %v2159
        %v2161 = vpop.f32.mrf.mxu0
        %v2162 = vadd.f32 0.0, %v2161
        %v2163 = vpop.f32.mrf.mxu0
        %v2164 = vadd.f32 0.0, %v2163
        %v2165 = vpop.f32.mrf.mxu0
        %v2166 = vadd.f32 0.0, %v2165
        %2167 = vmatprep.mubr.bf16.mxu0 %v1144
        %2168 = vmatmul.mubr.bf16.gmra.mxu0 %v1143
        %v2169 = vpop.f32.mrf.mxu0
        %v2170 = vadd.f32 0.0, %v2169
        %v2171 = vpop.f32.mrf.mxu0
        %v2172 = vadd.f32 0.0, %v2171
        %v2173 = vpop.f32.mrf.mxu0
        %v2174 = vadd.f32 0.0, %v2173
        %v2175 = vpop.f32.mrf.mxu0
        %v2176 = vadd.f32 0.0, %v2175
        %2177 = vmatprep.mubr.bf16.mxu0 %v1148
        %2178 = vmatmul.mubr.bf16.gmra.mxu0 %v1147
        %v2179 = vpop.f32.mrf.mxu0
        %v2180 = vadd.f32 0.0, %v2179
        %v2181 = vpop.f32.mrf.mxu0
        %v2182 = vadd.f32 0.0, %v2181
        %v2183 = vpop.f32.mrf.mxu0
        %v2184 = vadd.f32 0.0, %v2183
        %v2185 = vpop.f32.mrf.mxu0
        %v2186 = vadd.f32 0.0, %v2185
        %2187 = vmatprep.mubr.bf16.mxu0 %v1152
        %2188 = vmatmul.mubr.bf16.gmra.mxu0 %v1151
        %v2189 = vpop.f32.mrf.mxu0
        %v2190 = vadd.f32 0.0, %v2189
        %v2191 = vpop.f32.mrf.mxu0
        %v2192 = vadd.f32 0.0, %v2191
        %v2193 = vpop.f32.mrf.mxu0
        %v2194 = vadd.f32 0.0, %v2193
        %v2195 = vpop.f32.mrf.mxu0
        %v2196 = vadd.f32 0.0, %v2195
        %2197 = vmatprep.mubr.bf16.mxu0 %v1156
        %2198 = vmatmul.mubr.bf16.gmra.mxu0 %v1155
        %v2199 = vpop.f32.mrf.mxu0
        %v2200 = vadd.f32 0.0, %v2199
        %v2201 = vpop.f32.mrf.mxu0
        %v2202 = vadd.f32 0.0, %v2201
        %v2203 = vpop.f32.mrf.mxu0
        %v2204 = vadd.f32 0.0, %v2203
        %v2205 = vpop.f32.mrf.mxu0
        %v2206 = vadd.f32 0.0, %v2205
        %2207 = vmatprep.mubr.bf16.mxu0 %v1160
        %2208 = vmatmul.mubr.bf16.gmra.mxu0 %v1159
        %v2209 = vpop.f32.mrf.mxu0
        %v2210 = vadd.f32 0.0, %v2209
        %v2211 = vpop.f32.mrf.mxu0
        %v2212 = vadd.f32 0.0, %v2211
        %v2213 = vpop.f32.mrf.mxu0
        %v2214 = vadd.f32 0.0, %v2213
        %v2215 = vpop.f32.mrf.mxu0
        %v2216 = vadd.f32 0.0, %v2215
        %2217 = vmatprep.mubr.bf16.mxu0 %v1164
        %2218 = vmatmul.mubr.bf16.gmra.mxu0 %v1163
        %v2219 = vpop.f32.mrf.mxu0
        %v2220 = vadd.f32 0.0, %v2219
        %v2221 = vpop.f32.mrf.mxu0
        %v2222 = vadd.f32 0.0, %v2221
        %v2223 = vpop.f32.mrf.mxu0
        %v2224 = vadd.f32 0.0, %v2223
        %v2225 = vpop.f32.mrf.mxu0
        %v2226 = vadd.f32 0.0, %v2225
        %2227 = vmatprep.mubr.bf16.mxu0 %v1168
        %2228 = vmatmul.mubr.bf16.gmra.mxu0 %v1167
        %v2229 = vpop.f32.mrf.mxu0
        %v2230 = vadd.f32 0.0, %v2229
        %v2231 = vpop.f32.mrf.mxu0
        %v2232 = vadd.f32 0.0, %v2231
        %v2233 = vpop.f32.mrf.mxu0
        %v2234 = vadd.f32 0.0, %v2233
        %v2235 = vpop.f32.mrf.mxu0
        %v2236 = vadd.f32 0.0, %v2235
        %2237 = vmatprep.mubr.bf16.mxu0 %v1172
        %2238 = vmatmul.mubr.bf16.gmra.mxu0 %v1171
        %v2239 = vpop.f32.mrf.mxu0
        %v2240 = vadd.f32 0.0, %v2239
        %v2241 = vpop.f32.mrf.mxu0
        %v2242 = vadd.f32 0.0, %v2241
        %v2243 = vpop.f32.mrf.mxu0
        %v2244 = vadd.f32 0.0, %v2243
        %v2245 = vpop.f32.mrf.mxu0
        %v2246 = vadd.f32 0.0, %v2245
        %2247 = vmatprep.mubr.bf16.mxu0 %v1176
        %2248 = vmatmul.mubr.bf16.gmra.mxu0 %v1175
        %v2249 = vpop.f32.mrf.mxu0
        %v2250 = vadd.f32 0.0, %v2249
        %v2251 = vpop.f32.mrf.mxu0
        %v2252 = vadd.f32 0.0, %v2251
        %v2253 = vpop.f32.mrf.mxu0
        %v2254 = vadd.f32 0.0, %v2253
        %v2255 = vpop.f32.mrf.mxu0
        %v2256 = vadd.f32 0.0, %v2255
        %2257 = vmatprep.mubr.bf16.mxu0 %v1180
        %2258 = vmatmul.mubr.bf16.gmra.mxu0 %v1179
        %v2259 = vpop.f32.mrf.mxu0
        %v2260 = vadd.f32 0.0, %v2259
        %v2261 = vpop.f32.mrf.mxu0
        %v2262 = vadd.f32 0.0, %v2261
        %v2263 = vpop.f32.mrf.mxu0
        %v2264 = vadd.f32 0.0, %v2263
        %v2265 = vpop.f32.mrf.mxu0
        %v2266 = vadd.f32 0.0, %v2265
        %2267 = vmatprep.mubr.bf16.mxu0 %v1184
        %2268 = vmatmul.mubr.bf16.gmra.mxu0 %v1183
        %v2269 = vpop.f32.mrf.mxu0
        %v2270 = vadd.f32 0.0, %v2269
        %v2271 = vpop.f32.mrf.mxu0
        %v2272 = vadd.f32 0.0, %v2271
        %v2273 = vpop.f32.mrf.mxu0
        %v2274 = vadd.f32 0.0, %v2273
        %v2275 = vpop.f32.mrf.mxu0
        %v2276 = vadd.f32 0.0, %v2275
        %2277 = vmatprep.mubr.bf16.mxu0 %v1188
        %2278 = vmatmul.mubr.bf16.gmra.mxu0 %v1187
        %v2279 = vpop.f32.mrf.mxu0
        %v2280 = vadd.f32 0.0, %v2279
        %v2281 = vpop.f32.mrf.mxu0
        %v2282 = vadd.f32 0.0, %v2281
        %v2283 = vpop.f32.mrf.mxu0
        %v2284 = vadd.f32 0.0, %v2283
        %v2285 = vpop.f32.mrf.mxu0
        %v2286 = vadd.f32 0.0, %v2285
        %2287 = vmatprep.mubr.bf16.mxu0 %v1192
        %2288 = vmatmul.mubr.bf16.gmra.mxu0 %v1191
        %v2289 = vpop.f32.mrf.mxu0
        %v2290 = vadd.f32 0.0, %v2289
        %v2291 = vpop.f32.mrf.mxu0
        %v2292 = vadd.f32 0.0, %v2291
        %v2293 = vpop.f32.mrf.mxu0
        %v2294 = vadd.f32 0.0, %v2293
        %v2295 = vpop.f32.mrf.mxu0
        %v2296 = vadd.f32 0.0, %v2295
        %2297 = vmatprep.mubr.bf16.mxu0 %v1196
        %2298 = vmatmul.mubr.bf16.gmra.mxu0 %v1195
        %v2299 = vpop.f32.mrf.mxu0
        %v2300 = vadd.f32 0.0, %v2299
        %v2301 = vpop.f32.mrf.mxu0
        %v2302 = vadd.f32 0.0, %v2301
        %v2303 = vpop.f32.mrf.mxu0
        %v2304 = vadd.f32 0.0, %v2303
        %v2305 = vpop.f32.mrf.mxu0
        %v2306 = vadd.f32 0.0, %v2305
        %2307 = vmatprep.mubr.bf16.mxu0 %v1200
        %2308 = vmatmul.mubr.bf16.gmra.mxu0 %v1199
        %v2309 = vpop.f32.mrf.mxu0
        %v2310 = vadd.f32 0.0, %v2309
        %v2311 = vpop.f32.mrf.mxu0
        %v2312 = vadd.f32 0.0, %v2311
        %v2313 = vpop.f32.mrf.mxu0
        %v2314 = vadd.f32 0.0, %v2313
        %v2315 = vpop.f32.mrf.mxu0
        %v2316 = vadd.f32 0.0, %v2315
        %2317 = vmatprep.mubr.bf16.mxu0 %v1204
        %2318 = vmatmul.mubr.bf16.gmra.mxu0 %v1203
        %v2319 = vpop.f32.mrf.mxu0
        %v2320 = vadd.f32 0.0, %v2319
        %v2321 = vpop.f32.mrf.mxu0
        %v2322 = vadd.f32 0.0, %v2321
        %v2323 = vpop.f32.mrf.mxu0
        %v2324 = vadd.f32 0.0, %v2323
        %v2325 = vpop.f32.mrf.mxu0
        %v2326 = vadd.f32 0.0, %v2325
        %2327 = vdwg.mxu0
        %2328 = vmatprep.subr.bf16.mxu0 %v1812
        %2329 = vmatpush1.bf16.msra.mxu0 %v1811
        %2330 = vmatprep.subr.bf16.mxu0 %v1808
        %2331 = vmatpush1.bf16.msra.mxu0 %v1807
        %2332 = vmatprep.subr.bf16.mxu0 %v1804
        %2333 = vmatpush1.bf16.msra.mxu0 %v1803
        %2334 = vmatprep.subr.bf16.mxu0 %v1800
        %2335 = vmatpush1.bf16.msra.mxu0 %v1799
        %2336 = vmatprep.subr.bf16.mxu0 %v1796
        %2337 = vmatpush1.bf16.msra.mxu0 %v1795
        %2338 = vmatprep.subr.bf16.mxu0 %v1792
        %2339 = vmatpush1.bf16.msra.mxu0 %v1791
        %2340 = vmatprep.subr.bf16.mxu0 %v1788
        %2341 = vmatpush1.bf16.msra.mxu0 %v1787
        %2342 = vmatprep.subr.bf16.mxu0 %v1784
        %2343 = vmatpush1.bf16.msra.mxu0 %v1783
        %2344 = vmatprep.subr.bf16.mxu0 %v1844
        %2345 = vmatpush2.bf16.msra.mxu0 %v1843
        %2346 = vmatprep.subr.bf16.mxu0 %v1840
        %2347 = vmatpush2.bf16.msra.mxu0 %v1839
        %2348 = vmatprep.subr.bf16.mxu0 %v1836
        %2349 = vmatpush2.bf16.msra.mxu0 %v1835
        %2350 = vmatprep.subr.bf16.mxu0 %v1832
        %2351 = vmatpush2.bf16.msra.mxu0 %v1831
        %2352 = vmatprep.subr.bf16.mxu0 %v1828
        %2353 = vmatpush2.bf16.msra.mxu0 %v1827
        %2354 = vmatprep.subr.bf16.mxu0 %v1824
        %2355 = vmatpush2.bf16.msra.mxu0 %v1823
        %2356 = vmatprep.subr.bf16.mxu0 %v1820
        %2357 = vmatpush2.bf16.msra.mxu0 %v1819
        %2358 = vmatprep.subr.bf16.mxu0 %v1816
        %2359 = vmatpush2.bf16.msra.mxu0 %v1815
        %2360 = vmatprep.mubr.bf16.mxu0 %v1082
        %2361 = vmatmul.mubr.bf16.gmra.mxu0 %v1081
        %v2362 = vpop.f32.mrf.mxu0
        %v2363 = vadd.f32 %v2010, %v2362
        %v2364 = vpop.f32.mrf.mxu0
        %v2365 = vadd.f32 %v2012, %v2364
        %v2366 = vpop.f32.mrf.mxu0
        %v2367 = vadd.f32 %v2014, %v2366
        %v2368 = vpop.f32.mrf.mxu0
        %v2369 = vadd.f32 %v2016, %v2368
        %2370 = vmatprep.mubr.bf16.mxu0 %v1086
        %2371 = vmatmul.mubr.bf16.gmra.mxu0 %v1085
        %v2372 = vpop.f32.mrf.mxu0
        %v2373 = vadd.f32 %v2020, %v2372
        %v2374 = vpop.f32.mrf.mxu0
        %v2375 = vadd.f32 %v2022, %v2374
        %v2376 = vpop.f32.mrf.mxu0
        %v2377 = vadd.f32 %v2024, %v2376
        %v2378 = vpop.f32.mrf.mxu0
        %v2379 = vadd.f32 %v2026, %v2378
        %2380 = vmatprep.mubr.bf16.mxu0 %v1090
        %2381 = vmatmul.mubr.bf16.gmra.mxu0 %v1089
        %v2382 = vpop.f32.mrf.mxu0
        %v2383 = vadd.f32 %v2030, %v2382
        %v2384 = vpop.f32.mrf.mxu0
        %v2385 = vadd.f32 %v2032, %v2384
        %v2386 = vpop.f32.mrf.mxu0
        %v2387 = vadd.f32 %v2034, %v2386
        %v2388 = vpop.f32.mrf.mxu0
        %v2389 = vadd.f32 %v2036, %v2388
        %2390 = vmatprep.mubr.bf16.mxu0 %v1094
        %2391 = vmatmul.mubr.bf16.gmra.mxu0 %v1093
        %v2392 = vpop.f32.mrf.mxu0
        %v2393 = vadd.f32 %v2040, %v2392
        %v2394 = vpop.f32.mrf.mxu0
        %v2395 = vadd.f32 %v2042, %v2394
        %v2396 = vpop.f32.mrf.mxu0
        %v2397 = vadd.f32 %v2044, %v2396
        %v2398 = vpop.f32.mrf.mxu0
        %v2399 = vadd.f32 %v2046, %v2398
        %2400 = vmatprep.mubr.bf16.mxu0 %v1098
        %2401 = vmatmul.mubr.bf16.gmra.mxu0 %v1097
        %v2402 = vpop.f32.mrf.mxu0
        %v2403 = vadd.f32 %v2050, %v2402
        %v2404 = vpop.f32.mrf.mxu0
        %v2405 = vadd.f32 %v2052, %v2404
        %v2406 = vpop.f32.mrf.mxu0
        %v2407 = vadd.f32 %v2054, %v2406
        %v2408 = vpop.f32.mrf.mxu0
        %v2409 = vadd.f32 %v2056, %v2408
        %2410 = vmatprep.mubr.bf16.mxu0 %v1102
        %2411 = vmatmul.mubr.bf16.gmra.mxu0 %v1101
        %v2412 = vpop.f32.mrf.mxu0
        %v2413 = vadd.f32 %v2060, %v2412
        %v2414 = vpop.f32.mrf.mxu0
        %v2415 = vadd.f32 %v2062, %v2414
        %v2416 = vpop.f32.mrf.mxu0
        %v2417 = vadd.f32 %v2064, %v2416
        %v2418 = vpop.f32.mrf.mxu0
        %v2419 = vadd.f32 %v2066, %v2418
        %2420 = vmatprep.mubr.bf16.mxu0 %v1106
        %2421 = vmatmul.mubr.bf16.gmra.mxu0 %v1105
        %v2422 = vpop.f32.mrf.mxu0
        %v2423 = vadd.f32 %v2070, %v2422
        %v2424 = vpop.f32.mrf.mxu0
        %v2425 = vadd.f32 %v2072, %v2424
        %v2426 = vpop.f32.mrf.mxu0
        %v2427 = vadd.f32 %v2074, %v2426
        %v2428 = vpop.f32.mrf.mxu0
        %v2429 = vadd.f32 %v2076, %v2428
        %2430 = vmatprep.mubr.bf16.mxu0 %v1110
        %2431 = vmatmul.mubr.bf16.gmra.mxu0 %v1109
        %v2432 = vpop.f32.mrf.mxu0
        %v2433 = vadd.f32 %v2080, %v2432
        %v2434 = vpop.f32.mrf.mxu0
        %v2435 = vadd.f32 %v2082, %v2434
        %v2436 = vpop.f32.mrf.mxu0
        %v2437 = vadd.f32 %v2084, %v2436
        %v2438 = vpop.f32.mrf.mxu0
        %v2439 = vadd.f32 %v2086, %v2438
        %2440 = vmatprep.mubr.bf16.mxu0 %v1114
        %2441 = vmatmul.mubr.bf16.gmra.mxu0 %v1113
        %v2442 = vpop.f32.mrf.mxu0
        %v2443 = vadd.f32 %v2090, %v2442
        %v2444 = vpop.f32.mrf.mxu0
        %v2445 = vadd.f32 %v2092, %v2444
        %v2446 = vpop.f32.mrf.mxu0
        %v2447 = vadd.f32 %v2094, %v2446
        %v2448 = vpop.f32.mrf.mxu0
        %v2449 = vadd.f32 %v2096, %v2448
        %2450 = vmatprep.mubr.bf16.mxu0 %v1118
        %2451 = vmatmul.mubr.bf16.gmra.mxu0 %v1117
        %v2452 = vpop.f32.mrf.mxu0
        %v2453 = vadd.f32 %v2100, %v2452
        %v2454 = vpop.f32.mrf.mxu0
        %v2455 = vadd.f32 %v2102, %v2454
        %v2456 = vpop.f32.mrf.mxu0
        %v2457 = vadd.f32 %v2104, %v2456
        %v2458 = vpop.f32.mrf.mxu0
        %v2459 = vadd.f32 %v2106, %v2458
        %2460 = vmatprep.mubr.bf16.mxu0 %v1122
        %2461 = vmatmul.mubr.bf16.gmra.mxu0 %v1121
        %v2462 = vpop.f32.mrf.mxu0
        %v2463 = vadd.f32 %v2110, %v2462
        %v2464 = vpop.f32.mrf.mxu0
        %v2465 = vadd.f32 %v2112, %v2464
        %v2466 = vpop.f32.mrf.mxu0
        %v2467 = vadd.f32 %v2114, %v2466
        %v2468 = vpop.f32.mrf.mxu0
        %v2469 = vadd.f32 %v2116, %v2468
        %2470 = vmatprep.mubr.bf16.mxu0 %v1126
        %2471 = vmatmul.mubr.bf16.gmra.mxu0 %v1125
        %v2472 = vpop.f32.mrf.mxu0
        %v2473 = vadd.f32 %v2120, %v2472
        %v2474 = vpop.f32.mrf.mxu0
        %v2475 = vadd.f32 %v2122, %v2474
        %v2476 = vpop.f32.mrf.mxu0
        %v2477 = vadd.f32 %v2124, %v2476
        %v2478 = vpop.f32.mrf.mxu0
        %v2479 = vadd.f32 %v2126, %v2478
        %2480 = vmatprep.mubr.bf16.mxu0 %v1130
        %2481 = vmatmul.mubr.bf16.gmra.mxu0 %v1129
        %v2482 = vpop.f32.mrf.mxu0
        %v2483 = vadd.f32 %v2130, %v2482
        %v2484 = vpop.f32.mrf.mxu0
        %v2485 = vadd.f32 %v2132, %v2484
        %v2486 = vpop.f32.mrf.mxu0
        %v2487 = vadd.f32 %v2134, %v2486
        %v2488 = vpop.f32.mrf.mxu0
        %v2489 = vadd.f32 %v2136, %v2488
        %2490 = vmatprep.mubr.bf16.mxu0 %v1134
        %2491 = vmatmul.mubr.bf16.gmra.mxu0 %v1133
        %v2492 = vpop.f32.mrf.mxu0
        %v2493 = vadd.f32 %v2140, %v2492
        %v2494 = vpop.f32.mrf.mxu0
        %v2495 = vadd.f32 %v2142, %v2494
        %v2496 = vpop.f32.mrf.mxu0
        %v2497 = vadd.f32 %v2144, %v2496
        %v2498 = vpop.f32.mrf.mxu0
        %v2499 = vadd.f32 %v2146, %v2498
        %2500 = vmatprep.mubr.bf16.mxu0 %v1138
        %2501 = vmatmul.mubr.bf16.gmra.mxu0 %v1137
        %v2502 = vpop.f32.mrf.mxu0
        %v2503 = vadd.f32 %v2150, %v2502
        %v2504 = vpop.f32.mrf.mxu0
        %v2505 = vadd.f32 %v2152, %v2504
        %v2506 = vpop.f32.mrf.mxu0
        %v2507 = vadd.f32 %v2154, %v2506
        %v2508 = vpop.f32.mrf.mxu0
        %v2509 = vadd.f32 %v2156, %v2508
        %2510 = vmatprep.mubr.bf16.mxu0 %v1142
        %2511 = vmatmul.mubr.bf16.gmra.mxu0 %v1141
        %v2512 = vpop.f32.mrf.mxu0
        %v2513 = vadd.f32 %v2160, %v2512
        %v2514 = vpop.f32.mrf.mxu0
        %v2515 = vadd.f32 %v2162, %v2514
        %v2516 = vpop.f32.mrf.mxu0
        %v2517 = vadd.f32 %v2164, %v2516
        %v2518 = vpop.f32.mrf.mxu0
        %v2519 = vadd.f32 %v2166, %v2518
        %2520 = vmatprep.mubr.bf16.mxu0 %v1146
        %2521 = vmatmul.mubr.bf16.gmra.mxu0 %v1145
        %v2522 = vpop.f32.mrf.mxu0
        %v2523 = vadd.f32 %v2170, %v2522
        %v2524 = vpop.f32.mrf.mxu0
        %v2525 = vadd.f32 %v2172, %v2524
        %v2526 = vpop.f32.mrf.mxu0
        %v2527 = vadd.f32 %v2174, %v2526
        %v2528 = vpop.f32.mrf.mxu0
        %v2529 = vadd.f32 %v2176, %v2528
        %2530 = vmatprep.mubr.bf16.mxu0 %v1150
        %2531 = vmatmul.mubr.bf16.gmra.mxu0 %v1149
        %v2532 = vpop.f32.mrf.mxu0
        %v2533 = vadd.f32 %v2180, %v2532
        %v2534 = vpop.f32.mrf.mxu0
        %v2535 = vadd.f32 %v2182, %v2534
        %v2536 = vpop.f32.mrf.mxu0
        %v2537 = vadd.f32 %v2184, %v2536
        %v2538 = vpop.f32.mrf.mxu0
        %v2539 = vadd.f32 %v2186, %v2538
        %2540 = vmatprep.mubr.bf16.mxu0 %v1154
        %2541 = vmatmul.mubr.bf16.gmra.mxu0 %v1153
        %v2542 = vpop.f32.mrf.mxu0
        %v2543 = vadd.f32 %v2190, %v2542
        %v2544 = vpop.f32.mrf.mxu0
        %v2545 = vadd.f32 %v2192, %v2544
        %v2546 = vpop.f32.mrf.mxu0
        %v2547 = vadd.f32 %v2194, %v2546
        %v2548 = vpop.f32.mrf.mxu0
        %v2549 = vadd.f32 %v2196, %v2548
        %2550 = vmatprep.mubr.bf16.mxu0 %v1158
        %2551 = vmatmul.mubr.bf16.gmra.mxu0 %v1157
        %v2552 = vpop.f32.mrf.mxu0
        %v2553 = vadd.f32 %v2200, %v2552
        %v2554 = vpop.f32.mrf.mxu0
        %v2555 = vadd.f32 %v2202, %v2554
        %v2556 = vpop.f32.mrf.mxu0
        %v2557 = vadd.f32 %v2204, %v2556
        %v2558 = vpop.f32.mrf.mxu0
        %v2559 = vadd.f32 %v2206, %v2558
        %2560 = vmatprep.mubr.bf16.mxu0 %v1162
        %2561 = vmatmul.mubr.bf16.gmra.mxu0 %v1161
        %v2562 = vpop.f32.mrf.mxu0
        %v2563 = vadd.f32 %v2210, %v2562
        %v2564 = vpop.f32.mrf.mxu0
        %v2565 = vadd.f32 %v2212, %v2564
        %v2566 = vpop.f32.mrf.mxu0
        %v2567 = vadd.f32 %v2214, %v2566
        %v2568 = vpop.f32.mrf.mxu0
        %v2569 = vadd.f32 %v2216, %v2568
        %2570 = vmatprep.mubr.bf16.mxu0 %v1166
        %2571 = vmatmul.mubr.bf16.gmra.mxu0 %v1165
        %v2572 = vpop.f32.mrf.mxu0
        %v2573 = vadd.f32 %v2220, %v2572
        %v2574 = vpop.f32.mrf.mxu0
        %v2575 = vadd.f32 %v2222, %v2574
        %v2576 = vpop.f32.mrf.mxu0
        %v2577 = vadd.f32 %v2224, %v2576
        %v2578 = vpop.f32.mrf.mxu0
        %v2579 = vadd.f32 %v2226, %v2578
        %2580 = vmatprep.mubr.bf16.mxu0 %v1170
        %2581 = vmatmul.mubr.bf16.gmra.mxu0 %v1169
        %v2582 = vpop.f32.mrf.mxu0
        %v2583 = vadd.f32 %v2230, %v2582
        %v2584 = vpop.f32.mrf.mxu0
        %v2585 = vadd.f32 %v2232, %v2584
        %v2586 = vpop.f32.mrf.mxu0
        %v2587 = vadd.f32 %v2234, %v2586
        %v2588 = vpop.f32.mrf.mxu0
        %v2589 = vadd.f32 %v2236, %v2588
        %2590 = vmatprep.mubr.bf16.mxu0 %v1174
        %2591 = vmatmul.mubr.bf16.gmra.mxu0 %v1173
        %v2592 = vpop.f32.mrf.mxu0
        %v2593 = vadd.f32 %v2240, %v2592
        %v2594 = vpop.f32.mrf.mxu0
        %v2595 = vadd.f32 %v2242, %v2594
        %v2596 = vpop.f32.mrf.mxu0
        %v2597 = vadd.f32 %v2244, %v2596
        %v2598 = vpop.f32.mrf.mxu0
        %v2599 = vadd.f32 %v2246, %v2598
        %2600 = vmatprep.mubr.bf16.mxu0 %v1178
        %2601 = vmatmul.mubr.bf16.gmra.mxu0 %v1177
        %v2602 = vpop.f32.mrf.mxu0
        %v2603 = vadd.f32 %v2250, %v2602
        %v2604 = vpop.f32.mrf.mxu0
        %v2605 = vadd.f32 %v2252, %v2604
        %v2606 = vpop.f32.mrf.mxu0
        %v2607 = vadd.f32 %v2254, %v2606
        %v2608 = vpop.f32.mrf.mxu0
        %v2609 = vadd.f32 %v2256, %v2608
        %2610 = vmatprep.mubr.bf16.mxu0 %v1182
        %2611 = vmatmul.mubr.bf16.gmra.mxu0 %v1181
        %v2612 = vpop.f32.mrf.mxu0
        %v2613 = vadd.f32 %v2260, %v2612
        %v2614 = vpop.f32.mrf.mxu0
        %v2615 = vadd.f32 %v2262, %v2614
        %v2616 = vpop.f32.mrf.mxu0
        %v2617 = vadd.f32 %v2264, %v2616
        %v2618 = vpop.f32.mrf.mxu0
        %v2619 = vadd.f32 %v2266, %v2618
        %2620 = vmatprep.mubr.bf16.mxu0 %v1186
        %2621 = vmatmul.mubr.bf16.gmra.mxu0 %v1185
        %v2622 = vpop.f32.mrf.mxu0
        %v2623 = vadd.f32 %v2270, %v2622
        %v2624 = vpop.f32.mrf.mxu0
        %v2625 = vadd.f32 %v2272, %v2624
        %v2626 = vpop.f32.mrf.mxu0
        %v2627 = vadd.f32 %v2274, %v2626
        %v2628 = vpop.f32.mrf.mxu0
        %v2629 = vadd.f32 %v2276, %v2628
        %2630 = vmatprep.mubr.bf16.mxu0 %v1190
        %2631 = vmatmul.mubr.bf16.gmra.mxu0 %v1189
        %v2632 = vpop.f32.mrf.mxu0
        %v2633 = vadd.f32 %v2280, %v2632
        %v2634 = vpop.f32.mrf.mxu0
        %v2635 = vadd.f32 %v2282, %v2634
        %v2636 = vpop.f32.mrf.mxu0
        %v2637 = vadd.f32 %v2284, %v2636
        %v2638 = vpop.f32.mrf.mxu0
        %v2639 = vadd.f32 %v2286, %v2638
        %2640 = vmatprep.mubr.bf16.mxu0 %v1194
        %2641 = vmatmul.mubr.bf16.gmra.mxu0 %v1193
        %v2642 = vpop.f32.mrf.mxu0
        %v2643 = vadd.f32 %v2290, %v2642
        %v2644 = vpop.f32.mrf.mxu0
        %v2645 = vadd.f32 %v2292, %v2644
        %v2646 = vpop.f32.mrf.mxu0
        %v2647 = vadd.f32 %v2294, %v2646
        %v2648 = vpop.f32.mrf.mxu0
        %v2649 = vadd.f32 %v2296, %v2648
        %2650 = vmatprep.mubr.bf16.mxu0 %v1198
        %2651 = vmatmul.mubr.bf16.gmra.mxu0 %v1197
        %v2652 = vpop.f32.mrf.mxu0
        %v2653 = vadd.f32 %v2300, %v2652
        %v2654 = vpop.f32.mrf.mxu0
        %v2655 = vadd.f32 %v2302, %v2654
        %v2656 = vpop.f32.mrf.mxu0
        %v2657 = vadd.f32 %v2304, %v2656
        %v2658 = vpop.f32.mrf.mxu0
        %v2659 = vadd.f32 %v2306, %v2658
        %2660 = vmatprep.mubr.bf16.mxu0 %v1202
        %2661 = vmatmul.mubr.bf16.gmra.mxu0 %v1201
        %v2662 = vpop.f32.mrf.mxu0
        %v2663 = vadd.f32 %v2310, %v2662
        %v2664 = vpop.f32.mrf.mxu0
        %v2665 = vadd.f32 %v2312, %v2664
        %v2666 = vpop.f32.mrf.mxu0
        %v2667 = vadd.f32 %v2314, %v2666
        %v2668 = vpop.f32.mrf.mxu0
        %v2669 = vadd.f32 %v2316, %v2668
        %2670 = vmatprep.mubr.bf16.mxu0 %v1206
        %2671 = vmatmul.mubr.bf16.gmra.mxu0 %v1205
        %v2672 = vpop.f32.mrf.mxu0
        %v2673 = vadd.f32 %v2320, %v2672
        %v2674 = vpop.f32.mrf.mxu0
        %v2675 = vadd.f32 %v2322, %v2674
        %v2676 = vpop.f32.mrf.mxu0
        %v2677 = vadd.f32 %v2324, %v2676
        %v2678 = vpop.f32.mrf.mxu0
        %v2679 = vadd.f32 %v2326, %v2678
        %2680 = vdwg.mxu0
        %2681 = vmatprep.subr.bf16.mxu0 %v1750
        %2682 = vmatpush1.bf16.msra.mxu0 %v1749
        %2683 = vmatprep.subr.bf16.mxu0 %v1746
        %2684 = vmatpush1.bf16.msra.mxu0 %v1745
        %2685 = vmatprep.subr.bf16.mxu0 %v1742
        %2686 = vmatpush1.bf16.msra.mxu0 %v1741
        %2687 = vmatprep.subr.bf16.mxu0 %v1738
        %2688 = vmatpush1.bf16.msra.mxu0 %v1737
        %2689 = vmatprep.subr.bf16.mxu0 %v1734
        %2690 = vmatpush1.bf16.msra.mxu0 %v1733
        %2691 = vmatprep.subr.bf16.mxu0 %v1730
        %2692 = vmatpush1.bf16.msra.mxu0 %v1729
        %2693 = vmatprep.subr.bf16.mxu0 %v1726
        %2694 = vmatpush1.bf16.msra.mxu0 %v1725
        %2695 = vmatprep.subr.bf16.mxu0 %v1722
        %2696 = vmatpush1.bf16.msra.mxu0 %v1721
        %2697 = vmatprep.subr.bf16.mxu0 %v1782
        %2698 = vmatpush2.bf16.msra.mxu0 %v1781
        %2699 = vmatprep.subr.bf16.mxu0 %v1778
        %2700 = vmatpush2.bf16.msra.mxu0 %v1777
        %2701 = vmatprep.subr.bf16.mxu0 %v1774
        %2702 = vmatpush2.bf16.msra.mxu0 %v1773
        %2703 = vmatprep.subr.bf16.mxu0 %v1770
        %2704 = vmatpush2.bf16.msra.mxu0 %v1769
        %2705 = vmatprep.subr.bf16.mxu0 %v1766
        %2706 = vmatpush2.bf16.msra.mxu0 %v1765
        %2707 = vmatprep.subr.bf16.mxu0 %v1762
        %2708 = vmatpush2.bf16.msra.mxu0 %v1761
        %2709 = vmatprep.subr.bf16.mxu0 %v1758
        %2710 = vmatpush2.bf16.msra.mxu0 %v1757
        %2711 = vmatprep.subr.bf16.mxu0 %v1754
        %2712 = vmatpush2.bf16.msra.mxu0 %v1753
        %2713 = vmatprep.mubr.bf16.mxu0 %v1080
        %2714 = vmatmul.mubr.bf16.gmra.mxu0 %v1079
        %v2715 = vpop.f32.mrf.mxu0
        %v2716 = vadd.f32 0.0, %v2715
        %v2717 = vpop.f32.mrf.mxu0
        %v2718 = vadd.f32 0.0, %v2717
        %v2719 = vpop.f32.mrf.mxu0
        %v2720 = vadd.f32 0.0, %v2719
        %v2721 = vpop.f32.mrf.mxu0
        %v2722 = vadd.f32 0.0, %v2721
        %2723 = vmatprep.mubr.bf16.mxu0 %v1084
        %2724 = vmatmul.mubr.bf16.gmra.mxu0 %v1083
        %v2725 = vpop.f32.mrf.mxu0
        %v2726 = vadd.f32 0.0, %v2725
        %v2727 = vpop.f32.mrf.mxu0
        %v2728 = vadd.f32 0.0, %v2727
        %v2729 = vpop.f32.mrf.mxu0
        %v2730 = vadd.f32 0.0, %v2729
        %v2731 = vpop.f32.mrf.mxu0
        %v2732 = vadd.f32 0.0, %v2731
        %2733 = vmatprep.mubr.bf16.mxu0 %v1088
        %2734 = vmatmul.mubr.bf16.gmra.mxu0 %v1087
        %v2735 = vpop.f32.mrf.mxu0
        %v2736 = vadd.f32 0.0, %v2735
        %v2737 = vpop.f32.mrf.mxu0
        %v2738 = vadd.f32 0.0, %v2737
        %v2739 = vpop.f32.mrf.mxu0
        %v2740 = vadd.f32 0.0, %v2739
        %v2741 = vpop.f32.mrf.mxu0
        %v2742 = vadd.f32 0.0, %v2741
        %2743 = vmatprep.mubr.bf16.mxu0 %v1092
        %2744 = vmatmul.mubr.bf16.gmra.mxu0 %v1091
        %v2745 = vpop.f32.mrf.mxu0
        %v2746 = vadd.f32 0.0, %v2745
        %v2747 = vpop.f32.mrf.mxu0
        %v2748 = vadd.f32 0.0, %v2747
        %v2749 = vpop.f32.mrf.mxu0
        %v2750 = vadd.f32 0.0, %v2749
        %v2751 = vpop.f32.mrf.mxu0
        %v2752 = vadd.f32 0.0, %v2751
        %2753 = vmatprep.mubr.bf16.mxu0 %v1096
        %2754 = vmatmul.mubr.bf16.gmra.mxu0 %v1095
        %v2755 = vpop.f32.mrf.mxu0
        %v2756 = vadd.f32 0.0, %v2755
        %v2757 = vpop.f32.mrf.mxu0
        %v2758 = vadd.f32 0.0, %v2757
        %v2759 = vpop.f32.mrf.mxu0
        %v2760 = vadd.f32 0.0, %v2759
        %v2761 = vpop.f32.mrf.mxu0
        %v2762 = vadd.f32 0.0, %v2761
        %2763 = vmatprep.mubr.bf16.mxu0 %v1100
        %2764 = vmatmul.mubr.bf16.gmra.mxu0 %v1099
        %v2765 = vpop.f32.mrf.mxu0
        %v2766 = vadd.f32 0.0, %v2765
        %v2767 = vpop.f32.mrf.mxu0
        %v2768 = vadd.f32 0.0, %v2767
        %v2769 = vpop.f32.mrf.mxu0
        %v2770 = vadd.f32 0.0, %v2769
        %v2771 = vpop.f32.mrf.mxu0
        %v2772 = vadd.f32 0.0, %v2771
        %2773 = vmatprep.mubr.bf16.mxu0 %v1104
        %2774 = vmatmul.mubr.bf16.gmra.mxu0 %v1103
        %v2775 = vpop.f32.mrf.mxu0
        %v2776 = vadd.f32 0.0, %v2775
        %v2777 = vpop.f32.mrf.mxu0
        %v2778 = vadd.f32 0.0, %v2777
        %v2779 = vpop.f32.mrf.mxu0
        %v2780 = vadd.f32 0.0, %v2779
        %v2781 = vpop.f32.mrf.mxu0
        %v2782 = vadd.f32 0.0, %v2781
        %2783 = vmatprep.mubr.bf16.mxu0 %v1108
        %2784 = vmatmul.mubr.bf16.gmra.mxu0 %v1107
        %v2785 = vpop.f32.mrf.mxu0
        %v2786 = vadd.f32 0.0, %v2785
        %v2787 = vpop.f32.mrf.mxu0
        %v2788 = vadd.f32 0.0, %v2787
        %v2789 = vpop.f32.mrf.mxu0
        %v2790 = vadd.f32 0.0, %v2789
        %v2791 = vpop.f32.mrf.mxu0
        %v2792 = vadd.f32 0.0, %v2791
        %2793 = vmatprep.mubr.bf16.mxu0 %v1112
        %2794 = vmatmul.mubr.bf16.gmra.mxu0 %v1111
        %v2795 = vpop.f32.mrf.mxu0
        %v2796 = vadd.f32 0.0, %v2795
        %v2797 = vpop.f32.mrf.mxu0
        %v2798 = vadd.f32 0.0, %v2797
        %v2799 = vpop.f32.mrf.mxu0
        %v2800 = vadd.f32 0.0, %v2799
        %v2801 = vpop.f32.mrf.mxu0
        %v2802 = vadd.f32 0.0, %v2801
        %2803 = vmatprep.mubr.bf16.mxu0 %v1116
        %2804 = vmatmul.mubr.bf16.gmra.mxu0 %v1115
        %v2805 = vpop.f32.mrf.mxu0
        %v2806 = vadd.f32 0.0, %v2805
        %v2807 = vpop.f32.mrf.mxu0
        %v2808 = vadd.f32 0.0, %v2807
        %v2809 = vpop.f32.mrf.mxu0
        %v2810 = vadd.f32 0.0, %v2809
        %v2811 = vpop.f32.mrf.mxu0
        %v2812 = vadd.f32 0.0, %v2811
        %2813 = vmatprep.mubr.bf16.mxu0 %v1120
        %2814 = vmatmul.mubr.bf16.gmra.mxu0 %v1119
        %v2815 = vpop.f32.mrf.mxu0
        %v2816 = vadd.f32 0.0, %v2815
        %v2817 = vpop.f32.mrf.mxu0
        %v2818 = vadd.f32 0.0, %v2817
        %v2819 = vpop.f32.mrf.mxu0
        %v2820 = vadd.f32 0.0, %v2819
        %v2821 = vpop.f32.mrf.mxu0
        %v2822 = vadd.f32 0.0, %v2821
        %2823 = vmatprep.mubr.bf16.mxu0 %v1124
        %2824 = vmatmul.mubr.bf16.gmra.mxu0 %v1123
        %v2825 = vpop.f32.mrf.mxu0
        %v2826 = vadd.f32 0.0, %v2825
        %v2827 = vpop.f32.mrf.mxu0
        %v2828 = vadd.f32 0.0, %v2827
        %v2829 = vpop.f32.mrf.mxu0
        %v2830 = vadd.f32 0.0, %v2829
        %v2831 = vpop.f32.mrf.mxu0
        %v2832 = vadd.f32 0.0, %v2831
        %2833 = vmatprep.mubr.bf16.mxu0 %v1128
        %2834 = vmatmul.mubr.bf16.gmra.mxu0 %v1127
        %v2835 = vpop.f32.mrf.mxu0
        %v2836 = vadd.f32 0.0, %v2835
        %v2837 = vpop.f32.mrf.mxu0
        %v2838 = vadd.f32 0.0, %v2837
        %v2839 = vpop.f32.mrf.mxu0
        %v2840 = vadd.f32 0.0, %v2839
        %v2841 = vpop.f32.mrf.mxu0
        %v2842 = vadd.f32 0.0, %v2841
        %2843 = vmatprep.mubr.bf16.mxu0 %v1132
        %2844 = vmatmul.mubr.bf16.gmra.mxu0 %v1131
        %v2845 = vpop.f32.mrf.mxu0
        %v2846 = vadd.f32 0.0, %v2845
        %v2847 = vpop.f32.mrf.mxu0
        %v2848 = vadd.f32 0.0, %v2847
        %v2849 = vpop.f32.mrf.mxu0
        %v2850 = vadd.f32 0.0, %v2849
        %v2851 = vpop.f32.mrf.mxu0
        %v2852 = vadd.f32 0.0, %v2851
        %2853 = vmatprep.mubr.bf16.mxu0 %v1136
        %2854 = vmatmul.mubr.bf16.gmra.mxu0 %v1135
        %v2855 = vpop.f32.mrf.mxu0
        %v2856 = vadd.f32 0.0, %v2855
        %v2857 = vpop.f32.mrf.mxu0
        %v2858 = vadd.f32 0.0, %v2857
        %v2859 = vpop.f32.mrf.mxu0
        %v2860 = vadd.f32 0.0, %v2859
        %v2861 = vpop.f32.mrf.mxu0
        %v2862 = vadd.f32 0.0, %v2861
        %2863 = vmatprep.mubr.bf16.mxu0 %v1140
        %2864 = vmatmul.mubr.bf16.gmra.mxu0 %v1139
        %v2865 = vpop.f32.mrf.mxu0
        %v2866 = vadd.f32 0.0, %v2865
        %v2867 = vpop.f32.mrf.mxu0
        %v2868 = vadd.f32 0.0, %v2867
        %v2869 = vpop.f32.mrf.mxu0
        %v2870 = vadd.f32 0.0, %v2869
        %v2871 = vpop.f32.mrf.mxu0
        %v2872 = vadd.f32 0.0, %v2871
        %2873 = vmatprep.mubr.bf16.mxu0 %v1144
        %2874 = vmatmul.mubr.bf16.gmra.mxu0 %v1143
        %v2875 = vpop.f32.mrf.mxu0
        %v2876 = vadd.f32 0.0, %v2875
        %v2877 = vpop.f32.mrf.mxu0
        %v2878 = vadd.f32 0.0, %v2877
        %v2879 = vpop.f32.mrf.mxu0
        %v2880 = vadd.f32 0.0, %v2879
        %v2881 = vpop.f32.mrf.mxu0
        %v2882 = vadd.f32 0.0, %v2881
        %2883 = vmatprep.mubr.bf16.mxu0 %v1148
        %2884 = vmatmul.mubr.bf16.gmra.mxu0 %v1147
        %v2885 = vpop.f32.mrf.mxu0
        %v2886 = vadd.f32 0.0, %v2885
        %v2887 = vpop.f32.mrf.mxu0
        %v2888 = vadd.f32 0.0, %v2887
        %v2889 = vpop.f32.mrf.mxu0
        %v2890 = vadd.f32 0.0, %v2889
        %v2891 = vpop.f32.mrf.mxu0
        %v2892 = vadd.f32 0.0, %v2891
        %2893 = vmatprep.mubr.bf16.mxu0 %v1152
        %2894 = vmatmul.mubr.bf16.gmra.mxu0 %v1151
        %v2895 = vpop.f32.mrf.mxu0
        %v2896 = vadd.f32 0.0, %v2895
        %v2897 = vpop.f32.mrf.mxu0
        %v2898 = vadd.f32 0.0, %v2897
        %v2899 = vpop.f32.mrf.mxu0
        %v2900 = vadd.f32 0.0, %v2899
        %v2901 = vpop.f32.mrf.mxu0
        %v2902 = vadd.f32 0.0, %v2901
        %2903 = vmatprep.mubr.bf16.mxu0 %v1156
        %2904 = vmatmul.mubr.bf16.gmra.mxu0 %v1155
        %v2905 = vpop.f32.mrf.mxu0
        %v2906 = vadd.f32 0.0, %v2905
        %v2907 = vpop.f32.mrf.mxu0
        %v2908 = vadd.f32 0.0, %v2907
        %v2909 = vpop.f32.mrf.mxu0
        %v2910 = vadd.f32 0.0, %v2909
        %v2911 = vpop.f32.mrf.mxu0
        %v2912 = vadd.f32 0.0, %v2911
        %2913 = vmatprep.mubr.bf16.mxu0 %v1160
        %2914 = vmatmul.mubr.bf16.gmra.mxu0 %v1159
        %v2915 = vpop.f32.mrf.mxu0
        %v2916 = vadd.f32 0.0, %v2915
        %v2917 = vpop.f32.mrf.mxu0
        %v2918 = vadd.f32 0.0, %v2917
        %v2919 = vpop.f32.mrf.mxu0
        %v2920 = vadd.f32 0.0, %v2919
        %v2921 = vpop.f32.mrf.mxu0
        %v2922 = vadd.f32 0.0, %v2921
        %2923 = vmatprep.mubr.bf16.mxu0 %v1164
        %2924 = vmatmul.mubr.bf16.gmra.mxu0 %v1163
        %v2925 = vpop.f32.mrf.mxu0
        %v2926 = vadd.f32 0.0, %v2925
        %v2927 = vpop.f32.mrf.mxu0
        %v2928 = vadd.f32 0.0, %v2927
        %v2929 = vpop.f32.mrf.mxu0
        %v2930 = vadd.f32 0.0, %v2929
        %v2931 = vpop.f32.mrf.mxu0
        %v2932 = vadd.f32 0.0, %v2931
        %2933 = vmatprep.mubr.bf16.mxu0 %v1168
        %2934 = vmatmul.mubr.bf16.gmra.mxu0 %v1167
        %v2935 = vpop.f32.mrf.mxu0
        %v2936 = vadd.f32 0.0, %v2935
        %v2937 = vpop.f32.mrf.mxu0
        %v2938 = vadd.f32 0.0, %v2937
        %v2939 = vpop.f32.mrf.mxu0
        %v2940 = vadd.f32 0.0, %v2939
        %v2941 = vpop.f32.mrf.mxu0
        %v2942 = vadd.f32 0.0, %v2941
        %2943 = vmatprep.mubr.bf16.mxu0 %v1172
        %2944 = vmatmul.mubr.bf16.gmra.mxu0 %v1171
        %v2945 = vpop.f32.mrf.mxu0
        %v2946 = vadd.f32 0.0, %v2945
        %v2947 = vpop.f32.mrf.mxu0
        %v2948 = vadd.f32 0.0, %v2947
        %v2949 = vpop.f32.mrf.mxu0
        %v2950 = vadd.f32 0.0, %v2949
        %v2951 = vpop.f32.mrf.mxu0
        %v2952 = vadd.f32 0.0, %v2951
        %2953 = vmatprep.mubr.bf16.mxu0 %v1176
        %2954 = vmatmul.mubr.bf16.gmra.mxu0 %v1175
        %v2955 = vpop.f32.mrf.mxu0
        %v2956 = vadd.f32 0.0, %v2955
        %v2957 = vpop.f32.mrf.mxu0
        %v2958 = vadd.f32 0.0, %v2957
        %v2959 = vpop.f32.mrf.mxu0
        %v2960 = vadd.f32 0.0, %v2959
        %v2961 = vpop.f32.mrf.mxu0
        %v2962 = vadd.f32 0.0, %v2961
        %2963 = vmatprep.mubr.bf16.mxu0 %v1180
        %2964 = vmatmul.mubr.bf16.gmra.mxu0 %v1179
        %v2965 = vpop.f32.mrf.mxu0
        %v2966 = vadd.f32 0.0, %v2965
        %v2967 = vpop.f32.mrf.mxu0
        %v2968 = vadd.f32 0.0, %v2967
        %v2969 = vpop.f32.mrf.mxu0
        %v2970 = vadd.f32 0.0, %v2969
        %v2971 = vpop.f32.mrf.mxu0
        %v2972 = vadd.f32 0.0, %v2971
        %2973 = vmatprep.mubr.bf16.mxu0 %v1184
        %2974 = vmatmul.mubr.bf16.gmra.mxu0 %v1183
        %v2975 = vpop.f32.mrf.mxu0
        %v2976 = vadd.f32 0.0, %v2975
        %v2977 = vpop.f32.mrf.mxu0
        %v2978 = vadd.f32 0.0, %v2977
        %v2979 = vpop.f32.mrf.mxu0
        %v2980 = vadd.f32 0.0, %v2979
        %v2981 = vpop.f32.mrf.mxu0
        %v2982 = vadd.f32 0.0, %v2981
        %2983 = vmatprep.mubr.bf16.mxu0 %v1188
        %2984 = vmatmul.mubr.bf16.gmra.mxu0 %v1187
        %v2985 = vpop.f32.mrf.mxu0
        %v2986 = vadd.f32 0.0, %v2985
        %v2987 = vpop.f32.mrf.mxu0
        %v2988 = vadd.f32 0.0, %v2987
        %v2989 = vpop.f32.mrf.mxu0
        %v2990 = vadd.f32 0.0, %v2989
        %v2991 = vpop.f32.mrf.mxu0
        %v2992 = vadd.f32 0.0, %v2991
        %2993 = vmatprep.mubr.bf16.mxu0 %v1192
        %2994 = vmatmul.mubr.bf16.gmra.mxu0 %v1191
        %v2995 = vpop.f32.mrf.mxu0
        %v2996 = vadd.f32 0.0, %v2995
        %v2997 = vpop.f32.mrf.mxu0
        %v2998 = vadd.f32 0.0, %v2997
        %v2999 = vpop.f32.mrf.mxu0
        %v3000 = vadd.f32 0.0, %v2999
        %v3001 = vpop.f32.mrf.mxu0
        %v3002 = vadd.f32 0.0, %v3001
        %3003 = vmatprep.mubr.bf16.mxu0 %v1196
        %3004 = vmatmul.mubr.bf16.gmra.mxu0 %v1195
        %v3005 = vpop.f32.mrf.mxu0
        %v3006 = vadd.f32 0.0, %v3005
        %v3007 = vpop.f32.mrf.mxu0
        %v3008 = vadd.f32 0.0, %v3007
        %v3009 = vpop.f32.mrf.mxu0
        %v3010 = vadd.f32 0.0, %v3009
        %v3011 = vpop.f32.mrf.mxu0
        %v3012 = vadd.f32 0.0, %v3011
        %3013 = vmatprep.mubr.bf16.mxu0 %v1200
        %3014 = vmatmul.mubr.bf16.gmra.mxu0 %v1199
        %v3015 = vpop.f32.mrf.mxu0
        %v3016 = vadd.f32 0.0, %v3015
        %v3017 = vpop.f32.mrf.mxu0
        %v3018 = vadd.f32 0.0, %v3017
        %v3019 = vpop.f32.mrf.mxu0
        %v3020 = vadd.f32 0.0, %v3019
        %v3021 = vpop.f32.mrf.mxu0
        %v3022 = vadd.f32 0.0, %v3021
        %3023 = vmatprep.mubr.bf16.mxu0 %v1204
        %3024 = vmatmul.mubr.bf16.gmra.mxu0 %v1203
        %v3025 = vpop.f32.mrf.mxu0
        %v3026 = vadd.f32 0.0, %v3025
        %v3027 = vpop.f32.mrf.mxu0
        %v3028 = vadd.f32 0.0, %v3027
        %v3029 = vpop.f32.mrf.mxu0
        %v3030 = vadd.f32 0.0, %v3029
        %v3031 = vpop.f32.mrf.mxu0
        %v3032 = vadd.f32 0.0, %v3031
        %3033 = vdwg.mxu0
        %3034 = vmatprep.subr.bf16.mxu0 %v1814
        %3035 = vmatpush1.bf16.msra.mxu0 %v1813
        %3036 = vmatprep.subr.bf16.mxu0 %v1810
        %3037 = vmatpush1.bf16.msra.mxu0 %v1809
        %3038 = vmatprep.subr.bf16.mxu0 %v1806
        %3039 = vmatpush1.bf16.msra.mxu0 %v1805
        %3040 = vmatprep.subr.bf16.mxu0 %v1802
        %3041 = vmatpush1.bf16.msra.mxu0 %v1801
        %3042 = vmatprep.subr.bf16.mxu0 %v1798
        %3043 = vmatpush1.bf16.msra.mxu0 %v1797
        %3044 = vmatprep.subr.bf16.mxu0 %v1794
        %3045 = vmatpush1.bf16.msra.mxu0 %v1793
        %3046 = vmatprep.subr.bf16.mxu0 %v1790
        %3047 = vmatpush1.bf16.msra.mxu0 %v1789
        %3048 = vmatprep.subr.bf16.mxu0 %v1786
        %3049 = vmatpush1.bf16.msra.mxu0 %v1785
        %3050 = vmatprep.subr.bf16.mxu0 %v1846
        %3051 = vmatpush2.bf16.msra.mxu0 %v1845
        %3052 = vmatprep.subr.bf16.mxu0 %v1842
        %3053 = vmatpush2.bf16.msra.mxu0 %v1841
        %3054 = vmatprep.subr.bf16.mxu0 %v1838
        %3055 = vmatpush2.bf16.msra.mxu0 %v1837
        %3056 = vmatprep.subr.bf16.mxu0 %v1834
        %3057 = vmatpush2.bf16.msra.mxu0 %v1833
        %3058 = vmatprep.subr.bf16.mxu0 %v1830
        %3059 = vmatpush2.bf16.msra.mxu0 %v1829
        %3060 = vmatprep.subr.bf16.mxu0 %v1826
        %3061 = vmatpush2.bf16.msra.mxu0 %v1825
        %3062 = vmatprep.subr.bf16.mxu0 %v1822
        %3063 = vmatpush2.bf16.msra.mxu0 %v1821
        %3064 = vmatprep.subr.bf16.mxu0 %v1818
        %3065 = vmatpush2.bf16.msra.mxu0 %v1817
        %3066 = vmatprep.mubr.bf16.mxu0 %v1082
        %3067 = vmatmul.mubr.bf16.gmra.mxu0 %v1081
        %v3068 = vpop.f32.mrf.mxu0
        %v3069 = vadd.f32 %v2716, %v3068
        %v3070 = vpop.f32.mrf.mxu0
        %v3071 = vadd.f32 %v2718, %v3070
        %v3072 = vpop.f32.mrf.mxu0
        %v3073 = vadd.f32 %v2720, %v3072
        %v3074 = vpop.f32.mrf.mxu0
        %v3075 = vadd.f32 %v2722, %v3074
        %3076 = vmatprep.mubr.bf16.mxu0 %v1086
        %3077 = vmatmul.mubr.bf16.gmra.mxu0 %v1085
        %v3078 = vpop.f32.mrf.mxu0
        %v3079 = vadd.f32 %v2726, %v3078
        %v3080 = vpop.f32.mrf.mxu0
        %v3081 = vadd.f32 %v2728, %v3080
        %v3082 = vpop.f32.mrf.mxu0
        %v3083 = vadd.f32 %v2730, %v3082
        %v3084 = vpop.f32.mrf.mxu0
        %v3085 = vadd.f32 %v2732, %v3084
        %3086 = vmatprep.mubr.bf16.mxu0 %v1090
        %3087 = vmatmul.mubr.bf16.gmra.mxu0 %v1089
        %v3088 = vpop.f32.mrf.mxu0
        %v3089 = vadd.f32 %v2736, %v3088
        %v3090 = vpop.f32.mrf.mxu0
        %v3091 = vadd.f32 %v2738, %v3090
        %v3092 = vpop.f32.mrf.mxu0
        %v3093 = vadd.f32 %v2740, %v3092
        %v3094 = vpop.f32.mrf.mxu0
        %v3095 = vadd.f32 %v2742, %v3094
        %3096 = vmatprep.mubr.bf16.mxu0 %v1094
        %3097 = vmatmul.mubr.bf16.gmra.mxu0 %v1093
        %v3098 = vpop.f32.mrf.mxu0
        %v3099 = vadd.f32 %v2746, %v3098
        %v3100 = vpop.f32.mrf.mxu0
        %v3101 = vadd.f32 %v2748, %v3100
        %v3102 = vpop.f32.mrf.mxu0
        %v3103 = vadd.f32 %v2750, %v3102
        %v3104 = vpop.f32.mrf.mxu0
        %v3105 = vadd.f32 %v2752, %v3104
        %3106 = vmatprep.mubr.bf16.mxu0 %v1098
        %3107 = vmatmul.mubr.bf16.gmra.mxu0 %v1097
        %v3108 = vpop.f32.mrf.mxu0
        %v3109 = vadd.f32 %v2756, %v3108
        %v3110 = vpop.f32.mrf.mxu0
        %v3111 = vadd.f32 %v2758, %v3110
        %v3112 = vpop.f32.mrf.mxu0
        %v3113 = vadd.f32 %v2760, %v3112
        %v3114 = vpop.f32.mrf.mxu0
        %v3115 = vadd.f32 %v2762, %v3114
        %3116 = vmatprep.mubr.bf16.mxu0 %v1102
        %3117 = vmatmul.mubr.bf16.gmra.mxu0 %v1101
        %v3118 = vpop.f32.mrf.mxu0
        %v3119 = vadd.f32 %v2766, %v3118
        %v3120 = vpop.f32.mrf.mxu0
        %v3121 = vadd.f32 %v2768, %v3120
        %v3122 = vpop.f32.mrf.mxu0
        %v3123 = vadd.f32 %v2770, %v3122
        %v3124 = vpop.f32.mrf.mxu0
        %v3125 = vadd.f32 %v2772, %v3124
        %3126 = vmatprep.mubr.bf16.mxu0 %v1106
        %3127 = vmatmul.mubr.bf16.gmra.mxu0 %v1105
        %v3128 = vpop.f32.mrf.mxu0
        %v3129 = vadd.f32 %v2776, %v3128
        %v3130 = vpop.f32.mrf.mxu0
        %v3131 = vadd.f32 %v2778, %v3130
        %v3132 = vpop.f32.mrf.mxu0
        %v3133 = vadd.f32 %v2780, %v3132
        %v3134 = vpop.f32.mrf.mxu0
        %v3135 = vadd.f32 %v2782, %v3134
        %3136 = vmatprep.mubr.bf16.mxu0 %v1110
        %3137 = vmatmul.mubr.bf16.gmra.mxu0 %v1109
        %v3138 = vpop.f32.mrf.mxu0
        %v3139 = vadd.f32 %v2786, %v3138
        %v3140 = vpop.f32.mrf.mxu0
        %v3141 = vadd.f32 %v2788, %v3140
        %v3142 = vpop.f32.mrf.mxu0
        %v3143 = vadd.f32 %v2790, %v3142
        %v3144 = vpop.f32.mrf.mxu0
        %v3145 = vadd.f32 %v2792, %v3144
        %3146 = vmatprep.mubr.bf16.mxu0 %v1114
        %3147 = vmatmul.mubr.bf16.gmra.mxu0 %v1113
        %v3148 = vpop.f32.mrf.mxu0
        %v3149 = vadd.f32 %v2796, %v3148
        %v3150 = vpop.f32.mrf.mxu0
        %v3151 = vadd.f32 %v2798, %v3150
        %v3152 = vpop.f32.mrf.mxu0
        %v3153 = vadd.f32 %v2800, %v3152
        %v3154 = vpop.f32.mrf.mxu0
        %v3155 = vadd.f32 %v2802, %v3154
        %3156 = vmatprep.mubr.bf16.mxu0 %v1118
        %3157 = vmatmul.mubr.bf16.gmra.mxu0 %v1117
        %v3158 = vpop.f32.mrf.mxu0
        %v3159 = vadd.f32 %v2806, %v3158
        %v3160 = vpop.f32.mrf.mxu0
        %v3161 = vadd.f32 %v2808, %v3160
        %v3162 = vpop.f32.mrf.mxu0
        %v3163 = vadd.f32 %v2810, %v3162
        %v3164 = vpop.f32.mrf.mxu0
        %v3165 = vadd.f32 %v2812, %v3164
        %3166 = vmatprep.mubr.bf16.mxu0 %v1122
        %3167 = vmatmul.mubr.bf16.gmra.mxu0 %v1121
        %v3168 = vpop.f32.mrf.mxu0
        %v3169 = vadd.f32 %v2816, %v3168
        %v3170 = vpop.f32.mrf.mxu0
        %v3171 = vadd.f32 %v2818, %v3170
        %v3172 = vpop.f32.mrf.mxu0
        %v3173 = vadd.f32 %v2820, %v3172
        %v3174 = vpop.f32.mrf.mxu0
        %v3175 = vadd.f32 %v2822, %v3174
        %3176 = vmatprep.mubr.bf16.mxu0 %v1126
        %3177 = vmatmul.mubr.bf16.gmra.mxu0 %v1125
        %v3178 = vpop.f32.mrf.mxu0
        %v3179 = vadd.f32 %v2826, %v3178
        %v3180 = vpop.f32.mrf.mxu0
        %v3181 = vadd.f32 %v2828, %v3180
        %v3182 = vpop.f32.mrf.mxu0
        %v3183 = vadd.f32 %v2830, %v3182
        %v3184 = vpop.f32.mrf.mxu0
        %v3185 = vadd.f32 %v2832, %v3184
        %3186 = vmatprep.mubr.bf16.mxu0 %v1130
        %3187 = vmatmul.mubr.bf16.gmra.mxu0 %v1129
        %v3188 = vpop.f32.mrf.mxu0
        %v3189 = vadd.f32 %v2836, %v3188
        %v3190 = vpop.f32.mrf.mxu0
        %v3191 = vadd.f32 %v2838, %v3190
        %v3192 = vpop.f32.mrf.mxu0
        %v3193 = vadd.f32 %v2840, %v3192
        %v3194 = vpop.f32.mrf.mxu0
        %v3195 = vadd.f32 %v2842, %v3194
        %3196 = vmatprep.mubr.bf16.mxu0 %v1134
        %3197 = vmatmul.mubr.bf16.gmra.mxu0 %v1133
        %v3198 = vpop.f32.mrf.mxu0
        %v3199 = vadd.f32 %v2846, %v3198
        %v3200 = vpop.f32.mrf.mxu0
        %v3201 = vadd.f32 %v2848, %v3200
        %v3202 = vpop.f32.mrf.mxu0
        %v3203 = vadd.f32 %v2850, %v3202
        %v3204 = vpop.f32.mrf.mxu0
        %v3205 = vadd.f32 %v2852, %v3204
        %3206 = vmatprep.mubr.bf16.mxu0 %v1138
        %3207 = vmatmul.mubr.bf16.gmra.mxu0 %v1137
        %v3208 = vpop.f32.mrf.mxu0
        %v3209 = vadd.f32 %v2856, %v3208
        %v3210 = vpop.f32.mrf.mxu0
        %v3211 = vadd.f32 %v2858, %v3210
        %v3212 = vpop.f32.mrf.mxu0
        %v3213 = vadd.f32 %v2860, %v3212
        %v3214 = vpop.f32.mrf.mxu0
        %v3215 = vadd.f32 %v2862, %v3214
        %3216 = vmatprep.mubr.bf16.mxu0 %v1142
        %3217 = vmatmul.mubr.bf16.gmra.mxu0 %v1141
        %v3218 = vpop.f32.mrf.mxu0
        %v3219 = vadd.f32 %v2866, %v3218
        %v3220 = vpop.f32.mrf.mxu0
        %v3221 = vadd.f32 %v2868, %v3220
        %v3222 = vpop.f32.mrf.mxu0
        %v3223 = vadd.f32 %v2870, %v3222
        %v3224 = vpop.f32.mrf.mxu0
        %v3225 = vadd.f32 %v2872, %v3224
        %3226 = vmatprep.mubr.bf16.mxu0 %v1146
        %3227 = vmatmul.mubr.bf16.gmra.mxu0 %v1145
        %v3228 = vpop.f32.mrf.mxu0
        %v3229 = vadd.f32 %v2876, %v3228
        %v3230 = vpop.f32.mrf.mxu0
        %v3231 = vadd.f32 %v2878, %v3230
        %v3232 = vpop.f32.mrf.mxu0
        %v3233 = vadd.f32 %v2880, %v3232
        %v3234 = vpop.f32.mrf.mxu0
        %v3235 = vadd.f32 %v2882, %v3234
        %3236 = vmatprep.mubr.bf16.mxu0 %v1150
        %3237 = vmatmul.mubr.bf16.gmra.mxu0 %v1149
        %v3238 = vpop.f32.mrf.mxu0
        %v3239 = vadd.f32 %v2886, %v3238
        %v3240 = vpop.f32.mrf.mxu0
        %v3241 = vadd.f32 %v2888, %v3240
        %v3242 = vpop.f32.mrf.mxu0
        %v3243 = vadd.f32 %v2890, %v3242
        %v3244 = vpop.f32.mrf.mxu0
        %v3245 = vadd.f32 %v2892, %v3244
        %3246 = vmatprep.mubr.bf16.mxu0 %v1154
        %3247 = vmatmul.mubr.bf16.gmra.mxu0 %v1153
        %v3248 = vpop.f32.mrf.mxu0
        %v3249 = vadd.f32 %v2896, %v3248
        %v3250 = vpop.f32.mrf.mxu0
        %v3251 = vadd.f32 %v2898, %v3250
        %v3252 = vpop.f32.mrf.mxu0
        %v3253 = vadd.f32 %v2900, %v3252
        %v3254 = vpop.f32.mrf.mxu0
        %v3255 = vadd.f32 %v2902, %v3254
        %3256 = vmatprep.mubr.bf16.mxu0 %v1158
        %3257 = vmatmul.mubr.bf16.gmra.mxu0 %v1157
        %v3258 = vpop.f32.mrf.mxu0
        %v3259 = vadd.f32 %v2906, %v3258
        %v3260 = vpop.f32.mrf.mxu0
        %v3261 = vadd.f32 %v2908, %v3260
        %v3262 = vpop.f32.mrf.mxu0
        %v3263 = vadd.f32 %v2910, %v3262
        %v3264 = vpop.f32.mrf.mxu0
        %v3265 = vadd.f32 %v2912, %v3264
        %3266 = vmatprep.mubr.bf16.mxu0 %v1162
        %3267 = vmatmul.mubr.bf16.gmra.mxu0 %v1161
        %v3268 = vpop.f32.mrf.mxu0
        %v3269 = vadd.f32 %v2916, %v3268
        %v3270 = vpop.f32.mrf.mxu0
        %v3271 = vadd.f32 %v2918, %v3270
        %v3272 = vpop.f32.mrf.mxu0
        %v3273 = vadd.f32 %v2920, %v3272
        %v3274 = vpop.f32.mrf.mxu0
        %v3275 = vadd.f32 %v2922, %v3274
        %3276 = vmatprep.mubr.bf16.mxu0 %v1166
        %3277 = vmatmul.mubr.bf16.gmra.mxu0 %v1165
        %v3278 = vpop.f32.mrf.mxu0
        %v3279 = vadd.f32 %v2926, %v3278
        %v3280 = vpop.f32.mrf.mxu0
        %v3281 = vadd.f32 %v2928, %v3280
        %v3282 = vpop.f32.mrf.mxu0
        %v3283 = vadd.f32 %v2930, %v3282
        %v3284 = vpop.f32.mrf.mxu0
        %v3285 = vadd.f32 %v2932, %v3284
        %3286 = vmatprep.mubr.bf16.mxu0 %v1170
        %3287 = vmatmul.mubr.bf16.gmra.mxu0 %v1169
        %v3288 = vpop.f32.mrf.mxu0
        %v3289 = vadd.f32 %v2936, %v3288
        %v3290 = vpop.f32.mrf.mxu0
        %v3291 = vadd.f32 %v2938, %v3290
        %v3292 = vpop.f32.mrf.mxu0
        %v3293 = vadd.f32 %v2940, %v3292
        %v3294 = vpop.f32.mrf.mxu0
        %v3295 = vadd.f32 %v2942, %v3294
        %3296 = vmatprep.mubr.bf16.mxu0 %v1174
        %3297 = vmatmul.mubr.bf16.gmra.mxu0 %v1173
        %v3298 = vpop.f32.mrf.mxu0
        %v3299 = vadd.f32 %v2946, %v3298
        %v3300 = vpop.f32.mrf.mxu0
        %v3301 = vadd.f32 %v2948, %v3300
        %v3302 = vpop.f32.mrf.mxu0
        %v3303 = vadd.f32 %v2950, %v3302
        %v3304 = vpop.f32.mrf.mxu0
        %v3305 = vadd.f32 %v2952, %v3304
        %3306 = vmatprep.mubr.bf16.mxu0 %v1178
        %3307 = vmatmul.mubr.bf16.gmra.mxu0 %v1177
        %v3308 = vpop.f32.mrf.mxu0
        %v3309 = vadd.f32 %v2956, %v3308
        %v3310 = vpop.f32.mrf.mxu0
        %v3311 = vadd.f32 %v2958, %v3310
        %v3312 = vpop.f32.mrf.mxu0
        %v3313 = vadd.f32 %v2960, %v3312
        %v3314 = vpop.f32.mrf.mxu0
        %v3315 = vadd.f32 %v2962, %v3314
        %3316 = vmatprep.mubr.bf16.mxu0 %v1182
        %3317 = vmatmul.mubr.bf16.gmra.mxu0 %v1181
        %v3318 = vpop.f32.mrf.mxu0
        %v3319 = vadd.f32 %v2966, %v3318
        %v3320 = vpop.f32.mrf.mxu0
        %v3321 = vadd.f32 %v2968, %v3320
        %v3322 = vpop.f32.mrf.mxu0
        %v3323 = vadd.f32 %v2970, %v3322
        %v3324 = vpop.f32.mrf.mxu0
        %v3325 = vadd.f32 %v2972, %v3324
        %3326 = vmatprep.mubr.bf16.mxu0 %v1186
        %3327 = vmatmul.mubr.bf16.gmra.mxu0 %v1185
        %v3328 = vpop.f32.mrf.mxu0
        %v3329 = vadd.f32 %v2976, %v3328
        %v3330 = vpop.f32.mrf.mxu0
        %v3331 = vadd.f32 %v2978, %v3330
        %v3332 = vpop.f32.mrf.mxu0
        %v3333 = vadd.f32 %v2980, %v3332
        %v3334 = vpop.f32.mrf.mxu0
        %v3335 = vadd.f32 %v2982, %v3334
        %3336 = vmatprep.mubr.bf16.mxu0 %v1190
        %3337 = vmatmul.mubr.bf16.gmra.mxu0 %v1189
        %v3338 = vpop.f32.mrf.mxu0
        %v3339 = vadd.f32 %v2986, %v3338
        %v3340 = vpop.f32.mrf.mxu0
        %v3341 = vadd.f32 %v2988, %v3340
        %v3342 = vpop.f32.mrf.mxu0
        %v3343 = vadd.f32 %v2990, %v3342
        %v3344 = vpop.f32.mrf.mxu0
        %v3345 = vadd.f32 %v2992, %v3344
        %3346 = vmatprep.mubr.bf16.mxu0 %v1194
        %3347 = vmatmul.mubr.bf16.gmra.mxu0 %v1193
        %v3348 = vpop.f32.mrf.mxu0
        %v3349 = vadd.f32 %v2996, %v3348
        %v3350 = vpop.f32.mrf.mxu0
        %v3351 = vadd.f32 %v2998, %v3350
        %v3352 = vpop.f32.mrf.mxu0
        %v3353 = vadd.f32 %v3000, %v3352
        %v3354 = vpop.f32.mrf.mxu0
        %v3355 = vadd.f32 %v3002, %v3354
        %3356 = vmatprep.mubr.bf16.mxu0 %v1198
        %3357 = vmatmul.mubr.bf16.gmra.mxu0 %v1197
        %v3358 = vpop.f32.mrf.mxu0
        %v3359 = vadd.f32 %v3006, %v3358
        %v3360 = vpop.f32.mrf.mxu0
        %v3361 = vadd.f32 %v3008, %v3360
        %v3362 = vpop.f32.mrf.mxu0
        %v3363 = vadd.f32 %v3010, %v3362
        %v3364 = vpop.f32.mrf.mxu0
        %v3365 = vadd.f32 %v3012, %v3364
        %3366 = vmatprep.mubr.bf16.mxu0 %v1202
        %3367 = vmatmul.mubr.bf16.gmra.mxu0 %v1201
        %v3368 = vpop.f32.mrf.mxu0
        %v3369 = vadd.f32 %v3016, %v3368
        %v3370 = vpop.f32.mrf.mxu0
        %v3371 = vadd.f32 %v3018, %v3370
        %v3372 = vpop.f32.mrf.mxu0
        %v3373 = vadd.f32 %v3020, %v3372
        %v3374 = vpop.f32.mrf.mxu0
        %v3375 = vadd.f32 %v3022, %v3374
        %3376 = vmatprep.mubr.bf16.mxu0 %v1206
        %3377 = vmatmul.mubr.bf16.gmra.mxu0 %v1205
        %v3378 = vpop.f32.mrf.mxu0
        %v3379 = vadd.f32 %v3026, %v3378
        %v3380 = vpop.f32.mrf.mxu0
        %v3381 = vadd.f32 %v3028, %v3380
        %v3382 = vpop.f32.mrf.mxu0
        %v3383 = vadd.f32 %v3030, %v3382
        %v3384 = vpop.f32.mrf.mxu0
        %v3385 = vadd.f32 %v3032, %v3384
        %3386 = vdwg.mxu0
        %v3387 = vadd.f32 %v567, %v2363
        %v3388 = vadd.f32 %v568, %v2365
        %v3389 = vadd.f32 %v569, %v3069
        %v3390 = vadd.f32 %v570, %v3071
        %v3391 = vadd.f32 %v571, %v2367
        %v3392 = vadd.f32 %v572, %v2369
        %v3393 = vadd.f32 %v573, %v3073
        %v3394 = vadd.f32 %v574, %v3075
        %v3395 = vadd.f32 %v575, %v2373
        %v3396 = vadd.f32 %v576, %v2375
        %v3397 = vadd.f32 %v577, %v3079
        %v3398 = vadd.f32 %v578, %v3081
        %v3399 = vadd.f32 %v579, %v2377
        %v3400 = vadd.f32 %v580, %v2379
        %v3401 = vadd.f32 %v581, %v3083
        %v3402 = vadd.f32 %v582, %v3085
        %v3403 = vadd.f32 %v583, %v2383
        %v3404 = vadd.f32 %v584, %v2385
        %v3405 = vadd.f32 %v585, %v3089
        %v3406 = vadd.f32 %v586, %v3091
        %v3407 = vadd.f32 %v587, %v2387
        %v3408 = vadd.f32 %v588, %v2389
        %v3409 = vadd.f32 %v589, %v3093
        %v3410 = vadd.f32 %v590, %v3095
        %v3411 = vadd.f32 %v591, %v2393
        %v3412 = vadd.f32 %v592, %v2395
        %v3413 = vadd.f32 %v593, %v3099
        %v3414 = vadd.f32 %v594, %v3101
        %v3415 = vadd.f32 %v595, %v2397
        %v3416 = vadd.f32 %v596, %v2399
        %v3417 = vadd.f32 %v597, %v3103
        %v3418 = vadd.f32 %v598, %v3105
        %v3419 = vadd.f32 %v599, %v2403
        %v3420 = vadd.f32 %v600, %v2405
        %v3421 = vadd.f32 %v601, %v3109
        %v3422 = vadd.f32 %v602, %v3111
        %v3423 = vadd.f32 %v603, %v2407
        %v3424 = vadd.f32 %v604, %v2409
        %v3425 = vadd.f32 %v605, %v3113
        %v3426 = vadd.f32 %v606, %v3115
        %v3427 = vadd.f32 %v607, %v2413
        %v3428 = vadd.f32 %v608, %v2415
        %v3429 = vadd.f32 %v609, %v3119
        %v3430 = vadd.f32 %v610, %v3121
        %v3431 = vadd.f32 %v611, %v2417
        %v3432 = vadd.f32 %v612, %v2419
        %v3433 = vadd.f32 %v613, %v3123
        %v3434 = vadd.f32 %v614, %v3125
        %v3435 = vadd.f32 %v615, %v2423
        %v3436 = vadd.f32 %v616, %v2425
        %v3437 = vadd.f32 %v617, %v3129
        %v3438 = vadd.f32 %v618, %v3131
        %v3439 = vadd.f32 %v619, %v2427
        %v3440 = vadd.f32 %v620, %v2429
        %v3441 = vadd.f32 %v621, %v3133
        %v3442 = vadd.f32 %v622, %v3135
        %v3443 = vadd.f32 %v623, %v2433
        %v3444 = vadd.f32 %v624, %v2435
        %v3445 = vadd.f32 %v625, %v3139
        %v3446 = vadd.f32 %v626, %v3141
        %v3447 = vadd.f32 %v627, %v2437
        %v3448 = vadd.f32 %v628, %v2439
        %v3449 = vadd.f32 %v629, %v3143
        %v3450 = vadd.f32 %v630, %v3145
        %v3451 = vadd.f32 %v631, %v2443
        %v3452 = vadd.f32 %v632, %v2445
        %v3453 = vadd.f32 %v633, %v3149
        %v3454 = vadd.f32 %v634, %v3151
        %v3455 = vadd.f32 %v635, %v2447
        %v3456 = vadd.f32 %v636, %v2449
        %v3457 = vadd.f32 %v637, %v3153
        %v3458 = vadd.f32 %v638, %v3155
        %v3459 = vadd.f32 %v639, %v2453
        %v3460 = vadd.f32 %v640, %v2455
        %v3461 = vadd.f32 %v641, %v3159
        %v3462 = vadd.f32 %v642, %v3161
        %v3463 = vadd.f32 %v643, %v2457
        %v3464 = vadd.f32 %v644, %v2459
        %v3465 = vadd.f32 %v645, %v3163
        %v3466 = vadd.f32 %v646, %v3165
        %v3467 = vadd.f32 %v647, %v2463
        %v3468 = vadd.f32 %v648, %v2465
        %v3469 = vadd.f32 %v649, %v3169
        %v3470 = vadd.f32 %v650, %v3171
        %v3471 = vadd.f32 %v651, %v2467
        %v3472 = vadd.f32 %v652, %v2469
        %v3473 = vadd.f32 %v653, %v3173
        %v3474 = vadd.f32 %v654, %v3175
        %v3475 = vadd.f32 %v655, %v2473
        %v3476 = vadd.f32 %v656, %v2475
        %v3477 = vadd.f32 %v657, %v3179
        %v3478 = vadd.f32 %v658, %v3181
        %v3479 = vadd.f32 %v659, %v2477
        %v3480 = vadd.f32 %v660, %v2479
        %v3481 = vadd.f32 %v661, %v3183
        %v3482 = vadd.f32 %v662, %v3185
        %v3483 = vadd.f32 %v663, %v2483
        %v3484 = vadd.f32 %v664, %v2485
        %v3485 = vadd.f32 %v665, %v3189
        %v3486 = vadd.f32 %v666, %v3191
        %v3487 = vadd.f32 %v667, %v2487
        %v3488 = vadd.f32 %v668, %v2489
        %v3489 = vadd.f32 %v669, %v3193
        %v3490 = vadd.f32 %v670, %v3195
        %v3491 = vadd.f32 %v671, %v2493
        %v3492 = vadd.f32 %v672, %v2495
        %v3493 = vadd.f32 %v673, %v3199
        %v3494 = vadd.f32 %v674, %v3201
        %v3495 = vadd.f32 %v675, %v2497
        %v3496 = vadd.f32 %v676, %v2499
        %v3497 = vadd.f32 %v677, %v3203
        %v3498 = vadd.f32 %v678, %v3205
        %v3499 = vadd.f32 %v679, %v2503
        %v3500 = vadd.f32 %v680, %v2505
        %v3501 = vadd.f32 %v681, %v3209
        %v3502 = vadd.f32 %v682, %v3211
        %v3503 = vadd.f32 %v683, %v2507
        %v3504 = vadd.f32 %v684, %v2509
        %v3505 = vadd.f32 %v685, %v3213
        %v3506 = vadd.f32 %v686, %v3215
        %v3507 = vadd.f32 %v687, %v2513
        %v3508 = vadd.f32 %v688, %v2515
        %v3509 = vadd.f32 %v689, %v3219
        %v3510 = vadd.f32 %v690, %v3221
        %v3511 = vadd.f32 %v691, %v2517
        %v3512 = vadd.f32 %v692, %v2519
        %v3513 = vadd.f32 %v693, %v3223
        %v3514 = vadd.f32 %v694, %v3225
        %v3515 = vadd.f32 %v695, %v2523
        %v3516 = vadd.f32 %v696, %v2525
        %v3517 = vadd.f32 %v697, %v3229
        %v3518 = vadd.f32 %v698, %v3231
        %v3519 = vadd.f32 %v699, %v2527
        %v3520 = vadd.f32 %v700, %v2529
        %v3521 = vadd.f32 %v701, %v3233
        %v3522 = vadd.f32 %v702, %v3235
        %v3523 = vadd.f32 %v703, %v2533
        %v3524 = vadd.f32 %v704, %v2535
        %v3525 = vadd.f32 %v705, %v3239
        %v3526 = vadd.f32 %v706, %v3241
        %v3527 = vadd.f32 %v707, %v2537
        %v3528 = vadd.f32 %v708, %v2539
        %v3529 = vadd.f32 %v709, %v3243
        %v3530 = vadd.f32 %v710, %v3245
        %v3531 = vadd.f32 %v711, %v2543
        %v3532 = vadd.f32 %v712, %v2545
        %v3533 = vadd.f32 %v713, %v3249
        %v3534 = vadd.f32 %v714, %v3251
        %v3535 = vadd.f32 %v715, %v2547
        %v3536 = vadd.f32 %v716, %v2549
        %v3537 = vadd.f32 %v717, %v3253
        %v3538 = vadd.f32 %v718, %v3255
        %v3539 = vadd.f32 %v719, %v2553
        %v3540 = vadd.f32 %v720, %v2555
        %v3541 = vadd.f32 %v721, %v3259
        %v3542 = vadd.f32 %v722, %v3261
        %v3543 = vadd.f32 %v723, %v2557
        %v3544 = vadd.f32 %v724, %v2559
        %v3545 = vadd.f32 %v725, %v3263
        %v3546 = vadd.f32 %v726, %v3265
        %v3547 = vadd.f32 %v727, %v2563
        %v3548 = vadd.f32 %v728, %v2565
        %v3549 = vadd.f32 %v729, %v3269
        %v3550 = vadd.f32 %v730, %v3271
        %v3551 = vadd.f32 %v731, %v2567
        %v3552 = vadd.f32 %v732, %v2569
        %v3553 = vadd.f32 %v733, %v3273
        %v3554 = vadd.f32 %v734, %v3275
        %v3555 = vadd.f32 %v735, %v2573
        %v3556 = vadd.f32 %v736, %v2575
        %v3557 = vadd.f32 %v737, %v3279
        %v3558 = vadd.f32 %v738, %v3281
        %v3559 = vadd.f32 %v739, %v2577
        %v3560 = vadd.f32 %v740, %v2579
        %v3561 = vadd.f32 %v741, %v3283
        %v3562 = vadd.f32 %v742, %v3285
        %v3563 = vadd.f32 %v743, %v2583
        %v3564 = vadd.f32 %v744, %v2585
        %v3565 = vadd.f32 %v745, %v3289
        %v3566 = vadd.f32 %v746, %v3291
        %v3567 = vadd.f32 %v747, %v2587
        %v3568 = vadd.f32 %v748, %v2589
        %v3569 = vadd.f32 %v749, %v3293
        %v3570 = vadd.f32 %v750, %v3295
        %v3571 = vadd.f32 %v751, %v2593
        %v3572 = vadd.f32 %v752, %v2595
        %v3573 = vadd.f32 %v753, %v3299
        %v3574 = vadd.f32 %v754, %v3301
        %v3575 = vadd.f32 %v755, %v2597
        %v3576 = vadd.f32 %v756, %v2599
        %v3577 = vadd.f32 %v757, %v3303
        %v3578 = vadd.f32 %v758, %v3305
        %v3579 = vadd.f32 %v759, %v2603
        %v3580 = vadd.f32 %v760, %v2605
        %v3581 = vadd.f32 %v761, %v3309
        %v3582 = vadd.f32 %v762, %v3311
        %v3583 = vadd.f32 %v763, %v2607
        %v3584 = vadd.f32 %v764, %v2609
        %v3585 = vadd.f32 %v765, %v3313
        %v3586 = vadd.f32 %v766, %v3315
        %v3587 = vadd.f32 %v767, %v2613
        %v3588 = vadd.f32 %v768, %v2615
        %v3589 = vadd.f32 %v769, %v3319
        %v3590 = vadd.f32 %v770, %v3321
        %v3591 = vadd.f32 %v771, %v2617
        %v3592 = vadd.f32 %v772, %v2619
        %v3593 = vadd.f32 %v773, %v3323
        %v3594 = vadd.f32 %v774, %v3325
        %v3595 = vadd.f32 %v775, %v2623
        %v3596 = vadd.f32 %v776, %v2625
        %v3597 = vadd.f32 %v777, %v3329
        %v3598 = vadd.f32 %v778, %v3331
        %v3599 = vadd.f32 %v779, %v2627
        %v3600 = vadd.f32 %v780, %v2629
        %v3601 = vadd.f32 %v781, %v3333
        %v3602 = vadd.f32 %v782, %v3335
        %v3603 = vadd.f32 %v783, %v2633
        %v3604 = vadd.f32 %v784, %v2635
        %v3605 = vadd.f32 %v785, %v3339
        %v3606 = vadd.f32 %v786, %v3341
        %v3607 = vadd.f32 %v787, %v2637
        %v3608 = vadd.f32 %v788, %v2639
        %v3609 = vadd.f32 %v789, %v3343
        %v3610 = vadd.f32 %v790, %v3345
        %v3611 = vadd.f32 %v791, %v2643
        %v3612 = vadd.f32 %v792, %v2645
        %v3613 = vadd.f32 %v793, %v3349
        %v3614 = vadd.f32 %v794, %v3351
        %v3615 = vadd.f32 %v795, %v2647
        %v3616 = vadd.f32 %v796, %v2649
        %v3617 = vadd.f32 %v797, %v3353
        %v3618 = vadd.f32 %v798, %v3355
        %v3619 = vadd.f32 %v799, %v2653
        %v3620 = vadd.f32 %v800, %v2655
        %v3621 = vadd.f32 %v801, %v3359
        %v3622 = vadd.f32 %v802, %v3361
        %v3623 = vadd.f32 %v803, %v2657
        %v3624 = vadd.f32 %v804, %v2659
        %v3625 = vadd.f32 %v805, %v3363
        %v3626 = vadd.f32 %v806, %v3365
        %v3627 = vadd.f32 %v807, %v2663
        %v3628 = vadd.f32 %v808, %v2665
        %v3629 = vadd.f32 %v809, %v3369
        %v3630 = vadd.f32 %v810, %v3371
        %v3631 = vadd.f32 %v811, %v2667
        %v3632 = vadd.f32 %v812, %v2669
        %v3633 = vadd.f32 %v813, %v3373
        %v3634 = vadd.f32 %v814, %v3375
        %v3635 = vadd.f32 %v815, %v2673
        %v3636 = vadd.f32 %v816, %v2675
        %v3637 = vadd.f32 %v817, %v3379
        %v3638 = vadd.f32 %v818, %v3381
        %v3639 = vadd.f32 %v819, %v2677
        %v3640 = vadd.f32 %v820, %v2679
        %v3641 = vadd.f32 %v821, %v3383
        %v3642 = vadd.f32 %v822, %v3385
        %3643 = vst [vmem:[#allocation2] sm:$0xff] %v3387
        %3644 = vst [vmem:[#allocation2 + $0x8] sm:$0xff] %v3388
        %3645 = vst [vmem:[#allocation2 + $0x10] sm:$0xff] %v3389
        %3646 = vst [vmem:[#allocation2 + $0x18] sm:$0xff] %v3390
        %3647 = vst [vmem:[#allocation2 + $0x20] sm:$0xff] %v3391
        %3648 = vst [vmem:[#allocation2 + $0x28] sm:$0xff] %v3392
        %3649 = vst [vmem:[#allocation2 + $0x30] sm:$0xff] %v3393
        %3650 = vst [vmem:[#allocation2 + $0x38] sm:$0xff] %v3394
        %3651 = vst [vmem:[#allocation2 + $0x40] sm:$0xff] %v3395
        %3652 = vst [vmem:[#allocation2 + $0x48] sm:$0xff] %v3396
        %3653 = vst [vmem:[#allocation2 + $0x50] sm:$0xff] %v3397
        %3654 = vst [vmem:[#allocation2 + $0x58] sm:$0xff] %v3398
        %3655 = vst [vmem:[#allocation2 + $0x60] sm:$0xff] %v3399
        %3656 = vst [vmem:[#allocation2 + $0x68] sm:$0xff] %v3400
        %3657 = vst [vmem:[#allocation2 + $0x70] sm:$0xff] %v3401
        %3658 = vst [vmem:[#allocation2 + $0x78] sm:$0xff] %v3402
        %3659 = vst [vmem:[#allocation2 + $0x80] sm:$0xff] %v3403
        %3660 = vst [vmem:[#allocation2 + $0x88] sm:$0xff] %v3404
        %3661 = vst [vmem:[#allocation2 + $0x90] sm:$0xff] %v3405
        %3662 = vst [vmem:[#allocation2 + $0x98] sm:$0xff] %v3406
        %3663 = vst [vmem:[#allocation2 + $0xa0] sm:$0xff] %v3407
        %3664 = vst [vmem:[#allocation2 + $0xa8] sm:$0xff] %v3408
        %3665 = vst [vmem:[#allocation2 + $0xb0] sm:$0xff] %v3409
        %3666 = vst [vmem:[#allocation2 + $0xb8] sm:$0xff] %v3410
        %3667 = vst [vmem:[#allocation2 + $0xc0] sm:$0xff] %v3411
        %3668 = vst [vmem:[#allocation2 + $0xc8] sm:$0xff] %v3412
        %3669 = vst [vmem:[#allocation2 + $0xd0] sm:$0xff] %v3413
        %3670 = vst [vmem:[#allocation2 + $0xd8] sm:$0xff] %v3414
        %3671 = vst [vmem:[#allocation2 + $0xe0] sm:$0xff] %v3415
        %3672 = vst [vmem:[#allocation2 + $0xe8] sm:$0xff] %v3416
        %3673 = vst [vmem:[#allocation2 + $0xf0] sm:$0xff] %v3417
        %3674 = vst [vmem:[#allocation2 + $0xf8] sm:$0xff] %v3418
        %3675 = vst [vmem:[#allocation2 + $0x100] sm:$0xff] %v3419
        %3676 = vst [vmem:[#allocation2 + $0x108] sm:$0xff] %v3420
        %3677 = vst [vmem:[#allocation2 + $0x110] sm:$0xff] %v3421
        %3678 = vst [vmem:[#allocation2 + $0x118] sm:$0xff] %v3422
        %3679 = vst [vmem:[#allocation2 + $0x120] sm:$0xff] %v3423
        %3680 = vst [vmem:[#allocation2 + $0x128] sm:$0xff] %v3424
        %3681 = vst [vmem:[#allocation2 + $0x130] sm:$0xff] %v3425
        %3682 = vst [vmem:[#allocation2 + $0x138] sm:$0xff] %v3426
        %3683 = vst [vmem:[#allocation2 + $0x140] sm:$0xff] %v3427
        %3684 = vst [vmem:[#allocation2 + $0x148] sm:$0xff] %v3428
        %3685 = vst [vmem:[#allocation2 + $0x150] sm:$0xff] %v3429
        %3686 = vst [vmem:[#allocation2 + $0x158] sm:$0xff] %v3430
        %3687 = vst [vmem:[#allocation2 + $0x160] sm:$0xff] %v3431
        %3688 = vst [vmem:[#allocation2 + $0x168] sm:$0xff] %v3432
        %3689 = vst [vmem:[#allocation2 + $0x170] sm:$0xff] %v3433
        %3690 = vst [vmem:[#allocation2 + $0x178] sm:$0xff] %v3434
        %3691 = vst [vmem:[#allocation2 + $0x180] sm:$0xff] %v3435
        %3692 = vst [vmem:[#allocation2 + $0x188] sm:$0xff] %v3436
        %3693 = vst [vmem:[#allocation2 + $0x190] sm:$0xff] %v3437
        %3694 = vst [vmem:[#allocation2 + $0x198] sm:$0xff] %v3438
        %3695 = vst [vmem:[#allocation2 + $0x1a0] sm:$0xff] %v3439
        %3696 = vst [vmem:[#allocation2 + $0x1a8] sm:$0xff] %v3440
        %3697 = vst [vmem:[#allocation2 + $0x1b0] sm:$0xff] %v3441
        %3698 = vst [vmem:[#allocation2 + $0x1b8] sm:$0xff] %v3442
        %3699 = vst [vmem:[#allocation2 + $0x1c0] sm:$0xff] %v3443
        %3700 = vst [vmem:[#allocation2 + $0x1c8] sm:$0xff] %v3444
        %3701 = vst [vmem:[#allocation2 + $0x1d0] sm:$0xff] %v3445
        %3702 = vst [vmem:[#allocation2 + $0x1d8] sm:$0xff] %v3446
        %3703 = vst [vmem:[#allocation2 + $0x1e0] sm:$0xff] %v3447
        %3704 = vst [vmem:[#allocation2 + $0x1e8] sm:$0xff] %v3448
        %3705 = vst [vmem:[#allocation2 + $0x1f0] sm:$0xff] %v3449
        %3706 = vst [vmem:[#allocation2 + $0x1f8] sm:$0xff] %v3450
        %3707 = vst [vmem:[#allocation2 + $0x200] sm:$0xff] %v3451
        %3708 = vst [vmem:[#allocation2 + $0x208] sm:$0xff] %v3452
        %3709 = vst [vmem:[#allocation2 + $0x210] sm:$0xff] %v3453
        %3710 = vst [vmem:[#allocation2 + $0x218] sm:$0xff] %v3454
        %3711 = vst [vmem:[#allocation2 + $0x220] sm:$0xff] %v3455
        %3712 = vst [vmem:[#allocation2 + $0x228] sm:$0xff] %v3456
        %3713 = vst [vmem:[#allocation2 + $0x230] sm:$0xff] %v3457
        %3714 = vst [vmem:[#allocation2 + $0x238] sm:$0xff] %v3458
        %3715 = vst [vmem:[#allocation2 + $0x240] sm:$0xff] %v3459
        %3716 = vst [vmem:[#allocation2 + $0x248] sm:$0xff] %v3460
        %3717 = vst [vmem:[#allocation2 + $0x250] sm:$0xff] %v3461
        %3718 = vst [vmem:[#allocation2 + $0x258] sm:$0xff] %v3462
        %3719 = vst [vmem:[#allocation2 + $0x260] sm:$0xff] %v3463
        %3720 = vst [vmem:[#allocation2 + $0x268] sm:$0xff] %v3464
        %3721 = vst [vmem:[#allocation2 + $0x270] sm:$0xff] %v3465
        %3722 = vst [vmem:[#allocation2 + $0x278] sm:$0xff] %v3466
        %3723 = vst [vmem:[#allocation2 + $0x280] sm:$0xff] %v3467
        %3724 = vst [vmem:[#allocation2 + $0x288] sm:$0xff] %v3468
        %3725 = vst [vmem:[#allocation2 + $0x290] sm:$0xff] %v3469
        %3726 = vst [vmem:[#allocation2 + $0x298] sm:$0xff] %v3470
        %3727 = vst [vmem:[#allocation2 + $0x2a0] sm:$0xff] %v3471
        %3728 = vst [vmem:[#allocation2 + $0x2a8] sm:$0xff] %v3472
        %3729 = vst [vmem:[#allocation2 + $0x2b0] sm:$0xff] %v3473
        %3730 = vst [vmem:[#allocation2 + $0x2b8] sm:$0xff] %v3474
        %3731 = vst [vmem:[#allocation2 + $0x2c0] sm:$0xff] %v3475
        %3732 = vst [vmem:[#allocation2 + $0x2c8] sm:$0xff] %v3476
        %3733 = vst [vmem:[#allocation2 + $0x2d0] sm:$0xff] %v3477
        %3734 = vst [vmem:[#allocation2 + $0x2d8] sm:$0xff] %v3478
        %3735 = vst [vmem:[#allocation2 + $0x2e0] sm:$0xff] %v3479
        %3736 = vst [vmem:[#allocation2 + $0x2e8] sm:$0xff] %v3480
        %3737 = vst [vmem:[#allocation2 + $0x2f0] sm:$0xff] %v3481
        %3738 = vst [vmem:[#allocation2 + $0x2f8] sm:$0xff] %v3482
        %3739 = vst [vmem:[#allocation2 + $0x300] sm:$0xff] %v3483
        %3740 = vst [vmem:[#allocation2 + $0x308] sm:$0xff] %v3484
        %3741 = vst [vmem:[#allocation2 + $0x310] sm:$0xff] %v3485
        %3742 = vst [vmem:[#allocation2 + $0x318] sm:$0xff] %v3486
        %3743 = vst [vmem:[#allocation2 + $0x320] sm:$0xff] %v3487
        %3744 = vst [vmem:[#allocation2 + $0x328] sm:$0xff] %v3488
        %3745 = vst [vmem:[#allocation2 + $0x330] sm:$0xff] %v3489
        %3746 = vst [vmem:[#allocation2 + $0x338] sm:$0xff] %v3490
        %3747 = vst [vmem:[#allocation2 + $0x340] sm:$0xff] %v3491
        %3748 = vst [vmem:[#allocation2 + $0x348] sm:$0xff] %v3492
        %3749 = vst [vmem:[#allocation2 + $0x350] sm:$0xff] %v3493
        %3750 = vst [vmem:[#allocation2 + $0x358] sm:$0xff] %v3494
        %3751 = vst [vmem:[#allocation2 + $0x360] sm:$0xff] %v3495
        %3752 = vst [vmem:[#allocation2 + $0x368] sm:$0xff] %v3496
        %3753 = vst [vmem:[#allocation2 + $0x370] sm:$0xff] %v3497
        %3754 = vst [vmem:[#allocation2 + $0x378] sm:$0xff] %v3498
        %3755 = vst [vmem:[#allocation2 + $0x380] sm:$0xff] %v3499
        %3756 = vst [vmem:[#allocation2 + $0x388] sm:$0xff] %v3500
        %3757 = vst [vmem:[#allocation2 + $0x390] sm:$0xff] %v3501
        %3758 = vst [vmem:[#allocation2 + $0x398] sm:$0xff] %v3502
        %3759 = vst [vmem:[#allocation2 + $0x3a0] sm:$0xff] %v3503
        %3760 = vst [vmem:[#allocation2 + $0x3a8] sm:$0xff] %v3504
        %3761 = vst [vmem:[#allocation2 + $0x3b0] sm:$0xff] %v3505
        %3762 = vst [vmem:[#allocation2 + $0x3b8] sm:$0xff] %v3506
        %3763 = vst [vmem:[#allocation2 + $0x3c0] sm:$0xff] %v3507
        %3764 = vst [vmem:[#allocation2 + $0x3c8] sm:$0xff] %v3508
        %3765 = vst [vmem:[#allocation2 + $0x3d0] sm:$0xff] %v3509
        %3766 = vst [vmem:[#allocation2 + $0x3d8] sm:$0xff] %v3510
        %3767 = vst [vmem:[#allocation2 + $0x3e0] sm:$0xff] %v3511
        %3768 = vst [vmem:[#allocation2 + $0x3e8] sm:$0xff] %v3512
        %3769 = vst [vmem:[#allocation2 + $0x3f0] sm:$0xff] %v3513
        %3770 = vst [vmem:[#allocation2 + $0x3f8] sm:$0xff] %v3514
        %3771 = vst [vmem:[#allocation2 + $0x400] sm:$0xff] %v3515
        %3772 = vst [vmem:[#allocation2 + $0x408] sm:$0xff] %v3516
        %3773 = vst [vmem:[#allocation2 + $0x410] sm:$0xff] %v3517
        %3774 = vst [vmem:[#allocation2 + $0x418] sm:$0xff] %v3518
        %3775 = vst [vmem:[#allocation2 + $0x420] sm:$0xff] %v3519
        %3776 = vst [vmem:[#allocation2 + $0x428] sm:$0xff] %v3520
        %3777 = vst [vmem:[#allocation2 + $0x430] sm:$0xff] %v3521
        %3778 = vst [vmem:[#allocation2 + $0x438] sm:$0xff] %v3522
        %3779 = vst [vmem:[#allocation2 + $0x440] sm:$0xff] %v3523
        %3780 = vst [vmem:[#allocation2 + $0x448] sm:$0xff] %v3524
        %3781 = vst [vmem:[#allocation2 + $0x450] sm:$0xff] %v3525
        %3782 = vst [vmem:[#allocation2 + $0x458] sm:$0xff] %v3526
        %3783 = vst [vmem:[#allocation2 + $0x460] sm:$0xff] %v3527
        %3784 = vst [vmem:[#allocation2 + $0x468] sm:$0xff] %v3528
        %3785 = vst [vmem:[#allocation2 + $0x470] sm:$0xff] %v3529
        %3786 = vst [vmem:[#allocation2 + $0x478] sm:$0xff] %v3530
        %3787 = vst [vmem:[#allocation2 + $0x480] sm:$0xff] %v3531
        %3788 = vst [vmem:[#allocation2 + $0x488] sm:$0xff] %v3532
        %3789 = vst [vmem:[#allocation2 + $0x490] sm:$0xff] %v3533
        %3790 = vst [vmem:[#allocation2 + $0x498] sm:$0xff] %v3534
        %3791 = vst [vmem:[#allocation2 + $0x4a0] sm:$0xff] %v3535
        %3792 = vst [vmem:[#allocation2 + $0x4a8] sm:$0xff] %v3536
        %3793 = vst [vmem:[#allocation2 + $0x4b0] sm:$0xff] %v3537
        %3794 = vst [vmem:[#allocation2 + $0x4b8] sm:$0xff] %v3538
        %3795 = vst [vmem:[#allocation2 + $0x4c0] sm:$0xff] %v3539
        %3796 = vst [vmem:[#allocation2 + $0x4c8] sm:$0xff] %v3540
        %3797 = vst [vmem:[#allocation2 + $0x4d0] sm:$0xff] %v3541
        %3798 = vst [vmem:[#allocation2 + $0x4d8] sm:$0xff] %v3542
        %3799 = vst [vmem:[#allocation2 + $0x4e0] sm:$0xff] %v3543
        %3800 = vst [vmem:[#allocation2 + $0x4e8] sm:$0xff] %v3544
        %3801 = vst [vmem:[#allocation2 + $0x4f0] sm:$0xff] %v3545
        %3802 = vst [vmem:[#allocation2 + $0x4f8] sm:$0xff] %v3546
        %3803 = vst [vmem:[#allocation2 + $0x500] sm:$0xff] %v3547
        %3804 = vst [vmem:[#allocation2 + $0x508] sm:$0xff] %v3548
        %3805 = vst [vmem:[#allocation2 + $0x510] sm:$0xff] %v3549
        %3806 = vst [vmem:[#allocation2 + $0x518] sm:$0xff] %v3550
        %3807 = vst [vmem:[#allocation2 + $0x520] sm:$0xff] %v3551
        %3808 = vst [vmem:[#allocation2 + $0x528] sm:$0xff] %v3552
        %3809 = vst [vmem:[#allocation2 + $0x530] sm:$0xff] %v3553
        %3810 = vst [vmem:[#allocation2 + $0x538] sm:$0xff] %v3554
        %3811 = vst [vmem:[#allocation2 + $0x540] sm:$0xff] %v3555
        %3812 = vst [vmem:[#allocation2 + $0x548] sm:$0xff] %v3556
        %3813 = vst [vmem:[#allocation2 + $0x550] sm:$0xff] %v3557
        %3814 = vst [vmem:[#allocation2 + $0x558] sm:$0xff] %v3558
        %3815 = vst [vmem:[#allocation2 + $0x560] sm:$0xff] %v3559
        %3816 = vst [vmem:[#allocation2 + $0x568] sm:$0xff] %v3560
        %3817 = vst [vmem:[#allocation2 + $0x570] sm:$0xff] %v3561
        %3818 = vst [vmem:[#allocation2 + $0x578] sm:$0xff] %v3562
        %3819 = vst [vmem:[#allocation2 + $0x580] sm:$0xff] %v3563
        %3820 = vst [vmem:[#allocation2 + $0x588] sm:$0xff] %v3564
        %3821 = vst [vmem:[#allocation2 + $0x590] sm:$0xff] %v3565
        %3822 = vst [vmem:[#allocation2 + $0x598] sm:$0xff] %v3566
        %3823 = vst [vmem:[#allocation2 + $0x5a0] sm:$0xff] %v3567
        %3824 = vst [vmem:[#allocation2 + $0x5a8] sm:$0xff] %v3568
        %3825 = vst [vmem:[#allocation2 + $0x5b0] sm:$0xff] %v3569
        %3826 = vst [vmem:[#allocation2 + $0x5b8] sm:$0xff] %v3570
        %3827 = vst [vmem:[#allocation2 + $0x5c0] sm:$0xff] %v3571
        %3828 = vst [vmem:[#allocation2 + $0x5c8] sm:$0xff] %v3572
        %3829 = vst [vmem:[#allocation2 + $0x5d0] sm:$0xff] %v3573
        %3830 = vst [vmem:[#allocation2 + $0x5d8] sm:$0xff] %v3574
        %3831 = vst [vmem:[#allocation2 + $0x5e0] sm:$0xff] %v3575
        %3832 = vst [vmem:[#allocation2 + $0x5e8] sm:$0xff] %v3576
        %3833 = vst [vmem:[#allocation2 + $0x5f0] sm:$0xff] %v3577
        %3834 = vst [vmem:[#allocation2 + $0x5f8] sm:$0xff] %v3578
        %3835 = vst [vmem:[#allocation2 + $0x600] sm:$0xff] %v3579
        %3836 = vst [vmem:[#allocation2 + $0x608] sm:$0xff] %v3580
        %3837 = vst [vmem:[#allocation2 + $0x610] sm:$0xff] %v3581
        %3838 = vst [vmem:[#allocation2 + $0x618] sm:$0xff] %v3582
        %3839 = vst [vmem:[#allocation2 + $0x620] sm:$0xff] %v3583
        %3840 = vst [vmem:[#allocation2 + $0x628] sm:$0xff] %v3584
        %3841 = vst [vmem:[#allocation2 + $0x630] sm:$0xff] %v3585
        %3842 = vst [vmem:[#allocation2 + $0x638] sm:$0xff] %v3586
        %3843 = vst [vmem:[#allocation2 + $0x640] sm:$0xff] %v3587
        %3844 = vst [vmem:[#allocation2 + $0x648] sm:$0xff] %v3588
        %3845 = vst [vmem:[#allocation2 + $0x650] sm:$0xff] %v3589
        %3846 = vst [vmem:[#allocation2 + $0x658] sm:$0xff] %v3590
        %3847 = vst [vmem:[#allocation2 + $0x660] sm:$0xff] %v3591
        %3848 = vst [vmem:[#allocation2 + $0x668] sm:$0xff] %v3592
        %3849 = vst [vmem:[#allocation2 + $0x670] sm:$0xff] %v3593
        %3850 = vst [vmem:[#allocation2 + $0x678] sm:$0xff] %v3594
        %3851 = vst [vmem:[#allocation2 + $0x680] sm:$0xff] %v3595
        %3852 = vst [vmem:[#allocation2 + $0x688] sm:$0xff] %v3596
        %3853 = vst [vmem:[#allocation2 + $0x690] sm:$0xff] %v3597
        %3854 = vst [vmem:[#allocation2 + $0x698] sm:$0xff] %v3598
        %3855 = vst [vmem:[#allocation2 + $0x6a0] sm:$0xff] %v3599
        %3856 = vst [vmem:[#allocation2 + $0x6a8] sm:$0xff] %v3600
        %3857 = vst [vmem:[#allocation2 + $0x6b0] sm:$0xff] %v3601
        %3858 = vst [vmem:[#allocation2 + $0x6b8] sm:$0xff] %v3602
        %3859 = vst [vmem:[#allocation2 + $0x6c0] sm:$0xff] %v3603
        %3860 = vst [vmem:[#allocation2 + $0x6c8] sm:$0xff] %v3604
        %3861 = vst [vmem:[#allocation2 + $0x6d0] sm:$0xff] %v3605
        %3862 = vst [vmem:[#allocation2 + $0x6d8] sm:$0xff] %v3606
        %3863 = vst [vmem:[#allocation2 + $0x6e0] sm:$0xff] %v3607
        %3864 = vst [vmem:[#allocation2 + $0x6e8] sm:$0xff] %v3608
        %3865 = vst [vmem:[#allocation2 + $0x6f0] sm:$0xff] %v3609
        %3866 = vst [vmem:[#allocation2 + $0x6f8] sm:$0xff] %v3610
        %3867 = vst [vmem:[#allocation2 + $0x700] sm:$0xff] %v3611
        %3868 = vst [vmem:[#allocation2 + $0x708] sm:$0xff] %v3612
        %3869 = vst [vmem:[#allocation2 + $0x710] sm:$0xff] %v3613
        %3870 = vst [vmem:[#allocation2 + $0x718] sm:$0xff] %v3614
        %3871 = vst [vmem:[#allocation2 + $0x720] sm:$0xff] %v3615
        %3872 = vst [vmem:[#allocation2 + $0x728] sm:$0xff] %v3616
        %3873 = vst [vmem:[#allocation2 + $0x730] sm:$0xff] %v3617
        %3874 = vst [vmem:[#allocation2 + $0x738] sm:$0xff] %v3618
        %3875 = vst [vmem:[#allocation2 + $0x740] sm:$0xff] %v3619
        %3876 = vst [vmem:[#allocation2 + $0x748] sm:$0xff] %v3620
        %3877 = vst [vmem:[#allocation2 + $0x750] sm:$0xff] %v3621
        %3878 = vst [vmem:[#allocation2 + $0x758] sm:$0xff] %v3622
        %3879 = vst [vmem:[#allocation2 + $0x760] sm:$0xff] %v3623
        %3880 = vst [vmem:[#allocation2 + $0x768] sm:$0xff] %v3624
        %3881 = vst [vmem:[#allocation2 + $0x770] sm:$0xff] %v3625
        %3882 = vst [vmem:[#allocation2 + $0x778] sm:$0xff] %v3626
        %3883 = vst [vmem:[#allocation2 + $0x780] sm:$0xff] %v3627
        %3884 = vst [vmem:[#allocation2 + $0x788] sm:$0xff] %v3628
        %3885 = vst [vmem:[#allocation2 + $0x790] sm:$0xff] %v3629
        %3886 = vst [vmem:[#allocation2 + $0x798] sm:$0xff] %v3630
        %3887 = vst [vmem:[#allocation2 + $0x7a0] sm:$0xff] %v3631
        %3888 = vst [vmem:[#allocation2 + $0x7a8] sm:$0xff] %v3632
        %3889 = vst [vmem:[#allocation2 + $0x7b0] sm:$0xff] %v3633
        %3890 = vst [vmem:[#allocation2 + $0x7b8] sm:$0xff] %v3634
        %3891 = vst [vmem:[#allocation2 + $0x7c0] sm:$0xff] %v3635
        %3892 = vst [vmem:[#allocation2 + $0x7c8] sm:$0xff] %v3636
        %3893 = vst [vmem:[#allocation2 + $0x7d0] sm:$0xff] %v3637
        %3894 = vst [vmem:[#allocation2 + $0x7d8] sm:$0xff] %v3638
        %3895 = vst [vmem:[#allocation2 + $0x7e0] sm:$0xff] %v3639
        %3896 = vst [vmem:[#allocation2 + $0x7e8] sm:$0xff] %v3640
        %3897 = vst [vmem:[#allocation2 + $0x7f0] sm:$0xff] %v3641
        %3898 = vst [vmem:[#allocation2 + $0x7f8] sm:$0xff] %v3642
        // Predicated region
        $region49: #{tpu_custom_call.1} parent=31 // pred_check
          %p3899 = pneg %p285
        $region50: #{tpu_custom_call.1} parent=31 // pred_check_branch
          %3901 = sbr.rel (%p3899) target = $region52
        $region51: #{tpu_custom_call.1} parent=31 // pred_region
          %v3902 = vld [vmem:[#allocation2] sm:$0xff]
          %v3903 = vld [vmem:[#allocation2 + $0x8] sm:$0xff]
          %v3904 = vld [vmem:[#allocation2 + $0x10] sm:$0xff]
          %v3905 = vld [vmem:[#allocation2 + $0x18] sm:$0xff]
          %v3906 = vld [vmem:[#allocation2 + $0x20] sm:$0xff]
          %v3907 = vld [vmem:[#allocation2 + $0x28] sm:$0xff]
          %v3908 = vld [vmem:[#allocation2 + $0x30] sm:$0xff]
          %v3909 = vld [vmem:[#allocation2 + $0x38] sm:$0xff]
          %v3910 = vld [vmem:[#allocation2 + $0x40] sm:$0xff]
          %v3911 = vld [vmem:[#allocation2 + $0x48] sm:$0xff]
          %v3912 = vld [vmem:[#allocation2 + $0x50] sm:$0xff]
          %v3913 = vld [vmem:[#allocation2 + $0x58] sm:$0xff]
          %v3914 = vld [vmem:[#allocation2 + $0x60] sm:$0xff]
          %v3915 = vld [vmem:[#allocation2 + $0x68] sm:$0xff]
          %v3916 = vld [vmem:[#allocation2 + $0x70] sm:$0xff]
          %v3917 = vld [vmem:[#allocation2 + $0x78] sm:$0xff]
          %v3918 = vld [vmem:[#allocation2 + $0x80] sm:$0xff]
          %v3919 = vld [vmem:[#allocation2 + $0x88] sm:$0xff]
          %v3920 = vld [vmem:[#allocation2 + $0x90] sm:$0xff]
          %v3921 = vld [vmem:[#allocation2 + $0x98] sm:$0xff]
          %v3922 = vld [vmem:[#allocation2 + $0xa0] sm:$0xff]
          %v3923 = vld [vmem:[#allocation2 + $0xa8] sm:$0xff]
          %v3924 = vld [vmem:[#allocation2 + $0xb0] sm:$0xff]
          %v3925 = vld [vmem:[#allocation2 + $0xb8] sm:$0xff]
          %v3926 = vld [vmem:[#allocation2 + $0xc0] sm:$0xff]
          %v3927 = vld [vmem:[#allocation2 + $0xc8] sm:$0xff]
          %v3928 = vld [vmem:[#allocation2 + $0xd0] sm:$0xff]
          %v3929 = vld [vmem:[#allocation2 + $0xd8] sm:$0xff]
          %v3930 = vld [vmem:[#allocation2 + $0xe0] sm:$0xff]
          %v3931 = vld [vmem:[#allocation2 + $0xe8] sm:$0xff]
          %v3932 = vld [vmem:[#allocation2 + $0xf0] sm:$0xff]
          %v3933 = vld [vmem:[#allocation2 + $0xf8] sm:$0xff]
          %v3934 = vld [vmem:[#allocation2 + $0x100] sm:$0xff]
          %v3935 = vld [vmem:[#allocation2 + $0x108] sm:$0xff]
          %v3936 = vld [vmem:[#allocation2 + $0x110] sm:$0xff]
          %v3937 = vld [vmem:[#allocation2 + $0x118] sm:$0xff]
          %v3938 = vld [vmem:[#allocation2 + $0x120] sm:$0xff]
          %v3939 = vld [vmem:[#allocation2 + $0x128] sm:$0xff]
          %v3940 = vld [vmem:[#allocation2 + $0x130] sm:$0xff]
          %v3941 = vld [vmem:[#allocation2 + $0x138] sm:$0xff]
          %v3942 = vld [vmem:[#allocation2 + $0x140] sm:$0xff]
          %v3943 = vld [vmem:[#allocation2 + $0x148] sm:$0xff]
          %v3944 = vld [vmem:[#allocation2 + $0x150] sm:$0xff]
          %v3945 = vld [vmem:[#allocation2 + $0x158] sm:$0xff]
          %v3946 = vld [vmem:[#allocation2 + $0x160] sm:$0xff]
          %v3947 = vld [vmem:[#allocation2 + $0x168] sm:$0xff]
          %v3948 = vld [vmem:[#allocation2 + $0x170] sm:$0xff]
          %v3949 = vld [vmem:[#allocation2 + $0x178] sm:$0xff]
          %v3950 = vld [vmem:[#allocation2 + $0x180] sm:$0xff]
          %v3951 = vld [vmem:[#allocation2 + $0x188] sm:$0xff]
          %v3952 = vld [vmem:[#allocation2 + $0x190] sm:$0xff]
          %v3953 = vld [vmem:[#allocation2 + $0x198] sm:$0xff]
          %v3954 = vld [vmem:[#allocation2 + $0x1a0] sm:$0xff]
          %v3955 = vld [vmem:[#allocation2 + $0x1a8] sm:$0xff]
          %v3956 = vld [vmem:[#allocation2 + $0x1b0] sm:$0xff]
          %v3957 = vld [vmem:[#allocation2 + $0x1b8] sm:$0xff]
          %v3958 = vld [vmem:[#allocation2 + $0x1c0] sm:$0xff]
          %v3959 = vld [vmem:[#allocation2 + $0x1c8] sm:$0xff]
          %v3960 = vld [vmem:[#allocation2 + $0x1d0] sm:$0xff]
          %v3961 = vld [vmem:[#allocation2 + $0x1d8] sm:$0xff]
          %v3962 = vld [vmem:[#allocation2 + $0x1e0] sm:$0xff]
          %v3963 = vld [vmem:[#allocation2 + $0x1e8] sm:$0xff]
          %v3964 = vld [vmem:[#allocation2 + $0x1f0] sm:$0xff]
          %v3965 = vld [vmem:[#allocation2 + $0x1f8] sm:$0xff]
          %v3966 = vld [vmem:[#allocation2 + $0x200] sm:$0xff]
          %v3967 = vld [vmem:[#allocation2 + $0x208] sm:$0xff]
          %v3968 = vld [vmem:[#allocation2 + $0x210] sm:$0xff]
          %v3969 = vld [vmem:[#allocation2 + $0x218] sm:$0xff]
          %v3970 = vld [vmem:[#allocation2 + $0x220] sm:$0xff]
          %v3971 = vld [vmem:[#allocation2 + $0x228] sm:$0xff]
          %v3972 = vld [vmem:[#allocation2 + $0x230] sm:$0xff]
          %v3973 = vld [vmem:[#allocation2 + $0x238] sm:$0xff]
          %v3974 = vld [vmem:[#allocation2 + $0x240] sm:$0xff]
          %v3975 = vld [vmem:[#allocation2 + $0x248] sm:$0xff]
          %v3976 = vld [vmem:[#allocation2 + $0x250] sm:$0xff]
          %v3977 = vld [vmem:[#allocation2 + $0x258] sm:$0xff]
          %v3978 = vld [vmem:[#allocation2 + $0x260] sm:$0xff]
          %v3979 = vld [vmem:[#allocation2 + $0x268] sm:$0xff]
          %v3980 = vld [vmem:[#allocation2 + $0x270] sm:$0xff]
          %v3981 = vld [vmem:[#allocation2 + $0x278] sm:$0xff]
          %v3982 = vld [vmem:[#allocation2 + $0x280] sm:$0xff]
          %v3983 = vld [vmem:[#allocation2 + $0x288] sm:$0xff]
          %v3984 = vld [vmem:[#allocation2 + $0x290] sm:$0xff]
          %v3985 = vld [vmem:[#allocation2 + $0x298] sm:$0xff]
          %v3986 = vld [vmem:[#allocation2 + $0x2a0] sm:$0xff]
          %v3987 = vld [vmem:[#allocation2 + $0x2a8] sm:$0xff]
          %v3988 = vld [vmem:[#allocation2 + $0x2b0] sm:$0xff]
          %v3989 = vld [vmem:[#allocation2 + $0x2b8] sm:$0xff]
          %v3990 = vld [vmem:[#allocation2 + $0x2c0] sm:$0xff]
          %v3991 = vld [vmem:[#allocation2 + $0x2c8] sm:$0xff]
          %v3992 = vld [vmem:[#allocation2 + $0x2d0] sm:$0xff]
          %v3993 = vld [vmem:[#allocation2 + $0x2d8] sm:$0xff]
          %v3994 = vld [vmem:[#allocation2 + $0x2e0] sm:$0xff]
          %v3995 = vld [vmem:[#allocation2 + $0x2e8] sm:$0xff]
          %v3996 = vld [vmem:[#allocation2 + $0x2f0] sm:$0xff]
          %v3997 = vld [vmem:[#allocation2 + $0x2f8] sm:$0xff]
          %v3998 = vld [vmem:[#allocation2 + $0x300] sm:$0xff]
          %v3999 = vld [vmem:[#allocation2 + $0x308] sm:$0xff]
          %v4000 = vld [vmem:[#allocation2 + $0x310] sm:$0xff]
          %v4001 = vld [vmem:[#allocation2 + $0x318] sm:$0xff]
          %v4002 = vld [vmem:[#allocation2 + $0x320] sm:$0xff]
          %v4003 = vld [vmem:[#allocation2 + $0x328] sm:$0xff]
          %v4004 = vld [vmem:[#allocation2 + $0x330] sm:$0xff]
          %v4005 = vld [vmem:[#allocation2 + $0x338] sm:$0xff]
          %v4006 = vld [vmem:[#allocation2 + $0x340] sm:$0xff]
          %v4007 = vld [vmem:[#allocation2 + $0x348] sm:$0xff]
          %v4008 = vld [vmem:[#allocation2 + $0x350] sm:$0xff]
          %v4009 = vld [vmem:[#allocation2 + $0x358] sm:$0xff]
          %v4010 = vld [vmem:[#allocation2 + $0x360] sm:$0xff]
          %v4011 = vld [vmem:[#allocation2 + $0x368] sm:$0xff]
          %v4012 = vld [vmem:[#allocation2 + $0x370] sm:$0xff]
          %v4013 = vld [vmem:[#allocation2 + $0x378] sm:$0xff]
          %v4014 = vld [vmem:[#allocation2 + $0x380] sm:$0xff]
          %v4015 = vld [vmem:[#allocation2 + $0x388] sm:$0xff]
          %v4016 = vld [vmem:[#allocation2 + $0x390] sm:$0xff]
          %v4017 = vld [vmem:[#allocation2 + $0x398] sm:$0xff]
          %v4018 = vld [vmem:[#allocation2 + $0x3a0] sm:$0xff]
          %v4019 = vld [vmem:[#allocation2 + $0x3a8] sm:$0xff]
          %v4020 = vld [vmem:[#allocation2 + $0x3b0] sm:$0xff]
          %v4021 = vld [vmem:[#allocation2 + $0x3b8] sm:$0xff]
          %v4022 = vld [vmem:[#allocation2 + $0x3c0] sm:$0xff]
          %v4023 = vld [vmem:[#allocation2 + $0x3c8] sm:$0xff]
          %v4024 = vld [vmem:[#allocation2 + $0x3d0] sm:$0xff]
          %v4025 = vld [vmem:[#allocation2 + $0x3d8] sm:$0xff]
          %v4026 = vld [vmem:[#allocation2 + $0x3e0] sm:$0xff]
          %v4027 = vld [vmem:[#allocation2 + $0x3e8] sm:$0xff]
          %v4028 = vld [vmem:[#allocation2 + $0x3f0] sm:$0xff]
          %v4029 = vld [vmem:[#allocation2 + $0x3f8] sm:$0xff]
          %v4030 = vld [vmem:[#allocation2 + $0x400] sm:$0xff]
          %v4031 = vld [vmem:[#allocation2 + $0x408] sm:$0xff]
          %v4032 = vld [vmem:[#allocation2 + $0x410] sm:$0xff]
          %v4033 = vld [vmem:[#allocation2 + $0x418] sm:$0xff]
          %v4034 = vld [vmem:[#allocation2 + $0x420] sm:$0xff]
          %v4035 = vld [vmem:[#allocation2 + $0x428] sm:$0xff]
          %v4036 = vld [vmem:[#allocation2 + $0x430] sm:$0xff]
          %v4037 = vld [vmem:[#allocation2 + $0x438] sm:$0xff]
          %v4038 = vld [vmem:[#allocation2 + $0x440] sm:$0xff]
          %v4039 = vld [vmem:[#allocation2 + $0x448] sm:$0xff]
          %v4040 = vld [vmem:[#allocation2 + $0x450] sm:$0xff]
          %v4041 = vld [vmem:[#allocation2 + $0x458] sm:$0xff]
          %v4042 = vld [vmem:[#allocation2 + $0x460] sm:$0xff]
          %v4043 = vld [vmem:[#allocation2 + $0x468] sm:$0xff]
          %v4044 = vld [vmem:[#allocation2 + $0x470] sm:$0xff]
          %v4045 = vld [vmem:[#allocation2 + $0x478] sm:$0xff]
          %v4046 = vld [vmem:[#allocation2 + $0x480] sm:$0xff]
          %v4047 = vld [vmem:[#allocation2 + $0x488] sm:$0xff]
          %v4048 = vld [vmem:[#allocation2 + $0x490] sm:$0xff]
          %v4049 = vld [vmem:[#allocation2 + $0x498] sm:$0xff]
          %v4050 = vld [vmem:[#allocation2 + $0x4a0] sm:$0xff]
          %v4051 = vld [vmem:[#allocation2 + $0x4a8] sm:$0xff]
          %v4052 = vld [vmem:[#allocation2 + $0x4b0] sm:$0xff]
          %v4053 = vld [vmem:[#allocation2 + $0x4b8] sm:$0xff]
          %v4054 = vld [vmem:[#allocation2 + $0x4c0] sm:$0xff]
          %v4055 = vld [vmem:[#allocation2 + $0x4c8] sm:$0xff]
          %v4056 = vld [vmem:[#allocation2 + $0x4d0] sm:$0xff]
          %v4057 = vld [vmem:[#allocation2 + $0x4d8] sm:$0xff]
          %v4058 = vld [vmem:[#allocation2 + $0x4e0] sm:$0xff]
          %v4059 = vld [vmem:[#allocation2 + $0x4e8] sm:$0xff]
          %v4060 = vld [vmem:[#allocation2 + $0x4f0] sm:$0xff]
          %v4061 = vld [vmem:[#allocation2 + $0x4f8] sm:$0xff]
          %v4062 = vld [vmem:[#allocation2 + $0x500] sm:$0xff]
          %v4063 = vld [vmem:[#allocation2 + $0x508] sm:$0xff]
          %v4064 = vld [vmem:[#allocation2 + $0x510] sm:$0xff]
          %v4065 = vld [vmem:[#allocation2 + $0x518] sm:$0xff]
          %v4066 = vld [vmem:[#allocation2 + $0x520] sm:$0xff]
          %v4067 = vld [vmem:[#allocation2 + $0x528] sm:$0xff]
          %v4068 = vld [vmem:[#allocation2 + $0x530] sm:$0xff]
          %v4069 = vld [vmem:[#allocation2 + $0x538] sm:$0xff]
          %v4070 = vld [vmem:[#allocation2 + $0x540] sm:$0xff]
          %v4071 = vld [vmem:[#allocation2 + $0x548] sm:$0xff]
          %v4072 = vld [vmem:[#allocation2 + $0x550] sm:$0xff]
          %v4073 = vld [vmem:[#allocation2 + $0x558] sm:$0xff]
          %v4074 = vld [vmem:[#allocation2 + $0x560] sm:$0xff]
          %v4075 = vld [vmem:[#allocation2 + $0x568] sm:$0xff]
          %v4076 = vld [vmem:[#allocation2 + $0x570] sm:$0xff]
          %v4077 = vld [vmem:[#allocation2 + $0x578] sm:$0xff]
          %v4078 = vld [vmem:[#allocation2 + $0x580] sm:$0xff]
          %v4079 = vld [vmem:[#allocation2 + $0x588] sm:$0xff]
          %v4080 = vld [vmem:[#allocation2 + $0x590] sm:$0xff]
          %v4081 = vld [vmem:[#allocation2 + $0x598] sm:$0xff]
          %v4082 = vld [vmem:[#allocation2 + $0x5a0] sm:$0xff]
          %v4083 = vld [vmem:[#allocation2 + $0x5a8] sm:$0xff]
          %v4084 = vld [vmem:[#allocation2 + $0x5b0] sm:$0xff]
          %v4085 = vld [vmem:[#allocation2 + $0x5b8] sm:$0xff]
          %v4086 = vld [vmem:[#allocation2 + $0x5c0] sm:$0xff]
          %v4087 = vld [vmem:[#allocation2 + $0x5c8] sm:$0xff]
          %v4088 = vld [vmem:[#allocation2 + $0x5d0] sm:$0xff]
          %v4089 = vld [vmem:[#allocation2 + $0x5d8] sm:$0xff]
          %v4090 = vld [vmem:[#allocation2 + $0x5e0] sm:$0xff]
          %v4091 = vld [vmem:[#allocation2 + $0x5e8] sm:$0xff]
          %v4092 = vld [vmem:[#allocation2 + $0x5f0] sm:$0xff]
          %v4093 = vld [vmem:[#allocation2 + $0x5f8] sm:$0xff]
          %v4094 = vld [vmem:[#allocation2 + $0x600] sm:$0xff]
          %v4095 = vld [vmem:[#allocation2 + $0x608] sm:$0xff]
          %v4096 = vld [vmem:[#allocation2 + $0x610] sm:$0xff]
          %v4097 = vld [vmem:[#allocation2 + $0x618] sm:$0xff]
          %v4098 = vld [vmem:[#allocation2 + $0x620] sm:$0xff]
          %v4099 = vld [vmem:[#allocation2 + $0x628] sm:$0xff]
          %v4100 = vld [vmem:[#allocation2 + $0x630] sm:$0xff]
          %v4101 = vld [vmem:[#allocation2 + $0x638] sm:$0xff]
          %v4102 = vld [vmem:[#allocation2 + $0x640] sm:$0xff]
          %v4103 = vld [vmem:[#allocation2 + $0x648] sm:$0xff]
          %v4104 = vld [vmem:[#allocation2 + $0x650] sm:$0xff]
          %v4105 = vld [vmem:[#allocation2 + $0x658] sm:$0xff]
          %v4106 = vld [vmem:[#allocation2 + $0x660] sm:$0xff]
          %v4107 = vld [vmem:[#allocation2 + $0x668] sm:$0xff]
          %v4108 = vld [vmem:[#allocation2 + $0x670] sm:$0xff]
          %v4109 = vld [vmem:[#allocation2 + $0x678] sm:$0xff]
          %v4110 = vld [vmem:[#allocation2 + $0x680] sm:$0xff]
          %v4111 = vld [vmem:[#allocation2 + $0x688] sm:$0xff]
          %v4112 = vld [vmem:[#allocation2 + $0x690] sm:$0xff]
          %v4113 = vld [vmem:[#allocation2 + $0x698] sm:$0xff]
          %v4114 = vld [vmem:[#allocation2 + $0x6a0] sm:$0xff]
          %v4115 = vld [vmem:[#allocation2 + $0x6a8] sm:$0xff]
          %v4116 = vld [vmem:[#allocation2 + $0x6b0] sm:$0xff]
          %v4117 = vld [vmem:[#allocation2 + $0x6b8] sm:$0xff]
          %v4118 = vld [vmem:[#allocation2 + $0x6c0] sm:$0xff]
          %v4119 = vld [vmem:[#allocation2 + $0x6c8] sm:$0xff]
          %v4120 = vld [vmem:[#allocation2 + $0x6d0] sm:$0xff]
          %v4121 = vld [vmem:[#allocation2 + $0x6d8] sm:$0xff]
          %v4122 = vld [vmem:[#allocation2 + $0x6e0] sm:$0xff]
          %v4123 = vld [vmem:[#allocation2 + $0x6e8] sm:$0xff]
          %v4124 = vld [vmem:[#allocation2 + $0x6f0] sm:$0xff]
          %v4125 = vld [vmem:[#allocation2 + $0x6f8] sm:$0xff]
          %v4126 = vld [vmem:[#allocation2 + $0x700] sm:$0xff]
          %v4127 = vld [vmem:[#allocation2 + $0x708] sm:$0xff]
          %v4128 = vld [vmem:[#allocation2 + $0x710] sm:$0xff]
          %v4129 = vld [vmem:[#allocation2 + $0x718] sm:$0xff]
          %v4130 = vld [vmem:[#allocation2 + $0x720] sm:$0xff]
          %v4131 = vld [vmem:[#allocation2 + $0x728] sm:$0xff]
          %v4132 = vld [vmem:[#allocation2 + $0x730] sm:$0xff]
          %v4133 = vld [vmem:[#allocation2 + $0x738] sm:$0xff]
          %v4134 = vld [vmem:[#allocation2 + $0x740] sm:$0xff]
          %v4135 = vld [vmem:[#allocation2 + $0x748] sm:$0xff]
          %v4136 = vld [vmem:[#allocation2 + $0x750] sm:$0xff]
          %v4137 = vld [vmem:[#allocation2 + $0x758] sm:$0xff]
          %v4138 = vld [vmem:[#allocation2 + $0x760] sm:$0xff]
          %v4139 = vld [vmem:[#allocation2 + $0x768] sm:$0xff]
          %v4140 = vld [vmem:[#allocation2 + $0x770] sm:$0xff]
          %v4141 = vld [vmem:[#allocation2 + $0x778] sm:$0xff]
          %v4142 = vld [vmem:[#allocation2 + $0x780] sm:$0xff]
          %v4143 = vld [vmem:[#allocation2 + $0x788] sm:$0xff]
          %v4144 = vld [vmem:[#allocation2 + $0x790] sm:$0xff]
          %v4145 = vld [vmem:[#allocation2 + $0x798] sm:$0xff]
          %v4146 = vld [vmem:[#allocation2 + $0x7a0] sm:$0xff]
          %v4147 = vld [vmem:[#allocation2 + $0x7a8] sm:$0xff]
          %v4148 = vld [vmem:[#allocation2 + $0x7b0] sm:$0xff]
          %v4149 = vld [vmem:[#allocation2 + $0x7b8] sm:$0xff]
          %v4150 = vld [vmem:[#allocation2 + $0x7c0] sm:$0xff]
          %v4151 = vld [vmem:[#allocation2 + $0x7c8] sm:$0xff]
          %v4152 = vld [vmem:[#allocation2 + $0x7d0] sm:$0xff]
          %v4153 = vld [vmem:[#allocation2 + $0x7d8] sm:$0xff]
          %v4154 = vld [vmem:[#allocation2 + $0x7e0] sm:$0xff]
          %v4155 = vld [vmem:[#allocation2 + $0x7e8] sm:$0xff]
          %v4156 = vld [vmem:[#allocation2 + $0x7f0] sm:$0xff]
          %v4157 = vld [vmem:[#allocation2 + $0x7f8] sm:$0xff]
          %v4158 = vpack.c.bf16 %v3906, %v3902
          %v4159 = vpack.c.bf16 %v3907, %v3903
          %v4160 = vpack.c.bf16 %v3908, %v3904
          %v4161 = vpack.c.bf16 %v3909, %v3905
          %v4162 = vpack.c.bf16 %v3914, %v3910
          %v4163 = vpack.c.bf16 %v3915, %v3911
          %v4164 = vpack.c.bf16 %v3916, %v3912
          %v4165 = vpack.c.bf16 %v3917, %v3913
          %v4166 = vpack.c.bf16 %v3922, %v3918
          %v4167 = vpack.c.bf16 %v3923, %v3919
          %v4168 = vpack.c.bf16 %v3924, %v3920
          %v4169 = vpack.c.bf16 %v3925, %v3921
          %v4170 = vpack.c.bf16 %v3930, %v3926
          %v4171 = vpack.c.bf16 %v3931, %v3927
          %v4172 = vpack.c.bf16 %v3932, %v3928
          %v4173 = vpack.c.bf16 %v3933, %v3929
          %v4174 = vpack.c.bf16 %v3938, %v3934
          %v4175 = vpack.c.bf16 %v3939, %v3935
          %v4176 = vpack.c.bf16 %v3940, %v3936
          %v4177 = vpack.c.bf16 %v3941, %v3937
          %v4178 = vpack.c.bf16 %v3946, %v3942
          %v4179 = vpack.c.bf16 %v3947, %v3943
          %v4180 = vpack.c.bf16 %v3948, %v3944
          %v4181 = vpack.c.bf16 %v3949, %v3945
          %v4182 = vpack.c.bf16 %v3954, %v3950
          %v4183 = vpack.c.bf16 %v3955, %v3951
          %v4184 = vpack.c.bf16 %v3956, %v3952
          %v4185 = vpack.c.bf16 %v3957, %v3953
          %v4186 = vpack.c.bf16 %v3962, %v3958
          %v4187 = vpack.c.bf16 %v3963, %v3959
          %v4188 = vpack.c.bf16 %v3964, %v3960
          %v4189 = vpack.c.bf16 %v3965, %v3961
          %v4190 = vpack.c.bf16 %v3970, %v3966
          %v4191 = vpack.c.bf16 %v3971, %v3967
          %v4192 = vpack.c.bf16 %v3972, %v3968
          %v4193 = vpack.c.bf16 %v3973, %v3969
          %v4194 = vpack.c.bf16 %v3978, %v3974
          %v4195 = vpack.c.bf16 %v3979, %v3975
          %v4196 = vpack.c.bf16 %v3980, %v3976
          %v4197 = vpack.c.bf16 %v3981, %v3977
          %v4198 = vpack.c.bf16 %v3986, %v3982
          %v4199 = vpack.c.bf16 %v3987, %v3983
          %v4200 = vpack.c.bf16 %v3988, %v3984
          %v4201 = vpack.c.bf16 %v3989, %v3985
          %v4202 = vpack.c.bf16 %v3994, %v3990
          %v4203 = vpack.c.bf16 %v3995, %v3991
          %v4204 = vpack.c.bf16 %v3996, %v3992
          %v4205 = vpack.c.bf16 %v3997, %v3993
          %v4206 = vpack.c.bf16 %v4002, %v3998
          %v4207 = vpack.c.bf16 %v4003, %v3999
          %v4208 = vpack.c.bf16 %v4004, %v4000
          %v4209 = vpack.c.bf16 %v4005, %v4001
          %v4210 = vpack.c.bf16 %v4010, %v4006
          %v4211 = vpack.c.bf16 %v4011, %v4007
          %v4212 = vpack.c.bf16 %v4012, %v4008
          %v4213 = vpack.c.bf16 %v4013, %v4009
          %v4214 = vpack.c.bf16 %v4018, %v4014
          %v4215 = vpack.c.bf16 %v4019, %v4015
          %v4216 = vpack.c.bf16 %v4020, %v4016
          %v4217 = vpack.c.bf16 %v4021, %v4017
          %v4218 = vpack.c.bf16 %v4026, %v4022
          %v4219 = vpack.c.bf16 %v4027, %v4023
          %v4220 = vpack.c.bf16 %v4028, %v4024
          %v4221 = vpack.c.bf16 %v4029, %v4025
          %v4222 = vpack.c.bf16 %v4034, %v4030
          %v4223 = vpack.c.bf16 %v4035, %v4031
          %v4224 = vpack.c.bf16 %v4036, %v4032
          %v4225 = vpack.c.bf16 %v4037, %v4033
          %v4226 = vpack.c.bf16 %v4042, %v4038
          %v4227 = vpack.c.bf16 %v4043, %v4039
          %v4228 = vpack.c.bf16 %v4044, %v4040
          %v4229 = vpack.c.bf16 %v4045, %v4041
          %v4230 = vpack.c.bf16 %v4050, %v4046
          %v4231 = vpack.c.bf16 %v4051, %v4047
          %v4232 = vpack.c.bf16 %v4052, %v4048
          %v4233 = vpack.c.bf16 %v4053, %v4049
          %v4234 = vpack.c.bf16 %v4058, %v4054
          %v4235 = vpack.c.bf16 %v4059, %v4055
          %v4236 = vpack.c.bf16 %v4060, %v4056
          %v4237 = vpack.c.bf16 %v4061, %v4057
          %v4238 = vpack.c.bf16 %v4066, %v4062
          %v4239 = vpack.c.bf16 %v4067, %v4063
          %v4240 = vpack.c.bf16 %v4068, %v4064
          %v4241 = vpack.c.bf16 %v4069, %v4065
          %v4242 = vpack.c.bf16 %v4074, %v4070
          %v4243 = vpack.c.bf16 %v4075, %v4071
          %v4244 = vpack.c.bf16 %v4076, %v4072
          %v4245 = vpack.c.bf16 %v4077, %v4073
          %v4246 = vpack.c.bf16 %v4082, %v4078
          %v4247 = vpack.c.bf16 %v4083, %v4079
          %v4248 = vpack.c.bf16 %v4084, %v4080
          %v4249 = vpack.c.bf16 %v4085, %v4081
          %v4250 = vpack.c.bf16 %v4090, %v4086
          %v4251 = vpack.c.bf16 %v4091, %v4087
          %v4252 = vpack.c.bf16 %v4092, %v4088
          %v4253 = vpack.c.bf16 %v4093, %v4089
          %v4254 = vpack.c.bf16 %v4098, %v4094
          %v4255 = vpack.c.bf16 %v4099, %v4095
          %v4256 = vpack.c.bf16 %v4100, %v4096
          %v4257 = vpack.c.bf16 %v4101, %v4097
          %v4258 = vpack.c.bf16 %v4106, %v4102
          %v4259 = vpack.c.bf16 %v4107, %v4103
          %v4260 = vpack.c.bf16 %v4108, %v4104
          %v4261 = vpack.c.bf16 %v4109, %v4105
          %v4262 = vpack.c.bf16 %v4114, %v4110
          %v4263 = vpack.c.bf16 %v4115, %v4111
          %v4264 = vpack.c.bf16 %v4116, %v4112
          %v4265 = vpack.c.bf16 %v4117, %v4113
          %v4266 = vpack.c.bf16 %v4122, %v4118
          %v4267 = vpack.c.bf16 %v4123, %v4119
          %v4268 = vpack.c.bf16 %v4124, %v4120
          %v4269 = vpack.c.bf16 %v4125, %v4121
          %v4270 = vpack.c.bf16 %v4130, %v4126
          %v4271 = vpack.c.bf16 %v4131, %v4127
          %v4272 = vpack.c.bf16 %v4132, %v4128
          %v4273 = vpack.c.bf16 %v4133, %v4129
          %v4274 = vpack.c.bf16 %v4138, %v4134
          %v4275 = vpack.c.bf16 %v4139, %v4135
          %v4276 = vpack.c.bf16 %v4140, %v4136
          %v4277 = vpack.c.bf16 %v4141, %v4137
          %v4278 = vpack.c.bf16 %v4146, %v4142
          %v4279 = vpack.c.bf16 %v4147, %v4143
          %v4280 = vpack.c.bf16 %v4148, %v4144
          %v4281 = vpack.c.bf16 %v4149, %v4145
          %v4282 = vpack.c.bf16 %v4154, %v4150
          %v4283 = vpack.c.bf16 %v4155, %v4151
          %v4284 = vpack.c.bf16 %v4156, %v4152
          %v4285 = vpack.c.bf16 %v4157, %v4153
          %v4414 = vunpack.c.l.b16 %v4158
          %v4415 = vunpack.c.l.b16 %v4159
          %v4416 = vunpack.c.l.b16 %v4160
          %v4417 = vunpack.c.l.b16 %v4161
          %v4418 = vunpack.c.h.b16 %v4158
          %v4419 = vunpack.c.h.b16 %v4159
          %v4420 = vunpack.c.h.b16 %v4160
          %v4421 = vunpack.c.h.b16 %v4161
          %v4422 = vunpack.c.l.b16 %v4162
          %v4423 = vunpack.c.l.b16 %v4163
          %v4424 = vunpack.c.l.b16 %v4164
          %v4425 = vunpack.c.l.b16 %v4165
          %v4426 = vunpack.c.h.b16 %v4162
          %v4427 = vunpack.c.h.b16 %v4163
          %v4428 = vunpack.c.h.b16 %v4164
          %v4429 = vunpack.c.h.b16 %v4165
          %v4430 = vunpack.c.l.b16 %v4166
          %v4431 = vunpack.c.l.b16 %v4167
          %v4432 = vunpack.c.l.b16 %v4168
          %v4433 = vunpack.c.l.b16 %v4169
          %v4434 = vunpack.c.h.b16 %v4166
          %v4435 = vunpack.c.h.b16 %v4167
          %v4436 = vunpack.c.h.b16 %v4168
          %v4437 = vunpack.c.h.b16 %v4169
          %v4438 = vunpack.c.l.b16 %v4170
          %v4439 = vunpack.c.l.b16 %v4171
          %v4440 = vunpack.c.l.b16 %v4172
          %v4441 = vunpack.c.l.b16 %v4173
          %v4442 = vunpack.c.h.b16 %v4170
          %v4443 = vunpack.c.h.b16 %v4171
          %v4444 = vunpack.c.h.b16 %v4172
          %v4445 = vunpack.c.h.b16 %v4173
          %v4446 = vunpack.c.l.b16 %v4174
          %v4447 = vunpack.c.l.b16 %v4175
          %v4448 = vunpack.c.l.b16 %v4176
          %v4449 = vunpack.c.l.b16 %v4177
          %v4450 = vunpack.c.h.b16 %v4174
          %v4451 = vunpack.c.h.b16 %v4175
          %v4452 = vunpack.c.h.b16 %v4176
          %v4453 = vunpack.c.h.b16 %v4177
          %v4454 = vunpack.c.l.b16 %v4178
          %v4455 = vunpack.c.l.b16 %v4179
          %v4456 = vunpack.c.l.b16 %v4180
          %v4457 = vunpack.c.l.b16 %v4181
          %v4458 = vunpack.c.h.b16 %v4178
          %v4459 = vunpack.c.h.b16 %v4179
          %v4460 = vunpack.c.h.b16 %v4180
          %v4461 = vunpack.c.h.b16 %v4181
          %v4462 = vunpack.c.l.b16 %v4182
          %v4463 = vunpack.c.l.b16 %v4183
          %v4464 = vunpack.c.l.b16 %v4184
          %v4465 = vunpack.c.l.b16 %v4185
          %v4466 = vunpack.c.h.b16 %v4182
          %v4467 = vunpack.c.h.b16 %v4183
          %v4468 = vunpack.c.h.b16 %v4184
          %v4469 = vunpack.c.h.b16 %v4185
          %v4470 = vunpack.c.l.b16 %v4186
          %v4471 = vunpack.c.l.b16 %v4187
          %v4472 = vunpack.c.l.b16 %v4188
          %v4473 = vunpack.c.l.b16 %v4189
          %v4474 = vunpack.c.h.b16 %v4186
          %v4475 = vunpack.c.h.b16 %v4187
          %v4476 = vunpack.c.h.b16 %v4188
          %v4477 = vunpack.c.h.b16 %v4189
          %v4478 = vunpack.c.l.b16 %v4190
          %v4479 = vunpack.c.l.b16 %v4191
          %v4480 = vunpack.c.l.b16 %v4192
          %v4481 = vunpack.c.l.b16 %v4193
          %v4482 = vunpack.c.h.b16 %v4190
          %v4483 = vunpack.c.h.b16 %v4191
          %v4484 = vunpack.c.h.b16 %v4192
          %v4485 = vunpack.c.h.b16 %v4193
          %v4486 = vunpack.c.l.b16 %v4194
          %v4487 = vunpack.c.l.b16 %v4195
          %v4488 = vunpack.c.l.b16 %v4196
          %v4489 = vunpack.c.l.b16 %v4197
          %v4490 = vunpack.c.h.b16 %v4194
          %v4491 = vunpack.c.h.b16 %v4195
          %v4492 = vunpack.c.h.b16 %v4196
          %v4493 = vunpack.c.h.b16 %v4197
          %v4494 = vunpack.c.l.b16 %v4198
          %v4495 = vunpack.c.l.b16 %v4199
          %v4496 = vunpack.c.l.b16 %v4200
          %v4497 = vunpack.c.l.b16 %v4201
          %v4498 = vunpack.c.h.b16 %v4198
          %v4499 = vunpack.c.h.b16 %v4199
          %v4500 = vunpack.c.h.b16 %v4200
          %v4501 = vunpack.c.h.b16 %v4201
          %v4502 = vunpack.c.l.b16 %v4202
          %v4503 = vunpack.c.l.b16 %v4203
          %v4504 = vunpack.c.l.b16 %v4204
          %v4505 = vunpack.c.l.b16 %v4205
          %v4506 = vunpack.c.h.b16 %v4202
          %v4507 = vunpack.c.h.b16 %v4203
          %v4508 = vunpack.c.h.b16 %v4204
          %v4509 = vunpack.c.h.b16 %v4205
          %v4510 = vunpack.c.l.b16 %v4206
          %v4511 = vunpack.c.l.b16 %v4207
          %v4512 = vunpack.c.l.b16 %v4208
          %v4513 = vunpack.c.l.b16 %v4209
          %v4514 = vunpack.c.h.b16 %v4206
          %v4515 = vunpack.c.h.b16 %v4207
          %v4516 = vunpack.c.h.b16 %v4208
          %v4517 = vunpack.c.h.b16 %v4209
          %v4518 = vunpack.c.l.b16 %v4210
          %v4519 = vunpack.c.l.b16 %v4211
          %v4520 = vunpack.c.l.b16 %v4212
          %v4521 = vunpack.c.l.b16 %v4213
          %v4522 = vunpack.c.h.b16 %v4210
          %v4523 = vunpack.c.h.b16 %v4211
          %v4524 = vunpack.c.h.b16 %v4212
          %v4525 = vunpack.c.h.b16 %v4213
          %v4526 = vunpack.c.l.b16 %v4214
          %v4527 = vunpack.c.l.b16 %v4215
          %v4528 = vunpack.c.l.b16 %v4216
          %v4529 = vunpack.c.l.b16 %v4217
          %v4530 = vunpack.c.h.b16 %v4214
          %v4531 = vunpack.c.h.b16 %v4215
          %v4532 = vunpack.c.h.b16 %v4216
          %v4533 = vunpack.c.h.b16 %v4217
          %v4534 = vunpack.c.l.b16 %v4218
          %v4535 = vunpack.c.l.b16 %v4219
          %v4536 = vunpack.c.l.b16 %v4220
          %v4537 = vunpack.c.l.b16 %v4221
          %v4538 = vunpack.c.h.b16 %v4218
          %v4539 = vunpack.c.h.b16 %v4219
          %v4540 = vunpack.c.h.b16 %v4220
          %v4541 = vunpack.c.h.b16 %v4221
          %v4542 = vunpack.c.l.b16 %v4222
          %v4543 = vunpack.c.l.b16 %v4223
          %v4544 = vunpack.c.l.b16 %v4224
          %v4545 = vunpack.c.l.b16 %v4225
          %v4546 = vunpack.c.h.b16 %v4222
          %v4547 = vunpack.c.h.b16 %v4223
          %v4548 = vunpack.c.h.b16 %v4224
          %v4549 = vunpack.c.h.b16 %v4225
          %v4550 = vunpack.c.l.b16 %v4226
          %v4551 = vunpack.c.l.b16 %v4227
          %v4552 = vunpack.c.l.b16 %v4228
          %v4553 = vunpack.c.l.b16 %v4229
          %v4554 = vunpack.c.h.b16 %v4226
          %v4555 = vunpack.c.h.b16 %v4227
          %v4556 = vunpack.c.h.b16 %v4228
          %v4557 = vunpack.c.h.b16 %v4229
          %v4558 = vunpack.c.l.b16 %v4230
          %v4559 = vunpack.c.l.b16 %v4231
          %v4560 = vunpack.c.l.b16 %v4232
          %v4561 = vunpack.c.l.b16 %v4233
          %v4562 = vunpack.c.h.b16 %v4230
          %v4563 = vunpack.c.h.b16 %v4231
          %v4564 = vunpack.c.h.b16 %v4232
          %v4565 = vunpack.c.h.b16 %v4233
          %v4566 = vunpack.c.l.b16 %v4234
          %v4567 = vunpack.c.l.b16 %v4235
          %v4568 = vunpack.c.l.b16 %v4236
          %v4569 = vunpack.c.l.b16 %v4237
          %v4570 = vunpack.c.h.b16 %v4234
          %v4571 = vunpack.c.h.b16 %v4235
          %v4572 = vunpack.c.h.b16 %v4236
          %v4573 = vunpack.c.h.b16 %v4237
          %v4574 = vunpack.c.l.b16 %v4238
          %v4575 = vunpack.c.l.b16 %v4239
          %v4576 = vunpack.c.l.b16 %v4240
          %v4577 = vunpack.c.l.b16 %v4241
          %v4578 = vunpack.c.h.b16 %v4238
          %v4579 = vunpack.c.h.b16 %v4239
          %v4580 = vunpack.c.h.b16 %v4240
          %v4581 = vunpack.c.h.b16 %v4241
          %v4582 = vunpack.c.l.b16 %v4242
          %v4583 = vunpack.c.l.b16 %v4243
          %v4584 = vunpack.c.l.b16 %v4244
          %v4585 = vunpack.c.l.b16 %v4245
          %v4586 = vunpack.c.h.b16 %v4242
          %v4587 = vunpack.c.h.b16 %v4243
          %v4588 = vunpack.c.h.b16 %v4244
          %v4589 = vunpack.c.h.b16 %v4245
          %v4590 = vunpack.c.l.b16 %v4246
          %v4591 = vunpack.c.l.b16 %v4247
          %v4592 = vunpack.c.l.b16 %v4248
          %v4593 = vunpack.c.l.b16 %v4249
          %v4594 = vunpack.c.h.b16 %v4246
          %v4595 = vunpack.c.h.b16 %v4247
          %v4596 = vunpack.c.h.b16 %v4248
          %v4597 = vunpack.c.h.b16 %v4249
          %v4598 = vunpack.c.l.b16 %v4250
          %v4599 = vunpack.c.l.b16 %v4251
          %v4600 = vunpack.c.l.b16 %v4252
          %v4601 = vunpack.c.l.b16 %v4253
          %v4602 = vunpack.c.h.b16 %v4250
          %v4603 = vunpack.c.h.b16 %v4251
          %v4604 = vunpack.c.h.b16 %v4252
          %v4605 = vunpack.c.h.b16 %v4253
          %v4606 = vunpack.c.l.b16 %v4254
          %v4607 = vunpack.c.l.b16 %v4255
          %v4608 = vunpack.c.l.b16 %v4256
          %v4609 = vunpack.c.l.b16 %v4257
          %v4610 = vunpack.c.h.b16 %v4254
          %v4611 = vunpack.c.h.b16 %v4255
          %v4612 = vunpack.c.h.b16 %v4256
          %v4613 = vunpack.c.h.b16 %v4257
          %v4614 = vunpack.c.l.b16 %v4258
          %v4615 = vunpack.c.l.b16 %v4259
          %v4616 = vunpack.c.l.b16 %v4260
          %v4617 = vunpack.c.l.b16 %v4261
          %v4618 = vunpack.c.h.b16 %v4258
          %v4619 = vunpack.c.h.b16 %v4259
          %v4620 = vunpack.c.h.b16 %v4260
          %v4621 = vunpack.c.h.b16 %v4261
          %v4622 = vunpack.c.l.b16 %v4262
          %v4623 = vunpack.c.l.b16 %v4263
          %v4624 = vunpack.c.l.b16 %v4264
          %v4625 = vunpack.c.l.b16 %v4265
          %v4626 = vunpack.c.h.b16 %v4262
          %v4627 = vunpack.c.h.b16 %v4263
          %v4628 = vunpack.c.h.b16 %v4264
          %v4629 = vunpack.c.h.b16 %v4265
          %v4630 = vunpack.c.l.b16 %v4266
          %v4631 = vunpack.c.l.b16 %v4267
          %v4632 = vunpack.c.l.b16 %v4268
          %v4633 = vunpack.c.l.b16 %v4269
          %v4634 = vunpack.c.h.b16 %v4266
          %v4635 = vunpack.c.h.b16 %v4267
          %v4636 = vunpack.c.h.b16 %v4268
          %v4637 = vunpack.c.h.b16 %v4269
          %v4638 = vunpack.c.l.b16 %v4270
          %v4639 = vunpack.c.l.b16 %v4271
          %v4640 = vunpack.c.l.b16 %v4272
          %v4641 = vunpack.c.l.b16 %v4273
          %v4642 = vunpack.c.h.b16 %v4270
          %v4643 = vunpack.c.h.b16 %v4271
          %v4644 = vunpack.c.h.b16 %v4272
          %v4645 = vunpack.c.h.b16 %v4273
          %v4646 = vunpack.c.l.b16 %v4274
          %v4647 = vunpack.c.l.b16 %v4275
          %v4648 = vunpack.c.l.b16 %v4276
          %v4649 = vunpack.c.l.b16 %v4277
          %v4650 = vunpack.c.h.b16 %v4274
          %v4651 = vunpack.c.h.b16 %v4275
          %v4652 = vunpack.c.h.b16 %v4276
          %v4653 = vunpack.c.h.b16 %v4277
          %v4654 = vunpack.c.l.b16 %v4278
          %v4655 = vunpack.c.l.b16 %v4279
          %v4656 = vunpack.c.l.b16 %v4280
          %v4657 = vunpack.c.l.b16 %v4281
          %v4658 = vunpack.c.h.b16 %v4278
          %v4659 = vunpack.c.h.b16 %v4279
          %v4660 = vunpack.c.h.b16 %v4280
          %v4661 = vunpack.c.h.b16 %v4281
          %v4662 = vunpack.c.l.b16 %v4282
          %v4663 = vunpack.c.l.b16 %v4283
          %v4664 = vunpack.c.l.b16 %v4284
          %v4665 = vunpack.c.l.b16 %v4285
          %v4666 = vunpack.c.h.b16 %v4282
          %v4667 = vunpack.c.h.b16 %v4283
          %v4668 = vunpack.c.h.b16 %v4284
          %v4669 = vunpack.c.h.b16 %v4285
          %v4670 = vpack.c.b16 %v4415, %v4414
          %v4671 = vpack.c.b16 %v4417, %v4416
          %v4672 = vpack.c.b16 %v4419, %v4418
          %v4673 = vpack.c.b16 %v4421, %v4420
          %v4674 = vpack.c.b16 %v4423, %v4422
          %v4675 = vpack.c.b16 %v4425, %v4424
          %v4676 = vpack.c.b16 %v4427, %v4426
          %v4677 = vpack.c.b16 %v4429, %v4428
          %v4678 = vpack.c.b16 %v4431, %v4430
          %v4679 = vpack.c.b16 %v4433, %v4432
          %v4680 = vpack.c.b16 %v4435, %v4434
          %v4681 = vpack.c.b16 %v4437, %v4436
          %v4682 = vpack.c.b16 %v4439, %v4438
          %v4683 = vpack.c.b16 %v4441, %v4440
          %v4684 = vpack.c.b16 %v4443, %v4442
          %v4685 = vpack.c.b16 %v4445, %v4444
          %v4686 = vpack.c.b16 %v4447, %v4446
          %v4687 = vpack.c.b16 %v4449, %v4448
          %v4688 = vpack.c.b16 %v4451, %v4450
          %v4689 = vpack.c.b16 %v4453, %v4452
          %v4690 = vpack.c.b16 %v4455, %v4454
          %v4691 = vpack.c.b16 %v4457, %v4456
          %v4692 = vpack.c.b16 %v4459, %v4458
          %v4693 = vpack.c.b16 %v4461, %v4460
          %v4694 = vpack.c.b16 %v4463, %v4462
          %v4695 = vpack.c.b16 %v4465, %v4464
          %v4696 = vpack.c.b16 %v4467, %v4466
          %v4697 = vpack.c.b16 %v4469, %v4468
          %v4698 = vpack.c.b16 %v4471, %v4470
          %v4699 = vpack.c.b16 %v4473, %v4472
          %v4700 = vpack.c.b16 %v4475, %v4474
          %v4701 = vpack.c.b16 %v4477, %v4476
          %v4702 = vpack.c.b16 %v4479, %v4478
          %v4703 = vpack.c.b16 %v4481, %v4480
          %v4704 = vpack.c.b16 %v4483, %v4482
          %v4705 = vpack.c.b16 %v4485, %v4484
          %v4706 = vpack.c.b16 %v4487, %v4486
          %v4707 = vpack.c.b16 %v4489, %v4488
          %v4708 = vpack.c.b16 %v4491, %v4490
          %v4709 = vpack.c.b16 %v4493, %v4492
          %v4710 = vpack.c.b16 %v4495, %v4494
          %v4711 = vpack.c.b16 %v4497, %v4496
          %v4712 = vpack.c.b16 %v4499, %v4498
          %v4713 = vpack.c.b16 %v4501, %v4500
          %v4714 = vpack.c.b16 %v4503, %v4502
          %v4715 = vpack.c.b16 %v4505, %v4504
          %v4716 = vpack.c.b16 %v4507, %v4506
          %v4717 = vpack.c.b16 %v4509, %v4508
          %v4718 = vpack.c.b16 %v4511, %v4510
          %v4719 = vpack.c.b16 %v4513, %v4512
          %v4720 = vpack.c.b16 %v4515, %v4514
          %v4721 = vpack.c.b16 %v4517, %v4516
          %v4722 = vpack.c.b16 %v4519, %v4518
          %v4723 = vpack.c.b16 %v4521, %v4520
          %v4724 = vpack.c.b16 %v4523, %v4522
          %v4725 = vpack.c.b16 %v4525, %v4524
          %v4726 = vpack.c.b16 %v4527, %v4526
          %v4727 = vpack.c.b16 %v4529, %v4528
          %v4728 = vpack.c.b16 %v4531, %v4530
          %v4729 = vpack.c.b16 %v4533, %v4532
          %v4730 = vpack.c.b16 %v4535, %v4534
          %v4731 = vpack.c.b16 %v4537, %v4536
          %v4732 = vpack.c.b16 %v4539, %v4538
          %v4733 = vpack.c.b16 %v4541, %v4540
          %v4734 = vpack.c.b16 %v4543, %v4542
          %v4735 = vpack.c.b16 %v4545, %v4544
          %v4736 = vpack.c.b16 %v4547, %v4546
          %v4737 = vpack.c.b16 %v4549, %v4548
          %v4738 = vpack.c.b16 %v4551, %v4550
          %v4739 = vpack.c.b16 %v4553, %v4552
          %v4740 = vpack.c.b16 %v4555, %v4554
          %v4741 = vpack.c.b16 %v4557, %v4556
          %v4742 = vpack.c.b16 %v4559, %v4558
          %v4743 = vpack.c.b16 %v4561, %v4560
          %v4744 = vpack.c.b16 %v4563, %v4562
          %v4745 = vpack.c.b16 %v4565, %v4564
          %v4746 = vpack.c.b16 %v4567, %v4566
          %v4747 = vpack.c.b16 %v4569, %v4568
          %v4748 = vpack.c.b16 %v4571, %v4570
          %v4749 = vpack.c.b16 %v4573, %v4572
          %v4750 = vpack.c.b16 %v4575, %v4574
          %v4751 = vpack.c.b16 %v4577, %v4576
          %v4752 = vpack.c.b16 %v4579, %v4578
          %v4753 = vpack.c.b16 %v4581, %v4580
          %v4754 = vpack.c.b16 %v4583, %v4582
          %v4755 = vpack.c.b16 %v4585, %v4584
          %v4756 = vpack.c.b16 %v4587, %v4586
          %v4757 = vpack.c.b16 %v4589, %v4588
          %v4758 = vpack.c.b16 %v4591, %v4590
          %v4759 = vpack.c.b16 %v4593, %v4592
          %v4760 = vpack.c.b16 %v4595, %v4594
          %v4761 = vpack.c.b16 %v4597, %v4596
          %v4762 = vpack.c.b16 %v4599, %v4598
          %v4763 = vpack.c.b16 %v4601, %v4600
          %v4764 = vpack.c.b16 %v4603, %v4602
          %v4765 = vpack.c.b16 %v4605, %v4604
          %v4766 = vpack.c.b16 %v4607, %v4606
          %v4767 = vpack.c.b16 %v4609, %v4608
          %v4768 = vpack.c.b16 %v4611, %v4610
          %v4769 = vpack.c.b16 %v4613, %v4612
          %v4770 = vpack.c.b16 %v4615, %v4614
          %v4771 = vpack.c.b16 %v4617, %v4616
          %v4772 = vpack.c.b16 %v4619, %v4618
          %v4773 = vpack.c.b16 %v4621, %v4620
          %v4774 = vpack.c.b16 %v4623, %v4622
          %v4775 = vpack.c.b16 %v4625, %v4624
          %v4776 = vpack.c.b16 %v4627, %v4626
          %v4777 = vpack.c.b16 %v4629, %v4628
          %v4778 = vpack.c.b16 %v4631, %v4630
          %v4779 = vpack.c.b16 %v4633, %v4632
          %v4780 = vpack.c.b16 %v4635, %v4634
          %v4781 = vpack.c.b16 %v4637, %v4636
          %v4782 = vpack.c.b16 %v4639, %v4638
          %v4783 = vpack.c.b16 %v4641, %v4640
          %v4784 = vpack.c.b16 %v4643, %v4642
          %v4785 = vpack.c.b16 %v4645, %v4644
          %v4786 = vpack.c.b16 %v4647, %v4646
          %v4787 = vpack.c.b16 %v4649, %v4648
          %v4788 = vpack.c.b16 %v4651, %v4650
          %v4789 = vpack.c.b16 %v4653, %v4652
          %v4790 = vpack.c.b16 %v4655, %v4654
          %v4791 = vpack.c.b16 %v4657, %v4656
          %v4792 = vpack.c.b16 %v4659, %v4658
          %v4793 = vpack.c.b16 %v4661, %v4660
          %v4794 = vpack.c.b16 %v4663, %v4662
          %v4795 = vpack.c.b16 %v4665, %v4664
          %v4796 = vpack.c.b16 %v4667, %v4666
          %v4797 = vpack.c.b16 %v4669, %v4668
          %4926 = vst [vmem:[%s277] sm:$0xff] %v4670
          %4927 = vst [vmem:[%s277 + $0x8] sm:$0xff] %v4671
          %4928 = vst [vmem:[%s277 + $0x10] sm:$0xff] %v4672
          %4929 = vst [vmem:[%s277 + $0x18] sm:$0xff] %v4673
          %4930 = vst [vmem:[%s277 + $0x20] sm:$0xff] %v4674
          %4931 = vst [vmem:[%s277 + $0x28] sm:$0xff] %v4675
          %4932 = vst [vmem:[%s277 + $0x30] sm:$0xff] %v4676
          %4933 = vst [vmem:[%s277 + $0x38] sm:$0xff] %v4677
          %4934 = vst [vmem:[%s277 + $0x40] sm:$0xff] %v4678
          %4935 = vst [vmem:[%s277 + $0x48] sm:$0xff] %v4679
          %4936 = vst [vmem:[%s277 + $0x50] sm:$0xff] %v4680
          %4937 = vst [vmem:[%s277 + $0x58] sm:$0xff] %v4681
          %4938 = vst [vmem:[%s277 + $0x60] sm:$0xff] %v4682
          %4939 = vst [vmem:[%s277 + $0x68] sm:$0xff] %v4683
          %4940 = vst [vmem:[%s277 + $0x70] sm:$0xff] %v4684
          %4941 = vst [vmem:[%s277 + $0x78] sm:$0xff] %v4685
          %4942 = vst [vmem:[%s277 + $0x80] sm:$0xff] %v4686
          %4943 = vst [vmem:[%s277 + $0x88] sm:$0xff] %v4687
          %4944 = vst [vmem:[%s277 + $0x90] sm:$0xff] %v4688
          %4945 = vst [vmem:[%s277 + $0x98] sm:$0xff] %v4689
          %4946 = vst [vmem:[%s277 + $0xa0] sm:$0xff] %v4690
          %4947 = vst [vmem:[%s277 + $0xa8] sm:$0xff] %v4691
          %4948 = vst [vmem:[%s277 + $0xb0] sm:$0xff] %v4692
          %4949 = vst [vmem:[%s277 + $0xb8] sm:$0xff] %v4693
          %4950 = vst [vmem:[%s277 + $0xc0] sm:$0xff] %v4694
          %4951 = vst [vmem:[%s277 + $0xc8] sm:$0xff] %v4695
          %4952 = vst [vmem:[%s277 + $0xd0] sm:$0xff] %v4696
          %4953 = vst [vmem:[%s277 + $0xd8] sm:$0xff] %v4697
          %4954 = vst [vmem:[%s277 + $0xe0] sm:$0xff] %v4698
          %4955 = vst [vmem:[%s277 + $0xe8] sm:$0xff] %v4699
          %4956 = vst [vmem:[%s277 + $0xf0] sm:$0xff] %v4700
          %4957 = vst [vmem:[%s277 + $0xf8] sm:$0xff] %v4701
          %4958 = vst [vmem:[%s277 + $0x100] sm:$0xff] %v4702
          %4959 = vst [vmem:[%s277 + $0x108] sm:$0xff] %v4703
          %4960 = vst [vmem:[%s277 + $0x110] sm:$0xff] %v4704
          %4961 = vst [vmem:[%s277 + $0x118] sm:$0xff] %v4705
          %4962 = vst [vmem:[%s277 + $0x120] sm:$0xff] %v4706
          %4963 = vst [vmem:[%s277 + $0x128] sm:$0xff] %v4707
          %4964 = vst [vmem:[%s277 + $0x130] sm:$0xff] %v4708
          %4965 = vst [vmem:[%s277 + $0x138] sm:$0xff] %v4709
          %4966 = vst [vmem:[%s277 + $0x140] sm:$0xff] %v4710
          %4967 = vst [vmem:[%s277 + $0x148] sm:$0xff] %v4711
          %4968 = vst [vmem:[%s277 + $0x150] sm:$0xff] %v4712
          %4969 = vst [vmem:[%s277 + $0x158] sm:$0xff] %v4713
          %4970 = vst [vmem:[%s277 + $0x160] sm:$0xff] %v4714
          %4971 = vst [vmem:[%s277 + $0x168] sm:$0xff] %v4715
          %4972 = vst [vmem:[%s277 + $0x170] sm:$0xff] %v4716
          %4973 = vst [vmem:[%s277 + $0x178] sm:$0xff] %v4717
          %4974 = vst [vmem:[%s277 + $0x180] sm:$0xff] %v4718
          %4975 = vst [vmem:[%s277 + $0x188] sm:$0xff] %v4719
          %4976 = vst [vmem:[%s277 + $0x190] sm:$0xff] %v4720
          %4977 = vst [vmem:[%s277 + $0x198] sm:$0xff] %v4721
          %4978 = vst [vmem:[%s277 + $0x1a0] sm:$0xff] %v4722
          %4979 = vst [vmem:[%s277 + $0x1a8] sm:$0xff] %v4723
          %4980 = vst [vmem:[%s277 + $0x1b0] sm:$0xff] %v4724
          %4981 = vst [vmem:[%s277 + $0x1b8] sm:$0xff] %v4725
          %4982 = vst [vmem:[%s277 + $0x1c0] sm:$0xff] %v4726
          %4983 = vst [vmem:[%s277 + $0x1c8] sm:$0xff] %v4727
          %4984 = vst [vmem:[%s277 + $0x1d0] sm:$0xff] %v4728
          %4985 = vst [vmem:[%s277 + $0x1d8] sm:$0xff] %v4729
          %4986 = vst [vmem:[%s277 + $0x1e0] sm:$0xff] %v4730
          %4987 = vst [vmem:[%s277 + $0x1e8] sm:$0xff] %v4731
          %4988 = vst [vmem:[%s277 + $0x1f0] sm:$0xff] %v4732
          %4989 = vst [vmem:[%s277 + $0x1f8] sm:$0xff] %v4733
          %4990 = vst [vmem:[%s277 + $0x200] sm:$0xff] %v4734
          %4991 = vst [vmem:[%s277 + $0x208] sm:$0xff] %v4735
          %4992 = vst [vmem:[%s277 + $0x210] sm:$0xff] %v4736
          %4993 = vst [vmem:[%s277 + $0x218] sm:$0xff] %v4737
          %4994 = vst [vmem:[%s277 + $0x220] sm:$0xff] %v4738
          %4995 = vst [vmem:[%s277 + $0x228] sm:$0xff] %v4739
          %4996 = vst [vmem:[%s277 + $0x230] sm:$0xff] %v4740
          %4997 = vst [vmem:[%s277 + $0x238] sm:$0xff] %v4741
          %4998 = vst [vmem:[%s277 + $0x240] sm:$0xff] %v4742
          %4999 = vst [vmem:[%s277 + $0x248] sm:$0xff] %v4743
          %5000 = vst [vmem:[%s277 + $0x250] sm:$0xff] %v4744
          %5001 = vst [vmem:[%s277 + $0x258] sm:$0xff] %v4745
          %5002 = vst [vmem:[%s277 + $0x260] sm:$0xff] %v4746
          %5003 = vst [vmem:[%s277 + $0x268] sm:$0xff] %v4747
          %5004 = vst [vmem:[%s277 + $0x270] sm:$0xff] %v4748
          %5005 = vst [vmem:[%s277 + $0x278] sm:$0xff] %v4749
          %5006 = vst [vmem:[%s277 + $0x280] sm:$0xff] %v4750
          %5007 = vst [vmem:[%s277 + $0x288] sm:$0xff] %v4751
          %5008 = vst [vmem:[%s277 + $0x290] sm:$0xff] %v4752
          %5009 = vst [vmem:[%s277 + $0x298] sm:$0xff] %v4753
          %5010 = vst [vmem:[%s277 + $0x2a0] sm:$0xff] %v4754
          %5011 = vst [vmem:[%s277 + $0x2a8] sm:$0xff] %v4755
          %5012 = vst [vmem:[%s277 + $0x2b0] sm:$0xff] %v4756
          %5013 = vst [vmem:[%s277 + $0x2b8] sm:$0xff] %v4757
          %5014 = vst [vmem:[%s277 + $0x2c0] sm:$0xff] %v4758
          %5015 = vst [vmem:[%s277 + $0x2c8] sm:$0xff] %v4759
          %5016 = vst [vmem:[%s277 + $0x2d0] sm:$0xff] %v4760
          %5017 = vst [vmem:[%s277 + $0x2d8] sm:$0xff] %v4761
          %5018 = vst [vmem:[%s277 + $0x2e0] sm:$0xff] %v4762
          %5019 = vst [vmem:[%s277 + $0x2e8] sm:$0xff] %v4763
          %5020 = vst [vmem:[%s277 + $0x2f0] sm:$0xff] %v4764
          %5021 = vst [vmem:[%s277 + $0x2f8] sm:$0xff] %v4765
          %5022 = vst [vmem:[%s277 + $0x300] sm:$0xff] %v4766
          %5023 = vst [vmem:[%s277 + $0x308] sm:$0xff] %v4767
          %5024 = vst [vmem:[%s277 + $0x310] sm:$0xff] %v4768
          %5025 = vst [vmem:[%s277 + $0x318] sm:$0xff] %v4769
          %5026 = vst [vmem:[%s277 + $0x320] sm:$0xff] %v4770
          %5027 = vst [vmem:[%s277 + $0x328] sm:$0xff] %v4771
          %5028 = vst [vmem:[%s277 + $0x330] sm:$0xff] %v4772
          %5029 = vst [vmem:[%s277 + $0x338] sm:$0xff] %v4773
          %5030 = vst [vmem:[%s277 + $0x340] sm:$0xff] %v4774
          %5031 = vst [vmem:[%s277 + $0x348] sm:$0xff] %v4775
          %5032 = vst [vmem:[%s277 + $0x350] sm:$0xff] %v4776
          %5033 = vst [vmem:[%s277 + $0x358] sm:$0xff] %v4777
          %5034 = vst [vmem:[%s277 + $0x360] sm:$0xff] %v4778
          %5035 = vst [vmem:[%s277 + $0x368] sm:$0xff] %v4779
          %5036 = vst [vmem:[%s277 + $0x370] sm:$0xff] %v4780
          %5037 = vst [vmem:[%s277 + $0x378] sm:$0xff] %v4781
          %5038 = vst [vmem:[%s277 + $0x380] sm:$0xff] %v4782
          %5039 = vst [vmem:[%s277 + $0x388] sm:$0xff] %v4783
          %5040 = vst [vmem:[%s277 + $0x390] sm:$0xff] %v4784
          %5041 = vst [vmem:[%s277 + $0x398] sm:$0xff] %v4785
          %5042 = vst [vmem:[%s277 + $0x3a0] sm:$0xff] %v4786
          %5043 = vst [vmem:[%s277 + $0x3a8] sm:$0xff] %v4787
          %5044 = vst [vmem:[%s277 + $0x3b0] sm:$0xff] %v4788
          %5045 = vst [vmem:[%s277 + $0x3b8] sm:$0xff] %v4789
          %5046 = vst [vmem:[%s277 + $0x3c0] sm:$0xff] %v4790
          %5047 = vst [vmem:[%s277 + $0x3c8] sm:$0xff] %v4791
          %5048 = vst [vmem:[%s277 + $0x3d0] sm:$0xff] %v4792
          %5049 = vst [vmem:[%s277 + $0x3d8] sm:$0xff] %v4793
          %5050 = vst [vmem:[%s277 + $0x3e0] sm:$0xff] %v4794
          %5051 = vst [vmem:[%s277 + $0x3e8] sm:$0xff] %v4795
          %5052 = vst [vmem:[%s277 + $0x3f0] sm:$0xff] %v4796
          %5053 = vst [vmem:[%s277 + $0x3f8] sm:$0xff] %v4797
        $region52: #{tpu_custom_call.1} parent=31 // pred_fallthru
          _
        %s5054 = sand.u32 %s132, 1
        %s5055 = scalar_lea.sflag [#allocation5], %s5054
        %s5056 = sand.u32 %s132, 1
        %s5057 = smul.addr %s5056, 1024
        %s5058 = scalar_lea.vmem [#allocation9], %s5057
        // Predicated region
        $region53: #{tpu_custom_call.1} parent=31 // pred_check
          %p5059 = pneg %p142
        $region54: #{tpu_custom_call.1} parent=31 // pred_check_branch
          %5061 = sbr.rel (%p5059) target = $region56
        $region55: #{tpu_custom_call.1} parent=31 // pred_region
          %s5062 = smul.u32 64, %s26
          %s5063 = smul.u32 4, %s27
          %s5065 = ssub.s32 16384, 16384
          %5066 = vsyncadd %s5055, %s5065
          %s5067 = smul.addr %s5062, 12
          %s5068 = sadd.s32 %s5063, %s5067
          %s5069 = smul.addr %s5068, 64
          %s5070 = scalar_lea.hbm %s3, %s5069
          %s5071 = sshll.u32 %s5058, 4
          %s5072 = int_to_ptr.vmem [resolvable:$true] %s5071
          %5077 = dma.vmem_to_hbm [thread:$0]  %s5072, 16384, %s5070, %s5055, 256, 768, 16
        $region56: #{tpu_custom_call.1} parent=31 // pred_fallthru
          _
      $region32: #{tpu_custom_call.1} parent=5 // pred_fallthru
        _
      %p5078 = scmp.le.s32.totalorder 2, %s16
      // Predicated region
      $region57: #{tpu_custom_call.1} parent=5 // pred_check
        %p5079 = pneg %p5078
      $region58: #{tpu_custom_call.1} parent=5 // pred_check_branch
        %5081 = sbr.rel (%p5079) target = $region60
      $region59: #{tpu_custom_call.1} parent=5 // pred_region
        %s5082 = ssub.s32 %s16, 2
        // Predicated region
        $region61: #{tpu_custom_call.1} parent=59 // pred_check
          %p5083 = pneg %p148
        $region62: #{tpu_custom_call.1} parent=59 // pred_check_branch
          %5085 = sbr.rel (%p5083) target = $region64
        $region63: #{tpu_custom_call.1} parent=59 // pred_region
          %s5086 = sand.u32 %s133, 1
          %s5087 = scalar_lea.sflag [#allocation5], %s5086
          %s5088 = sand.u32 %s133, 1
          %s5089 = smul.addr %s5088, 1024
          %s5090 = scalar_lea.vmem [#allocation9], %s5089
          %5091 = dma.done %s5087, 16384
        $region64: #{tpu_custom_call.1} parent=59 // pred_fallthru
          _
      $region60: #{tpu_custom_call.1} parent=5 // pred_fallthru
        _
    $region6: #{tpu_custom_call.1} parent=1 // loop_footer
      %s20 = sadd.s32 1, %s16
    $region7: #{tpu_custom_call.1} parent=1 // loop_footer_branch
      %15 = sbr.rel target = $region3
    $region8: #{tpu_custom_call.1} parent=1 // loop_exit
      _
    %5092 = vsyncpa [#allocation4], 1
    %s5093 = scalar_lea.sflag [#allocation4], 1
    %5094 = vsyncpa %s5093, 1
    %5095 = vsyncpa [#allocation7], 1
    %s5096 = scalar_lea.sflag [#allocation7], 1
    %5097 = vsyncpa %s5096, 1
    %5098 = vsyncpa [#allocation5], 1
    %s5099 = scalar_lea.sflag [#allocation5], 1
    %5100 = vsyncpa %s5099, 1

</llo_original>
